<compile_context>
chip_gen: v5e
topology: v5e:2x2
jax: 0.10.0
libtpu: 0.0.40
codegen_flags: <defaults>
</compile_context>

<pallas_src>
import functools

import jax
import jax.numpy as jnp
from jax.experimental import pallas as pl
from jax.experimental.pallas import tpu as pltpu


# ------------------------------- small helpers ------------------------------ #

def _round_up(x, m):
    return ((x + m - 1) // m) * m


def _rows_and_tile(n):
    """Pad a row-like dim and pick a parallel tile.

    Guarantees >=2 grid programs (so v7x's second TensorCore is not idle) and
    caps tiles at 256 rows (fills the 2x256x256 MXU on v6e/v7x).
    """
    n_pad = _round_up(max(n, 1), 8)
    if n_pad <= 16:
        return 16, 8                        # 2 programs of 8 rows
    if n_pad <= 512:
        n_pad = _round_up(n_pad, 16)
        return n_pad, n_pad // 2            # 2 programs, tile <= 256
    n_pad = _round_up(n_pad, 256)
    return n_pad, 256                       # >=3 programs of 256 rows


def _pad2(a, rows, cols):
    return jnp.pad(a, ((0, rows - a.shape[0]), (0, cols - a.shape[1])))


def _pack_gate_cols(w_t, h, hp):
    """(K, 4h) -> (K, 4*hp): gate g's h columns land at [g*hp, g*hp + h)."""
    k_dim = w_t.shape[0]
    out = jnp.zeros((k_dim, 4 * hp), w_t.dtype)
    for g in range(4):
        out = out.at[:, g * hp:g * hp + h].set(w_t[:, g * h:(g + 1) * h])
    return out


def _pad_rows(w, rows):
    return jnp.pad(w, ((0, rows - w.shape[0]), (0, 0)))


@functools.lru_cache(maxsize=1)
def _vmem_limit_bytes():
    """~3/4 of physical VMEM, capped at 100 MiB (96 MiB v5e/v6e, 48 MiB v7x)."""
    cap = 128 * 1024 * 1024
    try:
        info = pltpu.get_tpu_info()
        cap = int(getattr(info, "vmem_capacity_bytes", cap))
    except Exception:
        pass
    return int(min(cap * 3 // 4, 100 * 1024 * 1024))


# ----------------------------- Pallas kernels ------------------------------ #

def lstm_kernel(x_ref, w0_ref, wr_ref, whh_ref, b_ref, ht_ref, seq_ref, gx_ref,
                *, n_layers, seq_len, hp):
    """Multi-layer LSTM over a batch tile; writes last layer's final hidden.

    x_ref:   (T, Bt, D_in)            bf16  inputs (one batch tile)
    w0_ref:  (D_in, 4*hp)             bf16  layer-0 W_ih^T (gate-padded cols)
    wr_ref:  (max(N-1,1), hp, 4*hp)   bf16  W_ih^T of layers 1..N-1
    whh_ref: (N, hp, 4*hp)            bf16  W_hh^T of all layers
    b_ref:   (N, 1, 4*hp)             f32   bias_ih + bias_hh per layer
    ht_ref:  (Bt, hp)                 f32   out: h of last layer, last step
    seq_ref: (T or 1, Bt, hp)         bf16  scratch: layer l -> layer l+1
    gx_ref:  (T, Bt, 4*hp)            f32   scratch: hoisted x @ W_ih + bias

    Padded weight columns/rows and bias lanes are zero, so padded h/c lanes
    stay exactly 0 through the recurrence (sigmoid(0)*tanh(0) paths).
    """
    T = seq_len
    Bt = x_ref.shape[1]
    G = 4 * hp

    h_out = jnp.zeros((Bt, hp), jnp.float32)
    for layer in range(n_layers):
        # Hoisted input projection: ONE MXU-filling matmul over all timesteps
        # (bias folded in). Only the K=hp recurrent dot stays serial.
        if layer == 0:
            x_all = x_ref[...].reshape(T * Bt, x_ref.shape[2])
            gx = jnp.dot(x_all, w0_ref[...], preferred_element_type=jnp.float32)
        else:
            x_all = seq_ref[...].reshape(T * Bt, hp)
            gx = jnp.dot(x_all, wr_ref[layer - 1],
                         preferred_element_type=jnp.float32)
        gx_ref[...] = (gx + b_ref[layer]).reshape(T, Bt, G)

        whh = whh_ref[layer]
        is_last_layer = (layer == n_layers - 1)

        def step(t, carry, _last=is_last_layer, _whh=whh):
            h, c = carry
            gates = gx_ref[t] + jnp.dot(h.astype(jnp.bfloat16), _whh,
                                        preferred_element_type=jnp.float32)
            i_g = jax.nn.sigmoid(gates[:, 0 * hp:1 * hp])
            f_g = jax.nn.sigmoid(gates[:, 1 * hp:2 * hp])
            g_g = jnp.tanh(gates[:, 2 * hp:3 * hp])
            o_g = jax.nn.sigmoid(gates[:, 3 * hp:4 * hp])
            c_new = f_g * c + i_g * g_g
            h_new = o_g * jnp.tanh(c_new)
            if not _last:                     # only non-final layers feed l+1
                seq_ref[t] = h_new.astype(jnp.bfloat16)
            return h_new, c_new

        h0 = jnp.zeros((Bt, hp), jnp.float32)
        c0 = jnp.zeros((Bt, hp), jnp.float32)
        # Unroll gives the LLO scheduler visibility to co-issue EUP
        # (sigmoid/tanh), VPU and the recurrent MXU push across iterations.
        unroll = True if seq_len <= 16 else 4
        h_out, _ = jax.lax.fori_loop(0, seq_len, step, (h0, c0), unroll=unroll)

    ht_ref[...] = h_out


def mlp3_kernel(x_ref, w1_ref, b1_ref, w2_ref, b2_ref, w3_ref, b3_ref, o_ref,
                *, final_softplus):
    """Linear -> ReLU -> Linear -> ReLU -> Linear (optionally + softplus).

    x is bf16, weights bf16, biases f32; accumulation in f32. All output
    widths are pre-padded to multiples of 128 lanes (lane-dense stores).
    """
    h = jnp.dot(x_ref[...], w1_ref[...],
                preferred_element_type=jnp.float32) + b1_ref[...]
    h = jnp.maximum(h, 0.0)
    h = jnp.dot(h.astype(jnp.bfloat16), w2_ref[...],
                preferred_element_type=jnp.float32) + b2_ref[...]
    h = jnp.maximum(h, 0.0)
    y = jnp.dot(h.astype(jnp.bfloat16), w3_ref[...],
                preferred_element_type=jnp.float32) + b3_ref[...]
    if final_softplus:
        # numerically-stable softplus; the reference applies F.softplus to
        # BOTH output columns (loc and scale), so we do too.
        y = jnp.maximum(y, 0.0) + jnp.log1p(jnp.exp(-jnp.abs(y)))
    o_ref[...] = y


# --------------------------- Pallas call wrappers --------------------------- #

def _run_mlp3(x, w1, b1, w2, b2, w3, b3, *, final_softplus):
    """x: (rows, k1) f32; w*: (in, out); b*: (out,). Returns (rows, out3) f32."""
    rows, k1 = x.shape
    h1, h2, h3 = w1.shape[1], w2.shape[1], w3.shape[1]
    # lane-dense widths (multiples of 128) for every linear's output
    h1p, h2p, h3p = (_round_up(v, 128) for v in (h1, h2, h3))
    rows_p, rt = _rows_and_tile(rows)

    xp = jnp.pad(x, ((0, rows_p - rows), (0, 0))).astype(jnp.bfloat16)
    w1p = _pad2(w1, k1, h1p).astype(jnp.bfloat16)
    w2p = _pad2(w2, h1p, h2p).astype(jnp.bfloat16)
    w3p = _pad2(w3, h2p, h3p).astype(jnp.bfloat16)
    b1p = _pad2(b1[None, :], 1, h1p).astype(jnp.float32)
    b2p = _pad2(b2[None, :], 1, h2p).astype(jnp.float32)
    b3p = _pad2(b3[None, :], 1, h3p).astype(jnp.float32)

    w_elems = k1 * h1p + h1p * h2p + h2p * h3p
    flops = 2 * rows_p * w_elems
    trans = rows_p * h3p if final_softplus else 0
    bytes_acc = (xp.size * 2 + w_elems * 2 + (h1p + h2p + h3p) * 4
                 + rows_p * h3p * 4)

    # TODO(synk): at production d_glob (v7x, 64 MiB VMEM) the square weight
    # layers should be K/N-tiled (grid over 256-512 output-column tiles and
    # K tiles with an f32 accumulator, K axis last/"arbitrary") instead of
    # whole-weight-in-VMEM; at these sizes whole weights fit every generation.
    out = pl.pallas_call(
        functools.partial(mlp3_kernel, final_softplus=final_softplus),
        grid=(rows_p // rt,),
        in_specs=[
            pl.BlockSpec((rt, k1), lambda i: (i, 0)),
            pl.BlockSpec((k1, h1p), lambda i: (0, 0)),
            pl.BlockSpec((1, h1p), lambda i: (0, 0)),
            pl.BlockSpec((h1p, h2p), lambda i: (0, 0)),
            pl.BlockSpec((1, h2p), lambda i: (0, 0)),
            pl.BlockSpec((h2p, h3p), lambda i: (0, 0)),
            pl.BlockSpec((1, h3p), lambda i: (0, 0)),
        ],
        out_specs=pl.BlockSpec((rt, h3p), lambda i: (i, 0)),
        out_shape=jax.ShapeDtypeStruct((rows_p, h3p), jnp.float32),
        compiler_params=pltpu.CompilerParams(
            dimension_semantics=("parallel",),
            vmem_limit_bytes=_vmem_limit_bytes()),
        cost_estimate=pl.CostEstimate(flops=int(flops),
                                      transcendentals=int(trans),
                                      bytes_accessed=int(bytes_acc)),
    )(xp, w1p, b1p, w2p, b2p, w3p, b3p)
    return out[:rows, :h3]


# ------------------------------ Parameter init ------------------------------ #

def init_params(key, d_lag, d_cov, d_emb, d_hidden, N, d_inputseqlen,
                d_outputseqlen, d_maxseqlen):
    d_emb_tot = int(sum(e[1] for e in d_emb))
    d_in = d_lag + d_cov + d_emb_tot
    d_glob = d_hidden * (d_outputseqlen + 1)
    d_glob_in = d_hidden + d_cov * (d_maxseqlen - d_inputseqlen)
    d_loc = d_hidden + d_hidden + d_cov

    keys = iter(jax.random.split(key, 64))

    def w(shape, scale=0.1):
        return (scale * jax.random.normal(next(keys), shape)).astype(jnp.float32)

    params = {}
    params['emb'] = [w((int(v), int(d))) for v, d in d_emb]

    lstm = []
    for layer in range(N):
        in_l = d_in if layer == 0 else d_hidden
        lstm.append(dict(wih=w((4 * d_hidden, in_l)),
                         whh=w((4 * d_hidden, d_hidden)),
                         bih=w((4 * d_hidden,)),
                         bhh=w((4 * d_hidden,))))
    params['lstm'] = lstm

    params['mlp_global'] = [dict(w=w((d_glob, d_glob_in)), b=w((d_glob,))),
                            dict(w=w((d_glob, d_glob)), b=w((d_glob,))),
                            dict(w=w((d_glob, d_glob)), b=w((d_glob,)))]
    params['mlp_local'] = [dict(w=w((d_loc, d_loc)), b=w((d_loc,))),
                           dict(w=w((d_loc, d_loc)), b=w((d_loc,))),
                           dict(w=w((2, d_loc)), b=w((2,)))]
    return params


# --------------------------------- Forward ---------------------------------- #

def mlrnn_forward(params, x_lag, x_cov, x_idx, d_outputseqlen, *, d_hidden, N):
    T_total, B, _ = x_lag.shape
    H = d_hidden
    Hp = _round_up(H, 128)          # per-gate lane-padded hidden width
    G = 4 * Hp

    # pad batch to sublane-friendly size with >=2 tiles; sliced off at the end
    B_p, bt = _rows_and_tile(B)
    pad_b = B_p - B
    x_lag_p = jnp.pad(x_lag, ((0, 0), (0, pad_b), (0, 0)))
    x_cov_p = jnp.pad(x_cov, ((0, 0), (0, pad_b), (0, 0)))
    x_idx_p = jnp.pad(x_idx, ((0, 0), (0, pad_b), (0, 0)))   # index 0 is valid

    # embedding lookups (glue; gather in plain JAX)
    x_emb = jnp.concatenate(
        [jnp.take(params['emb'][i], x_idx_p[:, :, i], axis=0)
         for i in range(len(params['emb']))], axis=-1)

    d_inputseqlen = T_total - d_outputseqlen
    inputs = jnp.concatenate(
        [x_lag_p[:d_inputseqlen], x_cov_p[:d_inputseqlen], x_emb[:d_inputseqlen]],
        axis=-1).astype(jnp.bfloat16)                        # (Tin, B_p, D_in)
    D_in = inputs.shape[-1]

    # LSTM weights: transposed, gate-padded to Hp output lanes per gate, bf16
    lstm_p = params['lstm']
    w0 = _pack_gate_cols(lstm_p[0]['wih'].T, H, Hp).astype(jnp.bfloat16)
    if N > 1:
        wr = jnp.stack([
            _pad_rows(_pack_gate_cols(lstm_p[l]['wih'].T, H, Hp), Hp)
            for l in range(1, N)]).astype(jnp.bfloat16)      # (N-1, Hp, 4Hp)
    else:
        wr = jnp.zeros((1, Hp, G), jnp.bfloat16)             # unused dummy
    whh = jnp.stack([
        _pad_rows(_pack_gate_cols(lstm_p[l]['whh'].T, H, Hp), Hp)
        for l in range(N)]).astype(jnp.bfloat16)             # (N, Hp, 4Hp)
    b = jnp.stack([
        _pack_gate_cols((lstm_p[l]['bih'] + lstm_p[l]['bhh'])[None, :], H, Hp)
        for l in range(N)]).astype(jnp.float32)              # (N, 1, 4Hp)

    T_seq = d_inputseqlen if N > 1 else 1   # no inter-layer scratch for N == 1

    flops = 2 * d_inputseqlen * B_p * (D_in * G + (N - 1) * Hp * G + N * Hp * G)
    trans = 5 * d_inputseqlen * B_p * N * Hp
    bytes_acc = (inputs.size * 2 + (w0.size + wr.size + whh.size) * 2
                 + b.size * 4 + B_p * Hp * 4)

    # TODO(synk): for long input sequences on v7x (64 MiB VMEM), stream time
    # chunks via a grid axis / emit_pipeline with h,c carried in scratch
    # instead of whole-sequence residency of the x block + gx scratch.
    ht_full = pl.pallas_call(
        functools.partial(lstm_kernel, n_layers=N, seq_len=d_inputseqlen, hp=Hp),
        grid=(B_p // bt,),
        in_specs=[
            pl.BlockSpec((d_inputseqlen, bt, D_in), lambda i: (0, i, 0)),
            pl.BlockSpec((D_in, G), lambda i: (0, 0)),
            pl.BlockSpec((max(N - 1, 1), Hp, G), lambda i: (0, 0, 0)),
            pl.BlockSpec((N, Hp, G), lambda i: (0, 0, 0)),
            pl.BlockSpec((N, 1, G), lambda i: (0, 0, 0)),
        ],
        out_specs=pl.BlockSpec((bt, Hp), lambda i: (i, 0)),
        out_shape=jax.ShapeDtypeStruct((B_p, Hp), jnp.float32),
        scratch_shapes=[pltpu.VMEM((T_seq, bt, Hp), jnp.bfloat16),
                        pltpu.VMEM((d_inputseqlen, bt, G), jnp.float32)],
        compiler_params=pltpu.CompilerParams(
            dimension_semantics=("parallel",),
            vmem_limit_bytes=_vmem_limit_bytes()),
        cost_estimate=pl.CostEstimate(flops=int(flops),
                                      transcendentals=int(trans),
                                      bytes_accessed=int(bytes_acc)),
    )(inputs, w0, wr, whh, b)
    ht = ht_full[:, :H]                                      # drop lane padding

    # global MLP
    x_cov_future = jnp.transpose(x_cov_p[d_inputseqlen:], (1, 0, 2)).reshape(B_p, -1)
    input_global = jnp.concatenate([ht, x_cov_future], axis=-1)

    wg = params['mlp_global']
    h_global_flat = _run_mlp3(
        input_global,
        wg[0]['w'].T, wg[0]['b'], wg[1]['w'].T, wg[1]['b'],
        wg[2]['w'].T, wg[2]['b'], final_softplus=False)      # (B_p, d_glob)

    h_global = h_global_flat.reshape(B_p, H, d_outputseqlen + 1)
    h_global = jnp.transpose(h_global, (2, 0, 1))            # (out+1, B_p, H)

    # local MLP: all d_outputseqlen steps batched into one kernel call
    h_last = jnp.broadcast_to(h_global[-1], (d_outputseqlen, B_p, H))
    input_local = jnp.concatenate(
        [h_global[:d_outputseqlen], h_last,
         x_cov_p[d_inputseqlen:d_inputseqlen + d_outputseqlen]], axis=-1)
    F_local = input_local.shape[-1]
    input_local_flat = input_local.reshape(d_outputseqlen * B_p, F_local)

    wl = params['mlp_local']
    y = _run_mlp3(
        input_local_flat,
        wl[0]['w'].T, wl[0]['b'], wl[1]['w'].T, wl[1]['b'],
        wl[2]['w'].T, wl[2]['b'], final_softplus=True)       # (T_out*B_p, 2)

    y = y.reshape(d_outputseqlen, B_p, 2)
    loc = y[:, :B, 0:1]
    scale = y[:, :B, 1:2] + 1e-6
    return loc, scale


# ---------------------------------- Main ------------------------------------ #

if __name__ == "__main__":
    # small, self-consistent hyperparameters
    d_lag, d_cov = 1, 2
    d_emb = [(10, 3), (5, 2)]          # (vocab, emb_dim) per categorical feature
    d_hidden = 32
    dropout = 0.0                       # unused by the reference forward
    N = 2
    d_outputseqlen = 2
    d_maxseqlen = 8
    d_inputseqlen = d_maxseqlen - d_outputseqlen   # 6
    batch = 4
    seq = d_maxseqlen

    params = init_params(jax.random.PRNGKey(42), d_lag, d_cov, d_emb, d_hidden,
                         N, d_inputseqlen, d_outputseqlen, d_maxseqlen)

    key = jax.random.PRNGKey(0)
    k1, k2, k3, k4 = jax.random.split(key, 4)
    x_lag = jax.random.normal(k1, (seq, batch, d_lag), jnp.float32)
    x_cov = jax.random.normal(k2, (seq, batch, d_cov), jnp.float32)
    x_idx = jnp.stack(
        [jax.random.randint(k3, (seq, batch), 0, d_emb[0][0]),
         jax.random.randint(k4, (seq, batch), 0, d_emb[1][0])], axis=-1
    ).astype(jnp.int32)

    loc, scale = mlrnn_forward(params, x_lag, x_cov, x_idx, d_outputseqlen,
                               d_hidden=d_hidden, N=N)
    jax.block_until_ready(loc)
    jax.block_until_ready(scale)

    assert loc.shape == (d_outputseqlen, batch, 1)
    assert scale.shape == (d_outputseqlen, batch, 1)
    print("KERNEL_OK")
</pallas_src>

<mosaic_0001>
module attributes {stable_mosaic.version = 11 : i64} {
  func.func @lstm_kernel(%arg0: i32, %arg1: memref<6x8x8xbf16, #tpu.memory_space<vmem>>, %arg2: memref<8x512xbf16, #tpu.memory_space<vmem>>, %arg3: memref<1x128x512xbf16, #tpu.memory_space<vmem>>, %arg4: memref<2x128x512xbf16, #tpu.memory_space<vmem>>, %arg5: memref<2x1x512xf32, #tpu.memory_space<vmem>>, %arg6: memref<8x128xf32, #tpu.memory_space<vmem>>, %arg7: memref<6x8x128xbf16, #tpu.memory_space<vmem>>, %arg8: memref<6x8x512xf32, #tpu.memory_space<vmem>>) attributes {dimension_semantics = [#tpu.dimension_semantics<parallel>], iteration_bounds = array<i64: 2>, scalar_prefetch = 0 : i64, scratch_operands = 2 : i64, tpu.core_type = #tpu.core_type<tc>, window_params = [{transform_indices = @transform_0, window_bounds = array<i64: 6, 8, 8>}, {pipeline_mode = #tpu.pipeline_mode<synchronous>, transform_indices = @transform_1, window_bounds = array<i64: 8, 512>}, {pipeline_mode = #tpu.pipeline_mode<synchronous>, transform_indices = @transform_2, window_bounds = array<i64: 1, 128, 512>}, {pipeline_mode = #tpu.pipeline_mode<synchronous>, transform_indices = @transform_3, window_bounds = array<i64: 2, 128, 512>}, {pipeline_mode = #tpu.pipeline_mode<synchronous>, transform_indices = @transform_4, window_bounds = array<i64: 2, 1, 512>}, {transform_indices = @transform_5, window_bounds = array<i64: 8, 128>}]} {
    %c0 = arith.constant 0 : index
    %c0_0 = arith.constant 0 : index
    %c0_1 = arith.constant 0 : index
    %0 = vector.load %arg1[%c0, %c0_0, %c0_1] : memref<6x8x8xbf16, #tpu.memory_space<vmem>>, vector<6x8x8xbf16>
    %1 = vector.shape_cast %0 : vector<6x8x8xbf16> to vector<48x8xbf16>
    %c0_2 = arith.constant 0 : index
    %c0_3 = arith.constant 0 : index
    %2 = vector.load %arg2[%c0_2, %c0_3] : memref<8x512xbf16, #tpu.memory_space<vmem>>, vector<8x512xbf16>
    %cst = arith.constant dense<0.000000e+00> : vector<48x512xf32>
    %3 = tpu.matmul %1, %2, %cst {dimension_numbers = #tpu.dot_dimension_numbers<[1], [0], [0], [1], [0, 0, 1, 1], [], []>} : vector<48x8xbf16>, vector<8x512xbf16>, vector<48x512xf32> -> vector<48x512xf32>
    %c0_4 = arith.constant 0 : index
    %c0_5 = arith.constant 0 : index
    %c0_6 = arith.constant 0 : index
    %4 = vector.load %arg5[%c0_4, %c0_5, %c0_6] : memref<2x1x512xf32, #tpu.memory_space<vmem>>, vector<1x1x512xf32>
    %5 = vector.shape_cast %4 : vector<1x1x512xf32> to vector<1x512xf32>
    %6 = vector.broadcast %5 : vector<1x512xf32> to vector<48x512xf32>
    %7 = arith.addf %3, %6 : vector<48x512xf32>
    %8 = vector.shape_cast %7 : vector<48x512xf32> to vector<6x8x512xf32>
    %c0_7 = arith.constant 0 : index
    %c0_8 = arith.constant 0 : index
    %c0_9 = arith.constant 0 : index
    %9 = vector.load %arg8[%c0_7, %c0_8, %c0_9] : memref<6x8x512xf32, #tpu.memory_space<vmem>>, vector<6x8x512xf32>
    tpu.vector_store %arg8[%c0_7, %c0_8, %c0_9], %8 {strides = array<i32>} : memref<6x8x512xf32, #tpu.memory_space<vmem>>, vector<6x8x512xf32>,
    %c0_10 = arith.constant 0 : index
    %c0_11 = arith.constant 0 : index
    %c0_12 = arith.constant 0 : index
    %10 = vector.load %arg4[%c0_10, %c0_11, %c0_12] : memref<2x128x512xbf16, #tpu.memory_space<vmem>>, vector<1x128x512xbf16>
    %11 = vector.shape_cast %10 : vector<1x128x512xbf16> to vector<128x512xbf16>
    %cst_13 = arith.constant 0.000000e+00 : f32
    %12 = vector.broadcast %cst_13 : f32 to vector<8x128xf32>
    %cst_14 = arith.constant 0.000000e+00 : f32
    %13 = vector.broadcast %cst_14 : f32 to vector<8x128xf32>
    %c0_i32 = arith.constant 0 : i32
    %14 = arith.index_cast %c0_i32 : i32 to index
    %c0_15 = arith.constant 0 : index
    %c0_16 = arith.constant 0 : index
    %15 = vector.load %arg8[%14, %c0_15, %c0_16] : memref<6x8x512xf32, #tpu.memory_space<vmem>>, vector<1x8x512xf32>
    %16 = vector.shape_cast %15 : vector<1x8x512xf32> to vector<8x512xf32>
    %17 = arith.truncf %12 : vector<8x128xf32> to vector<8x128xbf16>
    %cst_17 = arith.constant dense<0.000000e+00> : vector<8x512xf32>
    %18 = tpu.matmul %17, %11, %cst_17 {dimension_numbers = #tpu.dot_dimension_numbers<[1], [0], [0], [1], [0, 0, 1, 1], [], []>} : vector<8x128xbf16>, vector<128x512xbf16>, vector<8x512xf32> -> vector<8x512xf32>
    %19 = arith.addf %16, %18 : vector<8x512xf32>
    %20 = vector.extract_strided_slice %19 {offsets = [0, 0], sizes = [8, 128], strides = [1, 1]} : vector<8x512xf32> to vector<8x128xf32>
    %21 = arith.negf %20 : vector<8x128xf32>
    %22 = math.exp %21 : vector<8x128xf32>
    %cst_18 = arith.constant 1.000000e+00 : f32
    %23 = vector.broadcast %cst_18 : f32 to vector<8x128xf32>
    %24 = arith.addf %23, %22 : vector<8x128xf32>
    %25 = arith.divf %23, %24 : vector<8x128xf32>
    %26 = vector.extract_strided_slice %19 {offsets = [0, 128], sizes = [8, 128], strides = [1, 1]} : vector<8x512xf32> to vector<8x128xf32>
    %27 = arith.negf %26 : vector<8x128xf32>
    %28 = math.exp %27 : vector<8x128xf32>
    %cst_19 = arith.constant 1.000000e+00 : f32
    %29 = vector.broadcast %cst_19 : f32 to vector<8x128xf32>
    %30 = arith.addf %29, %28 : vector<8x128xf32>
    %31 = arith.divf %29, %30 : vector<8x128xf32>
    %32 = vector.extract_strided_slice %19 {offsets = [0, 256], sizes = [8, 128], strides = [1, 1]} : vector<8x512xf32> to vector<8x128xf32>
    %33 = math.tanh %32 : vector<8x128xf32>
    %34 = vector.extract_strided_slice %19 {offsets = [0, 384], sizes = [8, 128], strides = [1, 1]} : vector<8x512xf32> to vector<8x128xf32>
    %35 = arith.negf %34 : vector<8x128xf32>
    %36 = math.exp %35 : vector<8x128xf32>
    %cst_20 = arith.constant 1.000000e+00 : f32
    %37 = vector.broadcast %cst_20 : f32 to vector<8x128xf32>
    %38 = arith.addf %37, %36 : vector<8x128xf32>
    %39 = arith.divf %37, %38 : vector<8x128xf32>
    %40 = arith.mulf %31, %13 : vector<8x128xf32>
    %41 = arith.mulf %25, %33 : vector<8x128xf32>
    %42 = arith.addf %40, %41 : vector<8x128xf32>
    %43 = math.tanh %42 : vector<8x128xf32>
    %44 = arith.mulf %39, %43 : vector<8x128xf32>
    %45 = arith.truncf %44 : vector<8x128xf32> to vector<8x128xbf16>
    %46 = arith.index_cast %c0_i32 : i32 to index
    %c0_21 = arith.constant 0 : index
    %c0_22 = arith.constant 0 : index
    %47 = vector.load %arg7[%46, %c0_21, %c0_22] : memref<6x8x128xbf16, #tpu.memory_space<vmem>>, vector<1x8x128xbf16>
    %48 = vector.shape_cast %47 : vector<1x8x128xbf16> to vector<8x128xbf16>
    %49 = vector.shape_cast %45 : vector<8x128xbf16> to vector<1x8x128xbf16>
    tpu.vector_store %arg7[%46, %c0_21, %c0_22], %49 {strides = array<i32>} : memref<6x8x128xbf16, #tpu.memory_space<vmem>>, vector<1x8x128xbf16>,
    %c1_i32 = arith.constant 1 : i32
    %50 = arith.index_cast %c1_i32 : i32 to index
    %c0_23 = arith.constant 0 : index
    %c0_24 = arith.constant 0 : index
    %51 = vector.load %arg8[%50, %c0_23, %c0_24] : memref<6x8x512xf32, #tpu.memory_space<vmem>>, vector<1x8x512xf32>
    %52 = vector.shape_cast %51 : vector<1x8x512xf32> to vector<8x512xf32>
    %53 = arith.truncf %44 : vector<8x128xf32> to vector<8x128xbf16>
    %cst_25 = arith.constant dense<0.000000e+00> : vector<8x512xf32>
    %54 = tpu.matmul %53, %11, %cst_25 {dimension_numbers = #tpu.dot_dimension_numbers<[1], [0], [0], [1], [0, 0, 1, 1], [], []>} : vector<8x128xbf16>, vector<128x512xbf16>, vector<8x512xf32> -> vector<8x512xf32>
    %55 = arith.addf %52, %54 : vector<8x512xf32>
    %56 = vector.extract_strided_slice %55 {offsets = [0, 0], sizes = [8, 128], strides = [1, 1]} : vector<8x512xf32> to vector<8x128xf32>
    %57 = arith.negf %56 : vector<8x128xf32>
    %58 = math.exp %57 : vector<8x128xf32>
    %cst_26 = arith.constant 1.000000e+00 : f32
    %59 = vector.broadcast %cst_26 : f32 to vector<8x128xf32>
    %60 = arith.addf %59, %58 : vector<8x128xf32>
    %61 = arith.divf %59, %60 : vector<8x128xf32>
    %62 = vector.extract_strided_slice %55 {offsets = [0, 128], sizes = [8, 128], strides = [1, 1]} : vector<8x512xf32> to vector<8x128xf32>
    %63 = arith.negf %62 : vector<8x128xf32>
    %64 = math.exp %63 : vector<8x128xf32>
    %cst_27 = arith.constant 1.000000e+00 : f32
    %65 = vector.broadcast %cst_27 : f32 to vector<8x128xf32>
    %66 = arith.addf %65, %64 : vector<8x128xf32>
    %67 = arith.divf %65, %66 : vector<8x128xf32>
    %68 = vector.extract_strided_slice %55 {offsets = [0, 256], sizes = [8, 128], strides = [1, 1]} : vector<8x512xf32> to vector<8x128xf32>
    %69 = math.tanh %68 : vector<8x128xf32>
    %70 = vector.extract_strided_slice %55 {offsets = [0, 384], sizes = [8, 128], strides = [1, 1]} : vector<8x512xf32> to vector<8x128xf32>
    %71 = arith.negf %70 : vector<8x128xf32>
    %72 = math.exp %71 : vector<8x128xf32>
    %cst_28 = arith.constant 1.000000e+00 : f32
    %73 = vector.broadcast %cst_28 : f32 to vector<8x128xf32>
    %74 = arith.addf %73, %72 : vector<8x128xf32>
    %75 = arith.divf %73, %74 : vector<8x128xf32>
    %76 = arith.mulf %67, %42 : vector<8x128xf32>
    %77 = arith.mulf %61, %69 : vector<8x128xf32>
    %78 = arith.addf %76, %77 : vector<8x128xf32>
    %79 = math.tanh %78 : vector<8x128xf32>
    %80 = arith.mulf %75, %79 : vector<8x128xf32>
    %81 = arith.truncf %80 : vector<8x128xf32> to vector<8x128xbf16>
    %82 = arith.index_cast %c1_i32 : i32 to index
    %c0_29 = arith.constant 0 : index
    %c0_30 = arith.constant 0 : index
    %83 = vector.load %arg7[%82, %c0_29, %c0_30] : memref<6x8x128xbf16, #tpu.memory_space<vmem>>, vector<1x8x128xbf16>
    %84 = vector.shape_cast %83 : vector<1x8x128xbf16> to vector<8x128xbf16>
    %85 = vector.shape_cast %81 : vector<8x128xbf16> to vector<1x8x128xbf16>
    tpu.vector_store %arg7[%82, %c0_29, %c0_30], %85 {strides = array<i32>} : memref<6x8x128xbf16, #tpu.memory_space<vmem>>, vector<1x8x128xbf16>,
    %c2_i32 = arith.constant 2 : i32
    %86 = arith.index_cast %c2_i32 : i32 to index
    %c0_31 = arith.constant 0 : index
    %c0_32 = arith.constant 0 : index
    %87 = vector.load %arg8[%86, %c0_31, %c0_32] : memref<6x8x512xf32, #tpu.memory_space<vmem>>, vector<1x8x512xf32>
    %88 = vector.shape_cast %87 : vector<1x8x512xf32> to vector<8x512xf32>
    %89 = arith.truncf %80 : vector<8x128xf32> to vector<8x128xbf16>
    %cst_33 = arith.constant dense<0.000000e+00> : vector<8x512xf32>
    %90 = tpu.matmul %89, %11, %cst_33 {dimension_numbers = #tpu.dot_dimension_numbers<[1], [0], [0], [1], [0, 0, 1, 1], [], []>} : vector<8x128xbf16>, vector<128x512xbf16>, vector<8x512xf32> -> vector<8x512xf32>
    %91 = arith.addf %88, %90 : vector<8x512xf32>
    %92 = vector.extract_strided_slice %91 {offsets = [0, 0], sizes = [8, 128], strides = [1, 1]} : vector<8x512xf32> to vector<8x128xf32>
    %93 = arith.negf %92 : vector<8x128xf32>
    %94 = math.exp %93 : vector<8x128xf32>
    %cst_34 = arith.constant 1.000000e+00 : f32
    %95 = vector.broadcast %cst_34 : f32 to vector<8x128xf32>
    %96 = arith.addf %95, %94 : vector<8x128xf32>
    %97 = arith.divf %95, %96 : vector<8x128xf32>
    %98 = vector.extract_strided_slice %91 {offsets = [0, 128], sizes = [8, 128], strides = [1, 1]} : vector<8x512xf32> to vector<8x128xf32>
    %99 = arith.negf %98 : vector<8x128xf32>
    %100 = math.exp %99 : vector<8x128xf32>
    %cst_35 = arith.constant 1.000000e+00 : f32
    %101 = vector.broadcast %cst_35 : f32 to vector<8x128xf32>
    %102 = arith.addf %101, %100 : vector<8x128xf32>
    %103 = arith.divf %101, %102 : vector<8x128xf32>
    %104 = vector.extract_strided_slice %91 {offsets = [0, 256], sizes = [8, 128], strides = [1, 1]} : vector<8x512xf32> to vector<8x128xf32>
    %105 = math.tanh %104 : vector<8x128xf32>
    %106 = vector.extract_strided_slice %91 {offsets = [0, 384], sizes = [8, 128], strides = [1, 1]} : vector<8x512xf32> to vector<8x128xf32>
    %107 = arith.negf %106 : vector<8x128xf32>
    %108 = math.exp %107 : vector<8x128xf32>
    %cst_36 = arith.constant 1.000000e+00 : f32
    %109 = vector.broadcast %cst_36 : f32 to vector<8x128xf32>
    %110 = arith.addf %109, %108 : vector<8x128xf32>
    %111 = arith.divf %109, %110 : vector<8x128xf32>
    %112 = arith.mulf %103, %78 : vector<8x128xf32>
    %113 = arith.mulf %97, %105 : vector<8x128xf32>
    %114 = arith.addf %112, %113 : vector<8x128xf32>
    %115 = math.tanh %114 : vector<8x128xf32>
    %116 = arith.mulf %111, %115 : vector<8x128xf32>
    %117 = arith.truncf %116 : vector<8x128xf32> to vector<8x128xbf16>
    %118 = arith.index_cast %c2_i32 : i32 to index
    %c0_37 = arith.constant 0 : index
    %c0_38 = arith.constant 0 : index
    %119 = vector.load %arg7[%118, %c0_37, %c0_38] : memref<6x8x128xbf16, #tpu.memory_space<vmem>>, vector<1x8x128xbf16>
    %120 = vector.shape_cast %119 : vector<1x8x128xbf16> to vector<8x128xbf16>
    %121 = vector.shape_cast %117 : vector<8x128xbf16> to vector<1x8x128xbf16>
    tpu.vector_store %arg7[%118, %c0_37, %c0_38], %121 {strides = array<i32>} : memref<6x8x128xbf16, #tpu.memory_space<vmem>>, vector<1x8x128xbf16>,
    %c3_i32 = arith.constant 3 : i32
    %122 = arith.index_cast %c3_i32 : i32 to index
    %c0_39 = arith.constant 0 : index
    %c0_40 = arith.constant 0 : index
    %123 = vector.load %arg8[%122, %c0_39, %c0_40] : memref<6x8x512xf32, #tpu.memory_space<vmem>>, vector<1x8x512xf32>
    %124 = vector.shape_cast %123 : vector<1x8x512xf32> to vector<8x512xf32>
    %125 = arith.truncf %116 : vector<8x128xf32> to vector<8x128xbf16>
    %cst_41 = arith.constant dense<0.000000e+00> : vector<8x512xf32>
    %126 = tpu.matmul %125, %11, %cst_41 {dimension_numbers = #tpu.dot_dimension_numbers<[1], [0], [0], [1], [0, 0, 1, 1], [], []>} : vector<8x128xbf16>, vector<128x512xbf16>, vector<8x512xf32> -> vector<8x512xf32>
    %127 = arith.addf %124, %126 : vector<8x512xf32>
    %128 = vector.extract_strided_slice %127 {offsets = [0, 0], sizes = [8, 128], strides = [1, 1]} : vector<8x512xf32> to vector<8x128xf32>
    %129 = arith.negf %128 : vector<8x128xf32>
    %130 = math.exp %129 : vector<8x128xf32>
    %cst_42 = arith.constant 1.000000e+00 : f32
    %131 = vector.broadcast %cst_42 : f32 to vector<8x128xf32>
    %132 = arith.addf %131, %130 : vector<8x128xf32>
    %133 = arith.divf %131, %132 : vector<8x128xf32>
    %134 = vector.extract_strided_slice %127 {offsets = [0, 128], sizes = [8, 128], strides = [1, 1]} : vector<8x512xf32> to vector<8x128xf32>
    %135 = arith.negf %134 : vector<8x128xf32>
    %136 = math.exp %135 : vector<8x128xf32>
    %cst_43 = arith.constant 1.000000e+00 : f32
    %137 = vector.broadcast %cst_43 : f32 to vector<8x128xf32>
    %138 = arith.addf %137, %136 : vector<8x128xf32>
    %139 = arith.divf %137, %138 : vector<8x128xf32>
    %140 = vector.extract_strided_slice %127 {offsets = [0, 256], sizes = [8, 128], strides = [1, 1]} : vector<8x512xf32> to vector<8x128xf32>
    %141 = math.tanh %140 : vector<8x128xf32>
    %142 = vector.extract_strided_slice %127 {offsets = [0, 384], sizes = [8, 128], strides = [1, 1]} : vector<8x512xf32> to vector<8x128xf32>
    %143 = arith.negf %142 : vector<8x128xf32>
    %144 = math.exp %143 : vector<8x128xf32>
    %cst_44 = arith.constant 1.000000e+00 : f32
    %145 = vector.broadcast %cst_44 : f32 to vector<8x128xf32>
    %146 = arith.addf %145, %144 : vector<8x128xf32>
    %147 = arith.divf %145, %146 : vector<8x128xf32>
    %148 = arith.mulf %139, %114 : vector<8x128xf32>
    %149 = arith.mulf %133, %141 : vector<8x128xf32>
    %150 = arith.addf %148, %149 : vector<8x128xf32>
    %151 = math.tanh %150 : vector<8x128xf32>
    %152 = arith.mulf %147, %151 : vector<8x128xf32>
    %153 = arith.truncf %152 : vector<8x128xf32> to vector<8x128xbf16>
    %154 = arith.index_cast %c3_i32 : i32 to index
    %c0_45 = arith.constant 0 : index
    %c0_46 = arith.constant 0 : index
    %155 = vector.load %arg7[%154, %c0_45, %c0_46] : memref<6x8x128xbf16, #tpu.memory_space<vmem>>, vector<1x8x128xbf16>
    %156 = vector.shape_cast %155 : vector<1x8x128xbf16> to vector<8x128xbf16>
    %157 = vector.shape_cast %153 : vector<8x128xbf16> to vector<1x8x128xbf16>
    tpu.vector_store %arg7[%154, %c0_45, %c0_46], %157 {strides = array<i32>} : memref<6x8x128xbf16, #tpu.memory_space<vmem>>, vector<1x8x128xbf16>,
    %c4_i32 = arith.constant 4 : i32
    %158 = arith.index_cast %c4_i32 : i32 to index
    %c0_47 = arith.constant 0 : index
    %c0_48 = arith.constant 0 : index
    %159 = vector.load %arg8[%158, %c0_47, %c0_48] : memref<6x8x512xf32, #tpu.memory_space<vmem>>, vector<1x8x512xf32>
    %160 = vector.shape_cast %159 : vector<1x8x512xf32> to vector<8x512xf32>
    %161 = arith.truncf %152 : vector<8x128xf32> to vector<8x128xbf16>
    %cst_49 = arith.constant dense<0.000000e+00> : vector<8x512xf32>
    %162 = tpu.matmul %161, %11, %cst_49 {dimension_numbers = #tpu.dot_dimension_numbers<[1], [0], [0], [1], [0, 0, 1, 1], [], []>} : vector<8x128xbf16>, vector<128x512xbf16>, vector<8x512xf32> -> vector<8x512xf32>
    %163 = arith.addf %160, %162 : vector<8x512xf32>
    %164 = vector.extract_strided_slice %163 {offsets = [0, 0], sizes = [8, 128], strides = [1, 1]} : vector<8x512xf32> to vector<8x128xf32>
    %165 = arith.negf %164 : vector<8x128xf32>
    %166 = math.exp %165 : vector<8x128xf32>
    %cst_50 = arith.constant 1.000000e+00 : f32
    %167 = vector.broadcast %cst_50 : f32 to vector<8x128xf32>
    %168 = arith.addf %167, %166 : vector<8x128xf32>
    %169 = arith.divf %167, %168 : vector<8x128xf32>
    %170 = vector.extract_strided_slice %163 {offsets = [0, 128], sizes = [8, 128], strides = [1, 1]} : vector<8x512xf32> to vector<8x128xf32>
    %171 = arith.negf %170 : vector<8x128xf32>
    %172 = math.exp %171 : vector<8x128xf32>
    %cst_51 = arith.constant 1.000000e+00 : f32
    %173 = vector.broadcast %cst_51 : f32 to vector<8x128xf32>
    %174 = arith.addf %173, %172 : vector<8x128xf32>
    %175 = arith.divf %173, %174 : vector<8x128xf32>
    %176 = vector.extract_strided_slice %163 {offsets = [0, 256], sizes = [8, 128], strides = [1, 1]} : vector<8x512xf32> to vector<8x128xf32>
    %177 = math.tanh %176 : vector<8x128xf32>
    %178 = vector.extract_strided_slice %163 {offsets = [0, 384], sizes = [8, 128], strides = [1, 1]} : vector<8x512xf32> to vector<8x128xf32>
    %179 = arith.negf %178 : vector<8x128xf32>
    %180 = math.exp %179 : vector<8x128xf32>
    %cst_52 = arith.constant 1.000000e+00 : f32
    %181 = vector.broadcast %cst_52 : f32 to vector<8x128xf32>
    %182 = arith.addf %181, %180 : vector<8x128xf32>
    %183 = arith.divf %181, %182 : vector<8x128xf32>
    %184 = arith.mulf %175, %150 : vector<8x128xf32>
    %185 = arith.mulf %169, %177 : vector<8x128xf32>
    %186 = arith.addf %184, %185 : vector<8x128xf32>
    %187 = math.tanh %186 : vector<8x128xf32>
    %188 = arith.mulf %183, %187 : vector<8x128xf32>
    %189 = arith.truncf %188 : vector<8x128xf32> to vector<8x128xbf16>
    %190 = arith.index_cast %c4_i32 : i32 to index
    %c0_53 = arith.constant 0 : index
    %c0_54 = arith.constant 0 : index
    %191 = vector.load %arg7[%190, %c0_53, %c0_54] : memref<6x8x128xbf16, #tpu.memory_space<vmem>>, vector<1x8x128xbf16>
    %192 = vector.shape_cast %191 : vector<1x8x128xbf16> to vector<8x128xbf16>
    %193 = vector.shape_cast %189 : vector<8x128xbf16> to vector<1x8x128xbf16>
    tpu.vector_store %arg7[%190, %c0_53, %c0_54], %193 {strides = array<i32>} : memref<6x8x128xbf16, #tpu.memory_space<vmem>>, vector<1x8x128xbf16>,
    %c5_i32 = arith.constant 5 : i32
    %194 = arith.index_cast %c5_i32 : i32 to index
    %c0_55 = arith.constant 0 : index
    %c0_56 = arith.constant 0 : index
    %195 = vector.load %arg8[%194, %c0_55, %c0_56] : memref<6x8x512xf32, #tpu.memory_space<vmem>>, vector<1x8x512xf32>
    %196 = vector.shape_cast %195 : vector<1x8x512xf32> to vector<8x512xf32>
    %197 = arith.truncf %188 : vector<8x128xf32> to vector<8x128xbf16>
    %cst_57 = arith.constant dense<0.000000e+00> : vector<8x512xf32>
    %198 = tpu.matmul %197, %11, %cst_57 {dimension_numbers = #tpu.dot_dimension_numbers<[1], [0], [0], [1], [0, 0, 1, 1], [], []>} : vector<8x128xbf16>, vector<128x512xbf16>, vector<8x512xf32> -> vector<8x512xf32>
    %199 = arith.addf %196, %198 : vector<8x512xf32>
    %200 = vector.extract_strided_slice %199 {offsets = [0, 0], sizes = [8, 128], strides = [1, 1]} : vector<8x512xf32> to vector<8x128xf32>
    %201 = arith.negf %200 : vector<8x128xf32>
    %202 = math.exp %201 : vector<8x128xf32>
    %cst_58 = arith.constant 1.000000e+00 : f32
    %203 = vector.broadcast %cst_58 : f32 to vector<8x128xf32>
    %204 = arith.addf %203, %202 : vector<8x128xf32>
    %205 = arith.divf %203, %204 : vector<8x128xf32>
    %206 = vector.extract_strided_slice %199 {offsets = [0, 128], sizes = [8, 128], strides = [1, 1]} : vector<8x512xf32> to vector<8x128xf32>
    %207 = arith.negf %206 : vector<8x128xf32>
    %208 = math.exp %207 : vector<8x128xf32>
    %cst_59 = arith.constant 1.000000e+00 : f32
    %209 = vector.broadcast %cst_59 : f32 to vector<8x128xf32>
    %210 = arith.addf %209, %208 : vector<8x128xf32>
    %211 = arith.divf %209, %210 : vector<8x128xf32>
    %212 = vector.extract_strided_slice %199 {offsets = [0, 256], sizes = [8, 128], strides = [1, 1]} : vector<8x512xf32> to vector<8x128xf32>
    %213 = math.tanh %212 : vector<8x128xf32>
    %214 = vector.extract_strided_slice %199 {offsets = [0, 384], sizes = [8, 128], strides = [1, 1]} : vector<8x512xf32> to vector<8x128xf32>
    %215 = arith.negf %214 : vector<8x128xf32>
    %216 = math.exp %215 : vector<8x128xf32>
    %cst_60 = arith.constant 1.000000e+00 : f32
    %217 = vector.broadcast %cst_60 : f32 to vector<8x128xf32>
    %218 = arith.addf %217, %216 : vector<8x128xf32>
    %219 = arith.divf %217, %218 : vector<8x128xf32>
    %220 = arith.mulf %211, %186 : vector<8x128xf32>
    %221 = arith.mulf %205, %213 : vector<8x128xf32>
    %222 = arith.addf %220, %221 : vector<8x128xf32>
    %223 = math.tanh %222 : vector<8x128xf32>
    %224 = arith.mulf %219, %223 : vector<8x128xf32>
    %225 = arith.truncf %224 : vector<8x128xf32> to vector<8x128xbf16>
    %226 = arith.index_cast %c5_i32 : i32 to index
    %c0_61 = arith.constant 0 : index
    %c0_62 = arith.constant 0 : index
    %227 = vector.load %arg7[%226, %c0_61, %c0_62] : memref<6x8x128xbf16, #tpu.memory_space<vmem>>, vector<1x8x128xbf16>
    %228 = vector.shape_cast %227 : vector<1x8x128xbf16> to vector<8x128xbf16>
    %229 = vector.shape_cast %225 : vector<8x128xbf16> to vector<1x8x128xbf16>
    tpu.vector_store %arg7[%226, %c0_61, %c0_62], %229 {strides = array<i32>} : memref<6x8x128xbf16, #tpu.memory_space<vmem>>, vector<1x8x128xbf16>,
    %c6_i32 = arith.constant 6 : i32
    %c0_63 = arith.constant 0 : index
    %c0_64 = arith.constant 0 : index
    %c0_65 = arith.constant 0 : index
    %230 = vector.load %arg7[%c0_63, %c0_64, %c0_65] : memref<6x8x128xbf16, #tpu.memory_space<vmem>>, vector<6x8x128xbf16>
    %231 = vector.shape_cast %230 : vector<6x8x128xbf16> to vector<48x128xbf16>
    %c0_66 = arith.constant 0 : index
    %c0_67 = arith.constant 0 : index
    %c0_68 = arith.constant 0 : index
    %232 = vector.load %arg3[%c0_66, %c0_67, %c0_68] : memref<1x128x512xbf16, #tpu.memory_space<vmem>>, vector<1x128x512xbf16>
    %233 = vector.shape_cast %232 : vector<1x128x512xbf16> to vector<128x512xbf16>
    %cst_69 = arith.constant dense<0.000000e+00> : vector<48x512xf32>
    %234 = tpu.matmul %231, %233, %cst_69 {dimension_numbers = #tpu.dot_dimension_numbers<[1], [0], [0], [1], [0, 0, 1, 1], [], []>} : vector<48x128xbf16>, vector<128x512xbf16>, vector<48x512xf32> -> vector<48x512xf32>
    %c1 = arith.constant 1 : index
    %c0_70 = arith.constant 0 : index
    %c0_71 = arith.constant 0 : index
    %235 = vector.load %arg5[%c1, %c0_70, %c0_71] : memref<2x1x512xf32, #tpu.memory_space<vmem>>, vector<1x1x512xf32>
    %236 = vector.shape_cast %235 : vector<1x1x512xf32> to vector<1x512xf32>
    %237 = vector.broadcast %236 : vector<1x512xf32> to vector<48x512xf32>
    %238 = arith.addf %234, %237 : vector<48x512xf32>
    %239 = vector.shape_cast %238 : vector<48x512xf32> to vector<6x8x512xf32>
    %c0_72 = arith.constant 0 : index
    %c0_73 = arith.constant 0 : index
    %c0_74 = arith.constant 0 : index
    %240 = vector.load %arg8[%c0_72, %c0_73, %c0_74] : memref<6x8x512xf32, #tpu.memory_space<vmem>>, vector<6x8x512xf32>
    tpu.vector_store %arg8[%c0_72, %c0_73, %c0_74], %239 {strides = array<i32>} : memref<6x8x512xf32, #tpu.memory_space<vmem>>, vector<6x8x512xf32>,
    %c1_75 = arith.constant 1 : index
    %c0_76 = arith.constant 0 : index
    %c0_77 = arith.constant 0 : index
    %241 = vector.load %arg4[%c1_75, %c0_76, %c0_77] : memref<2x128x512xbf16, #tpu.memory_space<vmem>>, vector<1x128x512xbf16>
    %242 = vector.shape_cast %241 : vector<1x128x512xbf16> to vector<128x512xbf16>
    %cst_78 = arith.constant 0.000000e+00 : f32
    %243 = vector.broadcast %cst_78 : f32 to vector<8x128xf32>
    %cst_79 = arith.constant 0.000000e+00 : f32
    %244 = vector.broadcast %cst_79 : f32 to vector<8x128xf32>
    %c0_i32_80 = arith.constant 0 : i32
    %245 = arith.index_cast %c0_i32_80 : i32 to index
    %c0_81 = arith.constant 0 : index
    %c0_82 = arith.constant 0 : index
    %246 = vector.load %arg8[%245, %c0_81, %c0_82] : memref<6x8x512xf32, #tpu.memory_space<vmem>>, vector<1x8x512xf32>
    %247 = vector.shape_cast %246 : vector<1x8x512xf32> to vector<8x512xf32>
    %248 = arith.truncf %243 : vector<8x128xf32> to vector<8x128xbf16>
    %cst_83 = arith.constant dense<0.000000e+00> : vector<8x512xf32>
    %249 = tpu.matmul %248, %242, %cst_83 {dimension_numbers = #tpu.dot_dimension_numbers<[1], [0], [0], [1], [0, 0, 1, 1], [], []>} : vector<8x128xbf16>, vector<128x512xbf16>, vector<8x512xf32> -> vector<8x512xf32>
    %250 = arith.addf %247, %249 : vector<8x512xf32>
    %251 = vector.extract_strided_slice %250 {offsets = [0, 0], sizes = [8, 128], strides = [1, 1]} : vector<8x512xf32> to vector<8x128xf32>
    %252 = arith.negf %251 : vector<8x128xf32>
    %253 = math.exp %252 : vector<8x128xf32>
    %cst_84 = arith.constant 1.000000e+00 : f32
    %254 = vector.broadcast %cst_84 : f32 to vector<8x128xf32>
    %255 = arith.addf %254, %253 : vector<8x128xf32>
    %256 = arith.divf %254, %255 : vector<8x128xf32>
    %257 = vector.extract_strided_slice %250 {offsets = [0, 128], sizes = [8, 128], strides = [1, 1]} : vector<8x512xf32> to vector<8x128xf32>
    %258 = arith.negf %257 : vector<8x128xf32>
    %259 = math.exp %258 : vector<8x128xf32>
    %cst_85 = arith.constant 1.000000e+00 : f32
    %260 = vector.broadcast %cst_85 : f32 to vector<8x128xf32>
    %261 = arith.addf %260, %259 : vector<8x128xf32>
    %262 = arith.divf %260, %261 : vector<8x128xf32>
    %263 = vector.extract_strided_slice %250 {offsets = [0, 256], sizes = [8, 128], strides = [1, 1]} : vector<8x512xf32> to vector<8x128xf32>
    %264 = math.tanh %263 : vector<8x128xf32>
    %265 = vector.extract_strided_slice %250 {offsets = [0, 384], sizes = [8, 128], strides = [1, 1]} : vector<8x512xf32> to vector<8x128xf32>
    %266 = arith.negf %265 : vector<8x128xf32>
    %267 = math.exp %266 : vector<8x128xf32>
    %cst_86 = arith.constant 1.000000e+00 : f32
    %268 = vector.broadcast %cst_86 : f32 to vector<8x128xf32>
    %269 = arith.addf %268, %267 : vector<8x128xf32>
    %270 = arith.divf %268, %269 : vector<8x128xf32>
    %271 = arith.mulf %262, %244 : vector<8x128xf32>
    %272 = arith.mulf %256, %264 : vector<8x128xf32>
    %273 = arith.addf %271, %272 : vector<8x128xf32>
    %274 = math.tanh %273 : vector<8x128xf32>
    %275 = arith.mulf %270, %274 : vector<8x128xf32>
    %c1_i32_87 = arith.constant 1 : i32
    %276 = arith.index_cast %c1_i32_87 : i32 to index
    %c0_88 = arith.constant 0 : index
    %c0_89 = arith.constant 0 : index
    %277 = vector.load %arg8[%276, %c0_88, %c0_89] : memref<6x8x512xf32, #tpu.memory_space<vmem>>, vector<1x8x512xf32>
    %278 = vector.shape_cast %277 : vector<1x8x512xf32> to vector<8x512xf32>
    %279 = arith.truncf %275 : vector<8x128xf32> to vector<8x128xbf16>
    %cst_90 = arith.constant dense<0.000000e+00> : vector<8x512xf32>
    %280 = tpu.matmul %279, %242, %cst_90 {dimension_numbers = #tpu.dot_dimension_numbers<[1], [0], [0], [1], [0, 0, 1, 1], [], []>} : vector<8x128xbf16>, vector<128x512xbf16>, vector<8x512xf32> -> vector<8x512xf32>
    %281 = arith.addf %278, %280 : vector<8x512xf32>
    %282 = vector.extract_strided_slice %281 {offsets = [0, 0], sizes = [8, 128], strides = [1, 1]} : vector<8x512xf32> to vector<8x128xf32>
    %283 = arith.negf %282 : vector<8x128xf32>
    %284 = math.exp %283 : vector<8x128xf32>
    %cst_91 = arith.constant 1.000000e+00 : f32
    %285 = vector.broadcast %cst_91 : f32 to vector<8x128xf32>
    %286 = arith.addf %285, %284 : vector<8x128xf32>
    %287 = arith.divf %285, %286 : vector<8x128xf32>
    %288 = vector.extract_strided_slice %281 {offsets = [0, 128], sizes = [8, 128], strides = [1, 1]} : vector<8x512xf32> to vector<8x128xf32>
    %289 = arith.negf %288 : vector<8x128xf32>
    %290 = math.exp %289 : vector<8x128xf32>
    %cst_92 = arith.constant 1.000000e+00 : f32
    %291 = vector.broadcast %cst_92 : f32 to vector<8x128xf32>
    %292 = arith.addf %291, %290 : vector<8x128xf32>
    %293 = arith.divf %291, %292 : vector<8x128xf32>
    %294 = vector.extract_strided_slice %281 {offsets = [0, 256], sizes = [8, 128], strides = [1, 1]} : vector<8x512xf32> to vector<8x128xf32>
    %295 = math.tanh %294 : vector<8x128xf32>
    %296 = vector.extract_strided_slice %281 {offsets = [0, 384], sizes = [8, 128], strides = [1, 1]} : vector<8x512xf32> to vector<8x128xf32>
    %297 = arith.negf %296 : vector<8x128xf32>
    %298 = math.exp %297 : vector<8x128xf32>
    %cst_93 = arith.constant 1.000000e+00 : f32
    %299 = vector.broadcast %cst_93 : f32 to vector<8x128xf32>
    %300 = arith.addf %299, %298 : vector<8x128xf32>
    %301 = arith.divf %299, %300 : vector<8x128xf32>
    %302 = arith.mulf %293, %273 : vector<8x128xf32>
    %303 = arith.mulf %287, %295 : vector<8x128xf32>
    %304 = arith.addf %302, %303 : vector<8x128xf32>
    %305 = math.tanh %304 : vector<8x128xf32>
    %306 = arith.mulf %301, %305 : vector<8x128xf32>
    %c2_i32_94 = arith.constant 2 : i32
    %307 = arith.index_cast %c2_i32_94 : i32 to index
    %c0_95 = arith.constant 0 : index
    %c0_96 = arith.constant 0 : index
    %308 = vector.load %arg8[%307, %c0_95, %c0_96] : memref<6x8x512xf32, #tpu.memory_space<vmem>>, vector<1x8x512xf32>
    %309 = vector.shape_cast %308 : vector<1x8x512xf32> to vector<8x512xf32>
    %310 = arith.truncf %306 : vector<8x128xf32> to vector<8x128xbf16>
    %cst_97 = arith.constant dense<0.000000e+00> : vector<8x512xf32>
    %311 = tpu.matmul %310, %242, %cst_97 {dimension_numbers = #tpu.dot_dimension_numbers<[1], [0], [0], [1], [0, 0, 1, 1], [], []>} : vector<8x128xbf16>, vector<128x512xbf16>, vector<8x512xf32> -> vector<8x512xf32>
    %312 = arith.addf %309, %311 : vector<8x512xf32>
    %313 = vector.extract_strided_slice %312 {offsets = [0, 0], sizes = [8, 128], strides = [1, 1]} : vector<8x512xf32> to vector<8x128xf32>
    %314 = arith.negf %313 : vector<8x128xf32>
    %315 = math.exp %314 : vector<8x128xf32>
    %cst_98 = arith.constant 1.000000e+00 : f32
    %316 = vector.broadcast %cst_98 : f32 to vector<8x128xf32>
    %317 = arith.addf %316, %315 : vector<8x128xf32>
    %318 = arith.divf %316, %317 : vector<8x128xf32>
    %319 = vector.extract_strided_slice %312 {offsets = [0, 128], sizes = [8, 128], strides = [1, 1]} : vector<8x512xf32> to vector<8x128xf32>
    %320 = arith.negf %319 : vector<8x128xf32>
    %321 = math.exp %320 : vector<8x128xf32>
    %cst_99 = arith.constant 1.000000e+00 : f32
    %322 = vector.broadcast %cst_99 : f32 to vector<8x128xf32>
    %323 = arith.addf %322, %321 : vector<8x128xf32>
    %324 = arith.divf %322, %323 : vector<8x128xf32>
    %325 = vector.extract_strided_slice %312 {offsets = [0, 256], sizes = [8, 128], strides = [1, 1]} : vector<8x512xf32> to vector<8x128xf32>
    %326 = math.tanh %325 : vector<8x128xf32>
    %327 = vector.extract_strided_slice %312 {offsets = [0, 384], sizes = [8, 128], strides = [1, 1]} : vector<8x512xf32> to vector<8x128xf32>
    %328 = arith.negf %327 : vector<8x128xf32>
    %329 = math.exp %328 : vector<8x128xf32>
    %cst_100 = arith.constant 1.000000e+00 : f32
    %330 = vector.broadcast %cst_100 : f32 to vector<8x128xf32>
    %331 = arith.addf %330, %329 : vector<8x128xf32>
    %332 = arith.divf %330, %331 : vector<8x128xf32>
    %333 = arith.mulf %324, %304 : vector<8x128xf32>
    %334 = arith.mulf %318, %326 : vector<8x128xf32>
    %335 = arith.addf %333, %334 : vector<8x128xf32>
    %336 = math.tanh %335 : vector<8x128xf32>
    %337 = arith.mulf %332, %336 : vector<8x128xf32>
    %c3_i32_101 = arith.constant 3 : i32
    %338 = arith.index_cast %c3_i32_101 : i32 to index
    %c0_102 = arith.constant 0 : index
    %c0_103 = arith.constant 0 : index
    %339 = vector.load %arg8[%338, %c0_102, %c0_103] : memref<6x8x512xf32, #tpu.memory_space<vmem>>, vector<1x8x512xf32>
    %340 = vector.shape_cast %339 : vector<1x8x512xf32> to vector<8x512xf32>
    %341 = arith.truncf %337 : vector<8x128xf32> to vector<8x128xbf16>
    %cst_104 = arith.constant dense<0.000000e+00> : vector<8x512xf32>
    %342 = tpu.matmul %341, %242, %cst_104 {dimension_numbers = #tpu.dot_dimension_numbers<[1], [0], [0], [1], [0, 0, 1, 1], [], []>} : vector<8x128xbf16>, vector<128x512xbf16>, vector<8x512xf32> -> vector<8x512xf32>
    %343 = arith.addf %340, %342 : vector<8x512xf32>
    %344 = vector.extract_strided_slice %343 {offsets = [0, 0], sizes = [8, 128], strides = [1, 1]} : vector<8x512xf32> to vector<8x128xf32>
    %345 = arith.negf %344 : vector<8x128xf32>
    %346 = math.exp %345 : vector<8x128xf32>
    %cst_105 = arith.constant 1.000000e+00 : f32
    %347 = vector.broadcast %cst_105 : f32 to vector<8x128xf32>
    %348 = arith.addf %347, %346 : vector<8x128xf32>
    %349 = arith.divf %347, %348 : vector<8x128xf32>
    %350 = vector.extract_strided_slice %343 {offsets = [0, 128], sizes = [8, 128], strides = [1, 1]} : vector<8x512xf32> to vector<8x128xf32>
    %351 = arith.negf %350 : vector<8x128xf32>
    %352 = math.exp %351 : vector<8x128xf32>
    %cst_106 = arith.constant 1.000000e+00 : f32
    %353 = vector.broadcast %cst_106 : f32 to vector<8x128xf32>
    %354 = arith.addf %353, %352 : vector<8x128xf32>
    %355 = arith.divf %353, %354 : vector<8x128xf32>
    %356 = vector.extract_strided_slice %343 {offsets = [0, 256], sizes = [8, 128], strides = [1, 1]} : vector<8x512xf32> to vector<8x128xf32>
    %357 = math.tanh %356 : vector<8x128xf32>
    %358 = vector.extract_strided_slice %343 {offsets = [0, 384], sizes = [8, 128], strides = [1, 1]} : vector<8x512xf32> to vector<8x128xf32>
    %359 = arith.negf %358 : vector<8x128xf32>
    %360 = math.exp %359 : vector<8x128xf32>
    %cst_107 = arith.constant 1.000000e+00 : f32
    %361 = vector.broadcast %cst_107 : f32 to vector<8x128xf32>
    %362 = arith.addf %361, %360 : vector<8x128xf32>
    %363 = arith.divf %361, %362 : vector<8x128xf32>
    %364 = arith.mulf %355, %335 : vector<8x128xf32>
    %365 = arith.mulf %349, %357 : vector<8x128xf32>
    %366 = arith.addf %364, %365 : vector<8x128xf32>
    %367 = math.tanh %366 : vector<8x128xf32>
    %368 = arith.mulf %363, %367 : vector<8x128xf32>
    %c4_i32_108 = arith.constant 4 : i32
    %369 = arith.index_cast %c4_i32_108 : i32 to index
    %c0_109 = arith.constant 0 : index
    %c0_110 = arith.constant 0 : index
    %370 = vector.load %arg8[%369, %c0_109, %c0_110] : memref<6x8x512xf32, #tpu.memory_space<vmem>>, vector<1x8x512xf32>
    %371 = vector.shape_cast %370 : vector<1x8x512xf32> to vector<8x512xf32>
    %372 = arith.truncf %368 : vector<8x128xf32> to vector<8x128xbf16>
    %cst_111 = arith.constant dense<0.000000e+00> : vector<8x512xf32>
    %373 = tpu.matmul %372, %242, %cst_111 {dimension_numbers = #tpu.dot_dimension_numbers<[1], [0], [0], [1], [0, 0, 1, 1], [], []>} : vector<8x128xbf16>, vector<128x512xbf16>, vector<8x512xf32> -> vector<8x512xf32>
    %374 = arith.addf %371, %373 : vector<8x512xf32>
    %375 = vector.extract_strided_slice %374 {offsets = [0, 0], sizes = [8, 128], strides = [1, 1]} : vector<8x512xf32> to vector<8x128xf32>
    %376 = arith.negf %375 : vector<8x128xf32>
    %377 = math.exp %376 : vector<8x128xf32>
    %cst_112 = arith.constant 1.000000e+00 : f32
    %378 = vector.broadcast %cst_112 : f32 to vector<8x128xf32>
    %379 = arith.addf %378, %377 : vector<8x128xf32>
    %380 = arith.divf %378, %379 : vector<8x128xf32>
    %381 = vector.extract_strided_slice %374 {offsets = [0, 128], sizes = [8, 128], strides = [1, 1]} : vector<8x512xf32> to vector<8x128xf32>
    %382 = arith.negf %381 : vector<8x128xf32>
    %383 = math.exp %382 : vector<8x128xf32>
    %cst_113 = arith.constant 1.000000e+00 : f32
    %384 = vector.broadcast %cst_113 : f32 to vector<8x128xf32>
    %385 = arith.addf %384, %383 : vector<8x128xf32>
    %386 = arith.divf %384, %385 : vector<8x128xf32>
    %387 = vector.extract_strided_slice %374 {offsets = [0, 256], sizes = [8, 128], strides = [1, 1]} : vector<8x512xf32> to vector<8x128xf32>
    %388 = math.tanh %387 : vector<8x128xf32>
    %389 = vector.extract_strided_slice %374 {offsets = [0, 384], sizes = [8, 128], strides = [1, 1]} : vector<8x512xf32> to vector<8x128xf32>
    %390 = arith.negf %389 : vector<8x128xf32>
    %391 = math.exp %390 : vector<8x128xf32>
    %cst_114 = arith.constant 1.000000e+00 : f32
    %392 = vector.broadcast %cst_114 : f32 to vector<8x128xf32>
    %393 = arith.addf %392, %391 : vector<8x128xf32>
    %394 = arith.divf %392, %393 : vector<8x128xf32>
    %395 = arith.mulf %386, %366 : vector<8x128xf32>
    %396 = arith.mulf %380, %388 : vector<8x128xf32>
    %397 = arith.addf %395, %396 : vector<8x128xf32>
    %398 = math.tanh %397 : vector<8x128xf32>
    %399 = arith.mulf %394, %398 : vector<8x128xf32>
    %c5_i32_115 = arith.constant 5 : i32
    %400 = arith.index_cast %c5_i32_115 : i32 to index
    %c0_116 = arith.constant 0 : index
    %c0_117 = arith.constant 0 : index
    %401 = vector.load %arg8[%400, %c0_116, %c0_117] : memref<6x8x512xf32, #tpu.memory_space<vmem>>, vector<1x8x512xf32>
    %402 = vector.shape_cast %401 : vector<1x8x512xf32> to vector<8x512xf32>
    %403 = arith.truncf %399 : vector<8x128xf32> to vector<8x128xbf16>
    %cst_118 = arith.constant dense<0.000000e+00> : vector<8x512xf32>
    %404 = tpu.matmul %403, %242, %cst_118 {dimension_numbers = #tpu.dot_dimension_numbers<[1], [0], [0], [1], [0, 0, 1, 1], [], []>} : vector<8x128xbf16>, vector<128x512xbf16>, vector<8x512xf32> -> vector<8x512xf32>
    %405 = arith.addf %402, %404 : vector<8x512xf32>
    %406 = vector.extract_strided_slice %405 {offsets = [0, 0], sizes = [8, 128], strides = [1, 1]} : vector<8x512xf32> to vector<8x128xf32>
    %407 = arith.negf %406 : vector<8x128xf32>
    %408 = math.exp %407 : vector<8x128xf32>
    %cst_119 = arith.constant 1.000000e+00 : f32
    %409 = vector.broadcast %cst_119 : f32 to vector<8x128xf32>
    %410 = arith.addf %409, %408 : vector<8x128xf32>
    %411 = arith.divf %409, %410 : vector<8x128xf32>
    %412 = vector.extract_strided_slice %405 {offsets = [0, 128], sizes = [8, 128], strides = [1, 1]} : vector<8x512xf32> to vector<8x128xf32>
    %413 = arith.negf %412 : vector<8x128xf32>
    %414 = math.exp %413 : vector<8x128xf32>
    %cst_120 = arith.constant 1.000000e+00 : f32
    %415 = vector.broadcast %cst_120 : f32 to vector<8x128xf32>
    %416 = arith.addf %415, %414 : vector<8x128xf32>
    %417 = arith.divf %415, %416 : vector<8x128xf32>
    %418 = vector.extract_strided_slice %405 {offsets = [0, 256], sizes = [8, 128], strides = [1, 1]} : vector<8x512xf32> to vector<8x128xf32>
    %419 = math.tanh %418 : vector<8x128xf32>
    %420 = vector.extract_strided_slice %405 {offsets = [0, 384], sizes = [8, 128], strides = [1, 1]} : vector<8x512xf32> to vector<8x128xf32>
    %421 = arith.negf %420 : vector<8x128xf32>
    %422 = math.exp %421 : vector<8x128xf32>
    %cst_121 = arith.constant 1.000000e+00 : f32
    %423 = vector.broadcast %cst_121 : f32 to vector<8x128xf32>
    %424 = arith.addf %423, %422 : vector<8x128xf32>
    %425 = arith.divf %423, %424 : vector<8x128xf32>
    %426 = arith.mulf %417, %397 : vector<8x128xf32>
    %427 = arith.mulf %411, %419 : vector<8x128xf32>
    %428 = arith.addf %426, %427 : vector<8x128xf32>
    %429 = math.tanh %428 : vector<8x128xf32>
    %430 = arith.mulf %425, %429 : vector<8x128xf32>
    %c6_i32_122 = arith.constant 6 : i32
    %c0_123 = arith.constant 0 : index
    %c0_124 = arith.constant 0 : index
    %431 = vector.load %arg6[%c0_123, %c0_124] : memref<8x128xf32, #tpu.memory_space<vmem>>, vector<8x128xf32>
    tpu.vector_store %arg6[%c0_123, %c0_124], %430 {strides = array<i32>} : memref<8x128xf32, #tpu.memory_space<vmem>>, vector<8x128xf32>,
    return
  }
  func.func @transform_0(%arg0: i32) -> (i32, i32, i32) {
    %c0_i32 = arith.constant 0 : i32
    %c0_i32_0 = arith.constant 0 : i32
    %c0_i32_1 = arith.constant 0 : i32
    return %c0_i32, %arg0, %c0_i32_0 : i32, i32, i32
  }
  func.func @transform_1(%arg0: i32) -> (i32, i32) {
    %c0_i32 = arith.constant 0 : i32
    %c0_i32_0 = arith.constant 0 : i32
    %c0_i32_1 = arith.constant 0 : i32
    return %c0_i32, %c0_i32_0 : i32, i32
  }
  func.func @transform_2(%arg0: i32) -> (i32, i32, i32) {
    %c0_i32 = arith.constant 0 : i32
    %c0_i32_0 = arith.constant 0 : i32
    %c0_i32_1 = arith.constant 0 : i32
    %c0_i32_2 = arith.constant 0 : i32
    return %c0_i32, %c0_i32_0, %c0_i32_1 : i32, i32, i32
  }
  func.func @transform_3(%arg0: i32) -> (i32, i32, i32) {
    %c0_i32 = arith.constant 0 : i32
    %c0_i32_0 = arith.constant 0 : i32
    %c0_i32_1 = arith.constant 0 : i32
    %c0_i32_2 = arith.constant 0 : i32
    return %c0_i32, %c0_i32_0, %c0_i32_1 : i32, i32, i32
  }
  func.func @transform_4(%arg0: i32) -> (i32, i32, i32) {
    %c0_i32 = arith.constant 0 : i32
    %c0_i32_0 = arith.constant 0 : i32
    %c0_i32_1 = arith.constant 0 : i32
    %c0_i32_2 = arith.constant 0 : i32
    return %c0_i32, %c0_i32_0, %c0_i32_1 : i32, i32, i32
  }
  func.func @transform_5(%arg0: i32) -> (i32, i32) {
    %c0_i32 = arith.constant 0 : i32
    %c0_i32_0 = arith.constant 0 : i32
    return %arg0, %c0_i32 : i32, i32
  }
}

</mosaic_0001>

<llo_original>
// kernel: tpu_custom_call.1
$region0: #{tpu_custom_call.1}
  #allocation0 [shape = 'u32[]', space=smem, size = 0x4, offset = 0x4, fixed_abs, tag = 'smem constant byte address 0x4 - core index']
  #allocation1 [shape = 'u32[72,128]{1,0:T(1,128)}', space=vmem, size = 0x9000, scoped, tag = 'internal scratch']
  #allocation2 [shape = 'bf16[6,8,128]{2,1,0:T(8,128)(2,1)}', space=vmem, size = 0x3000, scoped, tag = 'scratch operand']
  #allocation3 [shape = 'f32[6,8,512]{2,1,0:T(8,128)}', space=vmem, size = 0x18000, scoped, tag = 'scratch operand']
  %s0 = inlined_call_operand.vmem [shape: bf16[6,16,8], index: 0, kind: input, shape index: {}]
  %s1 = inlined_call_operand.vmem [shape: bf16[8,512], index: 1, kind: input, shape index: {}]
  %s2 = inlined_call_operand.hbm [shape: bf16[1,128,512], index: 2, kind: input, shape index: {}]
  %s3 = inlined_call_operand.hbm [shape: bf16[2,128,512], index: 3, kind: input, shape index: {}]
  %s4 = inlined_call_operand.vmem [shape: f32[2,1,512], index: 4, kind: input, shape index: {}]
  %s5 = inlined_call_operand.hbm [shape: f32[16,128], index: 5, kind: output, shape index: {}]
  %s6 = sld [smem:[#allocation0]]
  $region102: #{tpu_custom_call.1} parent=0
    _
  %s8 = ssub.s32 1, %s6
  %s9 = scalar_select 0, %s8, %s6
  $region1: #{tpu_custom_call.1} parent=0
    #allocation4 [shape = 'u8[24576]{0}', space=vmem, size = 0x6000, scoped, tag = 'input window, operand 0']
    #allocation5 [shape = 'u8[131072]{0}', space=vmem, size = 0x20000, scoped, tag = 'input window, operand 2, single buffered']
    #allocation6 [shape = 's32[2]{0}', space=sflag, size = 0x8, scoped, tag = 'scoped memory for tpu_custom_call.1']
    #allocation7 [shape = 's32[2]{0}', space=sflag, size = 0x8, scoped, tag = 'scoped memory for tpu_custom_call.1']
    #allocation8 [shape = 'u8[262144]{0}', space=vmem, size = 0x40000, scoped, tag = 'input window, operand 3, single buffered']
    #allocation9 [shape = 's32[1]{0}', space=sflag, size = 0x4, scoped, tag = 'scoped memory for tpu_custom_call.1']
    #allocation10 [shape = 'u8[8192]{0}', space=vmem, size = 0x2000, scoped, tag = 'output window, operand 0']
    %10 = vsyncpa [#allocation6], 0
    %11 = vsyncpa [#allocation9], 0
    %12 = vsyncpa [#allocation7], 0
    %s13 = scalar_lea.sflag [#allocation7], 1
    %14 = vsyncpa %s13, 0
    loop: start=0, step=1, limit=4
    $region2: #{tpu_custom_call.1} parent=1 // loop_pre_header
      _
    $region3: #{tpu_custom_call.1} parent=1 // loop_header
      %s16 = sphi 0, %s20
      %p17 = scmp.ge.s32.totalorder %s16, 4
      %s26 = sphi 0, %s28
      %s29 = sphi 0, %s26
      %s30 = sphi 0, %s29
      %s46 = sphi 0, %s30
      %s50 = sphi 0, %s50
      %s52 = sphi 0, %s50
      %s53 = sphi 0, %s52
      %s67 = sphi 0, %s53
      %s71 = sphi 0, %s71
      %s73 = sphi 0, %s71
      %s74 = sphi 0, %s73
      %s88 = sphi 0, %s74
      %s92 = sphi 0, %s92
      %s94 = sphi 0, %s92
      %s95 = sphi 0, %s94
      %s109 = sphi 0, %s95
      %s113 = sphi 0, %s113
      %s115 = sphi 0, %s113
      %s116 = sphi 0, %s115
      %s130 = sphi 0, %s116
      %s136 = sphi 0, %s138
      %s139 = sphi 0, %s136
      %s140 = sphi 0, %s139
      %s156 = sphi 0, %s140
    $region4: #{tpu_custom_call.1} parent=1 // loop_header_branch
      %19 = sbr.rel (%p17) target = $region8
    $region5: #{tpu_custom_call.1} parent=1 // loop_body
      %s21 = ssub.s32 %s16, 1
      %s22 = ssub.s32 %s16, 2
      %s23 = sadd.s32 %s16, 1
      %s24 = ssub.s32 %s16, %s23
      %p25 = scmp.eq.s32.totalorder %s24, 0
      %s27 = sadd.s32 %s26, 1
      %s28 = scalar_select %p25, %s26, %s27
      %p31 = pneg %p25
      %p32 = scmp.eq.s32.totalorder %s16, 1
      %p33 = por %p31, %p32
      %p34 = scmp.ne.s32.totalorder %s26, %s29
      %p35 = scmp.eq.s32.totalorder %s16, 0
      %p36 = por %p34, %p35
      %p37 = scmp.ne.s32.totalorder %s26, %s29
      %p38 = scmp.eq.s32.totalorder %s21, 1
      %p39 = por %p37, %p38
      %p40 = scmp.ne.s32.totalorder %s29, %s30
      %p41 = scmp.eq.s32.totalorder %s21, 0
      %p42 = por %p40, %p41
      %p43 = scmp.ne.s32.totalorder %s29, %s30
      %p44 = scmp.eq.s32.totalorder %s22, 1
      %p45 = por %p43, %p44
      %p47 = scmp.ne.s32.totalorder %s30, %s46
      %p48 = scmp.eq.s32.totalorder %s22, 0
      %p49 = por %p47, %p48
      %s51 = sadd.s32 %s50, 1
      %p54 = scmp.eq.s32.totalorder %s16, 1
      %p55 = scmp.ne.s32.totalorder %s50, %s52
      %p56 = scmp.eq.s32.totalorder %s16, 0
      %p57 = por %p55, %p56
      %p58 = scmp.ne.s32.totalorder %s50, %s52
      %p59 = scmp.eq.s32.totalorder %s21, 1
      %p60 = por %p58, %p59
      %p61 = scmp.ne.s32.totalorder %s52, %s53
      %p62 = scmp.eq.s32.totalorder %s21, 0
      %p63 = por %p61, %p62
      %p64 = scmp.ne.s32.totalorder %s52, %s53
      %p65 = scmp.eq.s32.totalorder %s22, 1
      %p66 = por %p64, %p65
      %p68 = scmp.ne.s32.totalorder %s53, %s67
      %p69 = scmp.eq.s32.totalorder %s22, 0
      %p70 = por %p68, %p69
      %s72 = sadd.s32 %s71, 1
      %p75 = scmp.eq.s32.totalorder %s16, 1
      %p76 = scmp.ne.s32.totalorder %s71, %s73
      %p77 = scmp.eq.s32.totalorder %s16, 0
      %p78 = por %p76, %p77
      %p79 = scmp.ne.s32.totalorder %s71, %s73
      %p80 = scmp.eq.s32.totalorder %s21, 1
      %p81 = por %p79, %p80
      %p82 = scmp.ne.s32.totalorder %s73, %s74
      %p83 = scmp.eq.s32.totalorder %s21, 0
      %p84 = por %p82, %p83
      %p85 = scmp.ne.s32.totalorder %s73, %s74
      %p86 = scmp.eq.s32.totalorder %s22, 1
      %p87 = por %p85, %p86
      %p89 = scmp.ne.s32.totalorder %s74, %s88
      %p90 = scmp.eq.s32.totalorder %s22, 0
      %p91 = por %p89, %p90
      %s93 = sadd.s32 %s92, 1
      %p96 = scmp.eq.s32.totalorder %s16, 1
      %p97 = scmp.ne.s32.totalorder %s92, %s94
      %p98 = scmp.eq.s32.totalorder %s16, 0
      %p99 = por %p97, %p98
      %p100 = scmp.ne.s32.totalorder %s92, %s94
      %p101 = scmp.eq.s32.totalorder %s21, 1
      %p102 = por %p100, %p101
      %p103 = scmp.ne.s32.totalorder %s94, %s95
      %p104 = scmp.eq.s32.totalorder %s21, 0
      %p105 = por %p103, %p104
      %p106 = scmp.ne.s32.totalorder %s94, %s95
      %p107 = scmp.eq.s32.totalorder %s22, 1
      %p108 = por %p106, %p107
      %p110 = scmp.ne.s32.totalorder %s95, %s109
      %p111 = scmp.eq.s32.totalorder %s22, 0
      %p112 = por %p110, %p111
      %s114 = sadd.s32 %s113, 1
      %p117 = scmp.eq.s32.totalorder %s16, 1
      %p118 = scmp.ne.s32.totalorder %s113, %s115
      %p119 = scmp.eq.s32.totalorder %s16, 0
      %p120 = por %p118, %p119
      %p121 = scmp.ne.s32.totalorder %s113, %s115
      %p122 = scmp.eq.s32.totalorder %s21, 1
      %p123 = por %p121, %p122
      %p124 = scmp.ne.s32.totalorder %s115, %s116
      %p125 = scmp.eq.s32.totalorder %s21, 0
      %p126 = por %p124, %p125
      %p127 = scmp.ne.s32.totalorder %s115, %s116
      %p128 = scmp.eq.s32.totalorder %s22, 1
      %p129 = por %p127, %p128
      %p131 = scmp.ne.s32.totalorder %s116, %s130
      %p132 = scmp.eq.s32.totalorder %s22, 0
      %p133 = por %p131, %p132
      %s134 = ssub.s32 %s16, %s23
      %p135 = scmp.eq.s32.totalorder %s134, 0
      %s137 = sadd.s32 %s136, 1
      %s138 = scalar_select %p135, %s136, %s137
      %p141 = pneg %p135
      %p142 = scmp.eq.s32.totalorder %s16, 1
      %p143 = por %p141, %p142
      %p144 = scmp.ne.s32.totalorder %s136, %s139
      %p145 = scmp.eq.s32.totalorder %s16, 0
      %p146 = por %p144, %p145
      %p147 = scmp.ne.s32.totalorder %s136, %s139
      %p148 = scmp.eq.s32.totalorder %s21, 1
      %p149 = por %p147, %p148
      %p150 = scmp.ne.s32.totalorder %s139, %s140
      %p151 = scmp.eq.s32.totalorder %s21, 0
      %p152 = por %p150, %p151
      %p153 = scmp.ne.s32.totalorder %s139, %s140
      %p154 = scmp.eq.s32.totalorder %s22, 1
      %p155 = por %p153, %p154
      %p157 = scmp.ne.s32.totalorder %s140, %s156
      %p158 = scmp.eq.s32.totalorder %s22, 0
      %p159 = por %p157, %p158
      %p160 = scmp.le.s32.totalorder 1, %s16
      %p161 = scmp.lt.s32.totalorder %s16, 3
      %p162 = pnand %p160, %p161
      %p163 = pneg %p162
      // Predicated region
      $region9: #{tpu_custom_call.1} parent=5 // pred_check
        _
      $region10: #{tpu_custom_call.1} parent=5 // pred_check_branch
        %165 = sbr.rel (%p162) target = $region12
      $region11: #{tpu_custom_call.1} parent=5 // pred_region
        %s166 = ssub.s32 %s16, 1
        // Predicated region
        $region13: #{tpu_custom_call.1} parent=11 // pred_check
          %p167 = pneg %p63
        $region14: #{tpu_custom_call.1} parent=11 // pred_check_branch
          %169 = sbr.rel (%p167) target = $region16
        $region15: #{tpu_custom_call.1} parent=11 // pred_region
          _
        $region16: #{tpu_custom_call.1} parent=11 // pred_fallthru
          _
        // Predicated region
        $region17: #{tpu_custom_call.1} parent=11 // pred_check
          %p170 = pneg %p84
        $region18: #{tpu_custom_call.1} parent=11 // pred_check_branch
          %172 = sbr.rel (%p170) target = $region20
        $region19: #{tpu_custom_call.1} parent=11 // pred_region
          %174 = vsyncadd [#allocation6], 0
          %s175 = sshll.u32 %s2, 4
          %s176 = int_to_ptr.hbm [resolvable:$true] %s175
          %s177 = sshll.u32 [#allocation5], 4
          %s178 = int_to_ptr.vmem [resolvable:$true] %s177
          %183 = dma.hbm_to_vmem [thread:$0]  %s176, 4096, %s178, [#allocation6], 256, 256, 16
        $region20: #{tpu_custom_call.1} parent=11 // pred_fallthru
          _
        // Predicated region
        $region21: #{tpu_custom_call.1} parent=11 // pred_check
          %p184 = pneg %p105
        $region22: #{tpu_custom_call.1} parent=11 // pred_check_branch
          %186 = sbr.rel (%p184) target = $region24
        $region23: #{tpu_custom_call.1} parent=11 // pred_region
          %188 = vsyncadd [#allocation9], 0
          %s189 = sshll.u32 %s3, 4
          %s190 = int_to_ptr.hbm [resolvable:$true] %s189
          %s191 = sshll.u32 [#allocation8], 4
          %s192 = int_to_ptr.vmem [resolvable:$true] %s191
          %197 = dma.hbm_to_vmem [thread:$0]  %s190, 8192, %s192, [#allocation9], 256, 256, 16
        $region24: #{tpu_custom_call.1} parent=11 // pred_fallthru
          _
        // Predicated region
        $region25: #{tpu_custom_call.1} parent=11 // pred_check
          %p198 = pneg %p126
        $region26: #{tpu_custom_call.1} parent=11 // pred_check_branch
          %200 = sbr.rel (%p198) target = $region28
        $region27: #{tpu_custom_call.1} parent=11 // pred_region
          _
        $region28: #{tpu_custom_call.1} parent=11 // pred_fallthru
          _
      $region12: #{tpu_custom_call.1} parent=5 // pred_fallthru
        _
      %p201 = scmp.lt.s32.totalorder %s16, 2
      // Predicated region
      $region29: #{tpu_custom_call.1} parent=5 // pred_check
        %p202 = pneg %p201
      $region30: #{tpu_custom_call.1} parent=5 // pred_check_branch
        %204 = sbr.rel (%p202) target = $region32
      $region31: #{tpu_custom_call.1} parent=5 // pred_region
        // Predicated region
        $region33: #{tpu_custom_call.1} parent=31 // pred_check
          %p205 = pneg %p36
        $region34: #{tpu_custom_call.1} parent=31 // pred_check_branch
          %207 = sbr.rel (%p205) target = $region36
        $region35: #{tpu_custom_call.1} parent=31 // pred_region
          %s208 = sand.u32 %s26, 1
          %s209 = sand.u32 %s26, 1
          %s210 = smul.addr %s209, 24
          %s211 = scalar_lea.vmem [#allocation4], %s210
          %s212 = smul.addr %s16, 4
          %s213 = scalar_lea.vmem %s0, %s212
          // Predicated region
          $region37: #{tpu_custom_call.1} parent=35 // pred_check
            _
          $region38: #{tpu_custom_call.1} parent=35 // pred_check_branch
            %215 = sbr.rel (0) target = $region40
          $region39: #{tpu_custom_call.1} parent=35 // pred_region
            // Predicated region
            $region41: #{tpu_custom_call.1} parent=39 // pred_check
              _
            $region42: #{tpu_custom_call.1} parent=39 // pred_check_branch
              %217 = sbr.rel target = $region44
            $region43: #{tpu_custom_call.1} parent=39 // pred_region
              // Predicated region
              $region56: #{tpu_custom_call.1} parent=43 // pred_check
                _
              $region57: #{tpu_custom_call.1} parent=43 // pred_check_branch
                %243 = sbr.rel (0) target = $region59
              $region58: #{tpu_custom_call.1} parent=43 // pred_region
                loop: start=0, step=1, limit=1
                $region60: #{tpu_custom_call.1} parent=58 // loop_pre_header
                  _
                $region61: #{tpu_custom_call.1} parent=58 // loop_header
                  %s245 = sphi 0, %s249
                  %p246 = scmp.ge.s32.totalorder %s245, 1
                  %s250 = sphi %s213, %s213
                  %s251 = sphi %s211, %s211
                $region62: #{tpu_custom_call.1} parent=58 // loop_header_branch
                  %248 = sbr.rel (%p246) target = $region66
                $region63: #{tpu_custom_call.1} parent=58 // loop_body
                  _
                $region64: #{tpu_custom_call.1} parent=58 // loop_footer
                  %s249 = sadd.s32 1, %s245
                $region65: #{tpu_custom_call.1} parent=58 // loop_footer_branch
                  %244 = sbr.rel target = $region61
                $region66: #{tpu_custom_call.1} parent=58 // loop_exit
                  _
                %s253 = ssub.s32 16, 1
                loop: start=0, step=1, limit=1
                $region67: #{tpu_custom_call.1} parent=58 // loop_pre_header
                  _
                $region68: #{tpu_custom_call.1} parent=58 // loop_header
                  %s255 = sphi 0, %s259
                  %p256 = scmp.ge.s32.totalorder %s255, 1
                  %s260 = sphi %s213, %s213
                  %s261 = sphi %s211, %s211
                $region69: #{tpu_custom_call.1} parent=58 // loop_header_branch
                  %258 = sbr.rel (%p256) target = $region73
                $region70: #{tpu_custom_call.1} parent=58 // loop_body
                  %v262 = vld [vmem:[%s260] sm:%s253]
                  %263 = vst [vmem:[%s261] sm:%s253] %v262
                  %v264 = vld [vmem:[%s260 + $0x8] sm:%s253]
                  %265 = vst [vmem:[%s261 + $0x4] sm:%s253] %v264
                  %v266 = vld [vmem:[%s260 + $0x10] sm:%s253]
                  %267 = vst [vmem:[%s261 + $0x8] sm:%s253] %v266
                  %v268 = vld [vmem:[%s260 + $0x18] sm:%s253]
                  %269 = vst [vmem:[%s261 + $0xc] sm:%s253] %v268
                  %v270 = vld [vmem:[%s260 + $0x20] sm:%s253]
                  %271 = vst [vmem:[%s261 + $0x10] sm:%s253] %v270
                  %v272 = vld [vmem:[%s260 + $0x28] sm:%s253]
                  %273 = vst [vmem:[%s261 + $0x14] sm:%s253] %v272
                $region71: #{tpu_custom_call.1} parent=58 // loop_footer
                  %s259 = sadd.s32 1, %s255
                $region72: #{tpu_custom_call.1} parent=58 // loop_footer_branch
                  %254 = sbr.rel target = $region68
                $region73: #{tpu_custom_call.1} parent=58 // loop_exit
                  _
              $region59: #{tpu_custom_call.1} parent=43 // pred_fallthru
                _
            $region44: #{tpu_custom_call.1} parent=39 // pred_fallthru
              _
            // Predicated region
            $region45: #{tpu_custom_call.1} parent=39 // pred_check
              _
            $region46: #{tpu_custom_call.1} parent=39 // pred_check_branch
              %219 = sbr.rel (0) target = $region48
            $region47: #{tpu_custom_call.1} parent=39 // pred_region
              %s221 = ssub.s32 16, 1
              loop: start=0, step=1, limit=1
              $region49: #{tpu_custom_call.1} parent=47 // loop_pre_header
                _
              $region50: #{tpu_custom_call.1} parent=47 // loop_header
                %s223 = sphi 0, %s227
                %p224 = scmp.ge.s32.totalorder %s223, 1
                %s228 = sphi %s213, %s213
                %s229 = sphi %s211, %s211
              $region51: #{tpu_custom_call.1} parent=47 // loop_header_branch
                %226 = sbr.rel (%p224) target = $region55
              $region52: #{tpu_custom_call.1} parent=47 // loop_body
                %v230 = vld [vmem:[%s228] sm:%s221]
                %231 = vst [vmem:[%s229] sm:%s221] %v230
                %v232 = vld [vmem:[%s228 + $0x8] sm:%s221]
                %233 = vst [vmem:[%s229 + $0x4] sm:%s221] %v232
                %v234 = vld [vmem:[%s228 + $0x10] sm:%s221]
                %235 = vst [vmem:[%s229 + $0x8] sm:%s221] %v234
                %v236 = vld [vmem:[%s228 + $0x18] sm:%s221]
                %237 = vst [vmem:[%s229 + $0xc] sm:%s221] %v236
                %v238 = vld [vmem:[%s228 + $0x20] sm:%s221]
                %239 = vst [vmem:[%s229 + $0x10] sm:%s221] %v238
                %v240 = vld [vmem:[%s228 + $0x28] sm:%s221]
                %241 = vst [vmem:[%s229 + $0x14] sm:%s221] %v240
              $region53: #{tpu_custom_call.1} parent=47 // loop_footer
                %s227 = sadd.s32 1, %s223
              $region54: #{tpu_custom_call.1} parent=47 // loop_footer_branch
                %222 = sbr.rel target = $region50
              $region55: #{tpu_custom_call.1} parent=47 // loop_exit
                _
            $region48: #{tpu_custom_call.1} parent=39 // pred_fallthru
              _
          $region40: #{tpu_custom_call.1} parent=35 // pred_fallthru
            _
          %274 = vnop
        $region36: #{tpu_custom_call.1} parent=31 // pred_fallthru
          _
      $region32: #{tpu_custom_call.1} parent=5 // pred_fallthru
        _
      %p275 = scmp.le.s32.totalorder 1, %s16
      %p276 = scmp.lt.s32.totalorder %s16, 3
      %p277 = pnand %p275, %p276
      %p278 = pneg %p277
      // Predicated region
      $region74: #{tpu_custom_call.1} parent=5 // pred_check
        _
      $region75: #{tpu_custom_call.1} parent=5 // pred_check_branch
        %280 = sbr.rel (%p277) target = $region77
      $region76: #{tpu_custom_call.1} parent=5 // pred_region
        %s281 = ssub.s32 %s16, 1
        %s282 = sand.u32 %s29, 1
        %s283 = sand.u32 %s29, 1
        %s284 = smul.addr %s283, 24
        %s285 = scalar_lea.vmem [#allocation4], %s284
        // Predicated region
        $region78: #{tpu_custom_call.1} parent=76 // pred_check
          %p286 = pneg %p42
        $region79: #{tpu_custom_call.1} parent=76 // pred_check_branch
          %288 = sbr.rel (%p286) target = $region81
        $region80: #{tpu_custom_call.1} parent=76 // pred_region
          _
        $region81: #{tpu_custom_call.1} parent=76 // pred_fallthru
          _
        // Predicated region
        $region82: #{tpu_custom_call.1} parent=76 // pred_check
          %p289 = pneg %p84
        $region83: #{tpu_custom_call.1} parent=76 // pred_check_branch
          %291 = sbr.rel (%p289) target = $region85
        $region84: #{tpu_custom_call.1} parent=76 // pred_region
          %293 = dma.done [#allocation6], 4096
        $region85: #{tpu_custom_call.1} parent=76 // pred_fallthru
          _
        // Predicated region
        $region86: #{tpu_custom_call.1} parent=76 // pred_check
          %p294 = pneg %p105
        $region87: #{tpu_custom_call.1} parent=76 // pred_check_branch
          %296 = sbr.rel (%p294) target = $region89
        $region88: #{tpu_custom_call.1} parent=76 // pred_region
          %298 = dma.done [#allocation9], 8192
        $region89: #{tpu_custom_call.1} parent=76 // pred_fallthru
          _
        %s299 = sand.u32 %s29, 1
        %s300 = sand.u32 %s29, 1
        %s301 = smul.addr %s300, 24
        %s302 = scalar_lea.vmem [#allocation4], %s301
        %p303 = pneg %p42
        %p304 = pneg %p39
        %p305 = pneg %p63
        %p306 = pneg %p60
        %p307 = pneg %p84
        %p308 = pneg %p81
        %p309 = pneg %p105
        %p310 = pneg %p102
        %p311 = pneg %p126
        %p312 = pneg %p123
        %p313 = pneg %p152
        %p314 = pneg %p149
        %s315 = sand.u32 %s139, 1
        %s316 = scalar_lea.sflag [#allocation7], %s315
        %s317 = sand.u32 %s139, 1
        %s318 = smul.addr %s317, 8
        %s319 = scalar_lea.vmem [#allocation10], %s318
        %v321 = vld [vmem:[%s285] sm:$0xf]
        %v322 = vld [vmem:[%s285 + $0x4] sm:$0xf]
        %v323 = vld [vmem:[%s285 + $0x8] sm:$0xf]
        %v324 = vld [vmem:[%s285 + $0xc] sm:$0xf]
        %v325 = vld [vmem:[%s285 + $0x10] sm:$0xf]
        %v326 = vld [vmem:[%s285 + $0x14] sm:$0xf]
        %v327 = vld [vmem:[%s1] sm:$0xff]
        %v328 = vld [vmem:[%s1 + $0x8] sm:$0xff]
        %v329 = vld [vmem:[%s4] sm:$0xf]
        %v331 = vperm.slane %v329, 0
        %v332 = vperm.slane %v329, 1
        %v333 = vperm.slane %v329, 2
        %v334 = vperm.slane %v329, 3
        %v345 = vunpack.c.l.b16 %v321
        %v346 = vunpack.c.l.b16 %v322
        %v347 = vunpack.c.l.b16 %v323
        %v348 = vunpack.c.l.b16 %v324
        %v349 = vunpack.c.l.b16 %v325
        %v350 = vunpack.c.l.b16 %v326
        %v351 = vpack.c.b16 %v346, %v345
        %v352 = vpack.c.b16 %v348, %v347
        %v353 = vpack.c.b16 %v350, %v349
        %v356 = vunpack.c.l.b16 %v327
        %v357 = vunpack.c.h.b16 %v327
        %v358 = vunpack.c.l.b16 %v328
        %v359 = vunpack.c.h.b16 %v328
        %v360 = vpack.c.b16 %v356, %v356
        %v361 = vpack.c.b16 %v357, %v357
        %v362 = vpack.c.b16 %v358, %v358
        %v363 = vpack.c.b16 %v359, %v359
        %vm364 = vcmask 64512
        %v366 = vsel %vm364, %v351, 0
        %v369 = vsel %vm364, %v352, 0
        %v372 = vsel %vm364, %v353, 0
        %vm374 = vcmask 1043456
        %v376 = vsel %vm374, %v360, 0
        %v379 = vsel %vm374, %v361, 0
        %v382 = vsel %vm374, %v362, 0
        %v385 = vsel %vm374, %v363, 0
        %387 = vmatpush.bf16.msra.mxu0 0
        %388 = vmatpush.bf16.msra.mxu0 0
        %389 = vmatpush.bf16.msra.mxu0 0
        %390 = vmatpush.bf16.msra.mxu0 0
        %391 = vmatpush.bf16.msra.mxu0 0
        %392 = vmatpush.bf16.msra.mxu0 0
        %393 = vmatpush.bf16.msra.mxu0 0
        %394 = vmatpush.bf16.msra.mxu0 %v376
        %395 = vmatmul.bf16.gmra.mxu0 %v366
        %v396 = vpop.f32.mrf.mxu0
        %v397 = vadd.f32 %v331, %v396
        %v398 = vpop.f32.mrf.mxu0
        %v399 = vadd.f32 %v331, %v398
        %400 = vmatmul.bf16.gmra.mxu0 %v369
        %v401 = vpop.f32.mrf.mxu0
        %v402 = vadd.f32 %v331, %v401
        %v403 = vpop.f32.mrf.mxu0
        %v404 = vadd.f32 %v331, %v403
        %405 = vmatmul.bf16.gmra.mxu0 %v372
        %v406 = vpop.f32.mrf.mxu0
        %v407 = vadd.f32 %v331, %v406
        %v408 = vpop.f32.mrf.mxu0
        %v409 = vadd.f32 %v331, %v408
        %410 = vdwg.mxu0
        %411 = vmatpush.bf16.msra.mxu0 0
        %412 = vmatpush.bf16.msra.mxu0 0
        %413 = vmatpush.bf16.msra.mxu0 0
        %414 = vmatpush.bf16.msra.mxu0 0
        %415 = vmatpush.bf16.msra.mxu0 0
        %416 = vmatpush.bf16.msra.mxu0 0
        %417 = vmatpush.bf16.msra.mxu0 0
        %418 = vmatpush.bf16.msra.mxu0 %v379
        %419 = vmatmul.bf16.gmra.mxu0 %v366
        %v420 = vpop.f32.mrf.mxu0
        %v421 = vadd.f32 %v332, %v420
        %v422 = vpop.f32.mrf.mxu0
        %v423 = vadd.f32 %v332, %v422
        %424 = vmatmul.bf16.gmra.mxu0 %v369
        %v425 = vpop.f32.mrf.mxu0
        %v426 = vadd.f32 %v332, %v425
        %v427 = vpop.f32.mrf.mxu0
        %v428 = vadd.f32 %v332, %v427
        %429 = vmatmul.bf16.gmra.mxu0 %v372
        %v430 = vpop.f32.mrf.mxu0
        %v431 = vadd.f32 %v332, %v430
        %v432 = vpop.f32.mrf.mxu0
        %v433 = vadd.f32 %v332, %v432
        %434 = vdwg.mxu0
        %435 = vmatpush.bf16.msra.mxu0 0
        %436 = vmatpush.bf16.msra.mxu0 0
        %437 = vmatpush.bf16.msra.mxu0 0
        %438 = vmatpush.bf16.msra.mxu0 0
        %439 = vmatpush.bf16.msra.mxu0 0
        %440 = vmatpush.bf16.msra.mxu0 0
        %441 = vmatpush.bf16.msra.mxu0 0
        %442 = vmatpush.bf16.msra.mxu0 %v382
        %443 = vmatmul.bf16.gmra.mxu0 %v366
        %v444 = vpop.f32.mrf.mxu0
        %v445 = vadd.f32 %v333, %v444
        %v446 = vpop.f32.mrf.mxu0
        %v447 = vadd.f32 %v333, %v446
        %448 = vmatmul.bf16.gmra.mxu0 %v369
        %v449 = vpop.f32.mrf.mxu0
        %v450 = vadd.f32 %v333, %v449
        %v451 = vpop.f32.mrf.mxu0
        %v452 = vadd.f32 %v333, %v451
        %453 = vmatmul.bf16.gmra.mxu0 %v372
        %v454 = vpop.f32.mrf.mxu0
        %v455 = vadd.f32 %v333, %v454
        %v456 = vpop.f32.mrf.mxu0
        %v457 = vadd.f32 %v333, %v456
        %458 = vdwg.mxu0
        %459 = vmatpush.bf16.msra.mxu0 0
        %460 = vmatpush.bf16.msra.mxu0 0
        %461 = vmatpush.bf16.msra.mxu0 0
        %462 = vmatpush.bf16.msra.mxu0 0
        %463 = vmatpush.bf16.msra.mxu0 0
        %464 = vmatpush.bf16.msra.mxu0 0
        %465 = vmatpush.bf16.msra.mxu0 0
        %466 = vmatpush.bf16.msra.mxu0 %v385
        %467 = vmatmul.bf16.gmra.mxu0 %v366
        %v468 = vpop.f32.mrf.mxu0
        %v469 = vadd.f32 %v334, %v468
        %v470 = vpop.f32.mrf.mxu0
        %v471 = vadd.f32 %v334, %v470
        %472 = vmatmul.bf16.gmra.mxu0 %v369
        %v473 = vpop.f32.mrf.mxu0
        %v474 = vadd.f32 %v334, %v473
        %v475 = vpop.f32.mrf.mxu0
        %v476 = vadd.f32 %v334, %v475
        %477 = vmatmul.bf16.gmra.mxu0 %v372
        %v478 = vpop.f32.mrf.mxu0
        %v479 = vadd.f32 %v334, %v478
        %v480 = vpop.f32.mrf.mxu0
        %v481 = vadd.f32 %v334, %v480
        %482 = vdwg.mxu0
        %483 = vst [vmem:[#allocation3] sm:$0xff] %v397
        %484 = vst [vmem:[#allocation3 + $0x8] sm:$0xff] %v421
        %485 = vst [vmem:[#allocation3 + $0x10] sm:$0xff] %v445
        %486 = vst [vmem:[#allocation3 + $0x18] sm:$0xff] %v469
        %487 = vst [vmem:[#allocation3 + $0x20] sm:$0xff] %v399
        %488 = vst [vmem:[#allocation3 + $0x28] sm:$0xff] %v423
        %489 = vst [vmem:[#allocation3 + $0x30] sm:$0xff] %v447
        %490 = vst [vmem:[#allocation3 + $0x38] sm:$0xff] %v471
        %491 = vst [vmem:[#allocation3 + $0x40] sm:$0xff] %v402
        %492 = vst [vmem:[#allocation3 + $0x48] sm:$0xff] %v426
        %493 = vst [vmem:[#allocation3 + $0x50] sm:$0xff] %v450
        %494 = vst [vmem:[#allocation3 + $0x58] sm:$0xff] %v474
        %495 = vst [vmem:[#allocation3 + $0x60] sm:$0xff] %v404
        %496 = vst [vmem:[#allocation3 + $0x68] sm:$0xff] %v428
        %497 = vst [vmem:[#allocation3 + $0x70] sm:$0xff] %v452
        %498 = vst [vmem:[#allocation3 + $0x78] sm:$0xff] %v476
        %499 = vst [vmem:[#allocation3 + $0x80] sm:$0xff] %v407
        %500 = vst [vmem:[#allocation3 + $0x88] sm:$0xff] %v431
        %501 = vst [vmem:[#allocation3 + $0x90] sm:$0xff] %v455
        %502 = vst [vmem:[#allocation3 + $0x98] sm:$0xff] %v479
        %503 = vst [vmem:[#allocation3 + $0xa0] sm:$0xff] %v409
        %504 = vst [vmem:[#allocation3 + $0xa8] sm:$0xff] %v433
        %505 = vst [vmem:[#allocation3 + $0xb0] sm:$0xff] %v457
        %506 = vst [vmem:[#allocation3 + $0xb8] sm:$0xff] %v481
        %v507 = vld [vmem:[#allocation8] sm:$0xff]
        %v508 = vld [vmem:[#allocation8 + $0x8] sm:$0xff]
        %v509 = vld [vmem:[#allocation8 + $0x10] sm:$0xff]
        %v510 = vld [vmem:[#allocation8 + $0x18] sm:$0xff]
        %v511 = vld [vmem:[#allocation8 + $0x20] sm:$0xff]
        %v512 = vld [vmem:[#allocation8 + $0x28] sm:$0xff]
        %v513 = vld [vmem:[#allocation8 + $0x30] sm:$0xff]
        %v514 = vld [vmem:[#allocation8 + $0x38] sm:$0xff]
        %v515 = vld [vmem:[#allocation8 + $0x40] sm:$0xff]
        %v516 = vld [vmem:[#allocation8 + $0x48] sm:$0xff]
        %v517 = vld [vmem:[#allocation8 + $0x50] sm:$0xff]
        %v518 = vld [vmem:[#allocation8 + $0x58] sm:$0xff]
        %v519 = vld [vmem:[#allocation8 + $0x60] sm:$0xff]
        %v520 = vld [vmem:[#allocation8 + $0x68] sm:$0xff]
        %v521 = vld [vmem:[#allocation8 + $0x70] sm:$0xff]
        %v522 = vld [vmem:[#allocation8 + $0x78] sm:$0xff]
        %v523 = vld [vmem:[#allocation8 + $0x80] sm:$0xff]
        %v524 = vld [vmem:[#allocation8 + $0x88] sm:$0xff]
        %v525 = vld [vmem:[#allocation8 + $0x90] sm:$0xff]
        %v526 = vld [vmem:[#allocation8 + $0x98] sm:$0xff]
        %v527 = vld [vmem:[#allocation8 + $0xa0] sm:$0xff]
        %v528 = vld [vmem:[#allocation8 + $0xa8] sm:$0xff]
        %v529 = vld [vmem:[#allocation8 + $0xb0] sm:$0xff]
        %v530 = vld [vmem:[#allocation8 + $0xb8] sm:$0xff]
        %v531 = vld [vmem:[#allocation8 + $0xc0] sm:$0xff]
        %v532 = vld [vmem:[#allocation8 + $0xc8] sm:$0xff]
        %v533 = vld [vmem:[#allocation8 + $0xd0] sm:$0xff]
        %v534 = vld [vmem:[#allocation8 + $0xd8] sm:$0xff]
        %v535 = vld [vmem:[#allocation8 + $0xe0] sm:$0xff]
        %v536 = vld [vmem:[#allocation8 + $0xe8] sm:$0xff]
        %v537 = vld [vmem:[#allocation8 + $0xf0] sm:$0xff]
        %v538 = vld [vmem:[#allocation8 + $0xf8] sm:$0xff]
        %v539 = vld [vmem:[#allocation3] sm:$0xff]
        %v540 = vld [vmem:[#allocation3 + $0x8] sm:$0xff]
        %v541 = vld [vmem:[#allocation3 + $0x10] sm:$0xff]
        %v542 = vld [vmem:[#allocation3 + $0x18] sm:$0xff]
        %v575 = vunpack.c.l.b16 %v507
        %v576 = vunpack.c.h.b16 %v507
        %v577 = vunpack.c.l.b16 %v508
        %v578 = vunpack.c.h.b16 %v508
        %v579 = vunpack.c.l.b16 %v509
        %v580 = vunpack.c.h.b16 %v509
        %v581 = vunpack.c.l.b16 %v510
        %v582 = vunpack.c.h.b16 %v510
        %v583 = vunpack.c.l.b16 %v511
        %v584 = vunpack.c.h.b16 %v511
        %v585 = vunpack.c.l.b16 %v512
        %v586 = vunpack.c.h.b16 %v512
        %v587 = vunpack.c.l.b16 %v513
        %v588 = vunpack.c.h.b16 %v513
        %v589 = vunpack.c.l.b16 %v514
        %v590 = vunpack.c.h.b16 %v514
        %v591 = vunpack.c.l.b16 %v515
        %v592 = vunpack.c.h.b16 %v515
        %v593 = vunpack.c.l.b16 %v516
        %v594 = vunpack.c.h.b16 %v516
        %v595 = vunpack.c.l.b16 %v517
        %v596 = vunpack.c.h.b16 %v517
        %v597 = vunpack.c.l.b16 %v518
        %v598 = vunpack.c.h.b16 %v518
        %v599 = vunpack.c.l.b16 %v519
        %v600 = vunpack.c.h.b16 %v519
        %v601 = vunpack.c.l.b16 %v520
        %v602 = vunpack.c.h.b16 %v520
        %v603 = vunpack.c.l.b16 %v521
        %v604 = vunpack.c.h.b16 %v521
        %v605 = vunpack.c.l.b16 %v522
        %v606 = vunpack.c.h.b16 %v522
        %v607 = vunpack.c.l.b16 %v523
        %v608 = vunpack.c.h.b16 %v523
        %v609 = vunpack.c.l.b16 %v524
        %v610 = vunpack.c.h.b16 %v524
        %v611 = vunpack.c.l.b16 %v525
        %v612 = vunpack.c.h.b16 %v525
        %v613 = vunpack.c.l.b16 %v526
        %v614 = vunpack.c.h.b16 %v526
        %v615 = vunpack.c.l.b16 %v527
        %v616 = vunpack.c.h.b16 %v527
        %v617 = vunpack.c.l.b16 %v528
        %v618 = vunpack.c.h.b16 %v528
        %v619 = vunpack.c.l.b16 %v529
        %v620 = vunpack.c.h.b16 %v529
        %v621 = vunpack.c.l.b16 %v530
        %v622 = vunpack.c.h.b16 %v530
        %v623 = vunpack.c.l.b16 %v531
        %v624 = vunpack.c.h.b16 %v531
        %v625 = vunpack.c.l.b16 %v532
        %v626 = vunpack.c.h.b16 %v532
        %v627 = vunpack.c.l.b16 %v533
        %v628 = vunpack.c.h.b16 %v533
        %v629 = vunpack.c.l.b16 %v534
        %v630 = vunpack.c.h.b16 %v534
        %v631 = vunpack.c.l.b16 %v535
        %v632 = vunpack.c.h.b16 %v535
        %v633 = vunpack.c.l.b16 %v536
        %v634 = vunpack.c.h.b16 %v536
        %v635 = vunpack.c.l.b16 %v537
        %v636 = vunpack.c.h.b16 %v537
        %v637 = vunpack.c.l.b16 %v538
        %v638 = vunpack.c.h.b16 %v538
        %v639 = vpack.c.b16 %v579, %v575
        %v640 = vpack.c.b16 %v580, %v576
        %v641 = vpack.c.b16 %v581, %v577
        %v642 = vpack.c.b16 %v582, %v578
        %v643 = vpack.c.b16 %v587, %v583
        %v644 = vpack.c.b16 %v588, %v584
        %v645 = vpack.c.b16 %v589, %v585
        %v646 = vpack.c.b16 %v590, %v586
        %v647 = vpack.c.b16 %v595, %v591
        %v648 = vpack.c.b16 %v596, %v592
        %v649 = vpack.c.b16 %v597, %v593
        %v650 = vpack.c.b16 %v598, %v594
        %v651 = vpack.c.b16 %v603, %v599
        %v652 = vpack.c.b16 %v604, %v600
        %v653 = vpack.c.b16 %v605, %v601
        %v654 = vpack.c.b16 %v606, %v602
        %v655 = vpack.c.b16 %v611, %v607
        %v656 = vpack.c.b16 %v612, %v608
        %v657 = vpack.c.b16 %v613, %v609
        %v658 = vpack.c.b16 %v614, %v610
        %v659 = vpack.c.b16 %v619, %v615
        %v660 = vpack.c.b16 %v620, %v616
        %v661 = vpack.c.b16 %v621, %v617
        %v662 = vpack.c.b16 %v622, %v618
        %v663 = vpack.c.b16 %v627, %v623
        %v664 = vpack.c.b16 %v628, %v624
        %v665 = vpack.c.b16 %v629, %v625
        %v666 = vpack.c.b16 %v630, %v626
        %v667 = vpack.c.b16 %v635, %v631
        %v668 = vpack.c.b16 %v636, %v632
        %v669 = vpack.c.b16 %v637, %v633
        %v670 = vpack.c.b16 %v638, %v634
        %703 = vmatpush.bf16.msra.mxu0 %v667
        %704 = vmatpush.bf16.msra.mxu0 %v663
        %705 = vmatpush.bf16.msra.mxu0 %v659
        %706 = vmatpush.bf16.msra.mxu0 %v655
        %707 = vmatpush.bf16.msra.mxu0 %v651
        %708 = vmatpush.bf16.msra.mxu0 %v647
        %709 = vmatpush.bf16.msra.mxu0 %v643
        %710 = vmatpush.bf16.msra.mxu0 %v639
        %711 = vmatmul.bf16.gmra.mxu0 0
        %v712 = vpop.f32.mrf.mxu0
        %v713 = vadd.f32 0.0, %v712
        %v714 = vpop.f32.mrf.mxu0
        %715 = vdwg.mxu0
        %716 = vmatpush.bf16.msra.mxu0 %v668
        %717 = vmatpush.bf16.msra.mxu0 %v664
        %718 = vmatpush.bf16.msra.mxu0 %v660
        %719 = vmatpush.bf16.msra.mxu0 %v656
        %720 = vmatpush.bf16.msra.mxu0 %v652
        %721 = vmatpush.bf16.msra.mxu0 %v648
        %722 = vmatpush.bf16.msra.mxu0 %v644
        %723 = vmatpush.bf16.msra.mxu0 %v640
        %724 = vmatmul.bf16.gmra.mxu0 0
        %v725 = vpop.f32.mrf.mxu0
        %v726 = vadd.f32 0.0, %v725
        %v727 = vpop.f32.mrf.mxu0
        %728 = vdwg.mxu0
        %729 = vmatpush.bf16.msra.mxu0 %v669
        %730 = vmatpush.bf16.msra.mxu0 %v665
        %731 = vmatpush.bf16.msra.mxu0 %v661
        %732 = vmatpush.bf16.msra.mxu0 %v657
        %733 = vmatpush.bf16.msra.mxu0 %v653
        %734 = vmatpush.bf16.msra.mxu0 %v649
        %735 = vmatpush.bf16.msra.mxu0 %v645
        %736 = vmatpush.bf16.msra.mxu0 %v641
        %737 = vmatmul.bf16.gmra.mxu0 0
        %v738 = vpop.f32.mrf.mxu0
        %v739 = vadd.f32 0.0, %v738
        %v740 = vpop.f32.mrf.mxu0
        %741 = vdwg.mxu0
        %742 = vmatpush.bf16.msra.mxu0 %v670
        %743 = vmatpush.bf16.msra.mxu0 %v666
        %744 = vmatpush.bf16.msra.mxu0 %v662
        %745 = vmatpush.bf16.msra.mxu0 %v658
        %746 = vmatpush.bf16.msra.mxu0 %v654
        %747 = vmatpush.bf16.msra.mxu0 %v650
        %748 = vmatpush.bf16.msra.mxu0 %v646
        %749 = vmatpush.bf16.msra.mxu0 %v642
        %750 = vmatmul.bf16.gmra.mxu0 0
        %v751 = vpop.f32.mrf.mxu0
        %v752 = vadd.f32 0.0, %v751
        %v753 = vpop.f32.mrf.mxu0
        %754 = vdwg.mxu0
        %v755 = vadd.f32 %v539, %v713
        %v756 = vadd.f32 %v540, %v726
        %v757 = vadd.f32 %v541, %v739
        %v758 = vadd.f32 %v542, %v752
        %v759 = vxor.u32 %v755, 2147483648
        %v760 = vmul.f32 %v759, 1.442695
        %v761 = vpow.pop %v760
        %v762 = vadd.f32 %v761, 1.0
        %v763 = vrcp.pop %v762
        %v764 = vmul.f32 %v762, %v763
        %v765 = vsub.f32 1.0, %v764
        %v766 = vmul.f32 %v763, %v765
        %v767 = vadd.f32 %v763, %v766
        %vm768 = vweird.f32 %v762
        %vm769 = vweird.f32 %v763
        %vm770 = vmor %vm768, %vm769
        %v771 = vsel %vm770, %v763, %v767
        %v772 = vand.u32 2147483647, %v762
        %vm773 = vcmp.eq.f32.partialorder %v772, 8.507059e+37
        %v774 = vand.u32 %v762, 2147483648
        %v775 = vor.u32 1.1754944e-38, %v774
        %v776 = vsel %vm773, %v775, %v771
        %v777 = vmul.f32 1.0, %v776
        %v778 = vxor.u32 %v756, 2147483648
        %v779 = vmul.f32 %v778, 1.442695
        %v780 = vpow.pop %v779
        %v781 = vadd.f32 %v780, 1.0
        %v782 = vrcp.pop %v781
        %v783 = vmul.f32 %v781, %v782
        %v784 = vsub.f32 1.0, %v783
        %v785 = vmul.f32 %v782, %v784
        %v786 = vadd.f32 %v782, %v785
        %vm787 = vweird.f32 %v781
        %vm788 = vweird.f32 %v782
        %vm789 = vmor %vm787, %vm788
        %v790 = vsel %vm789, %v782, %v786
        %v791 = vand.u32 2147483647, %v781
        %vm792 = vcmp.eq.f32.partialorder %v791, 8.507059e+37
        %v793 = vand.u32 %v781, 2147483648
        %v794 = vor.u32 1.1754944e-38, %v793
        %v795 = vsel %vm792, %v794, %v790
        %v796 = vmul.f32 1.0, %v795
        %v797 = vtanh.pop %v757
        %v798 = vxor.u32 %v758, 2147483648
        %v799 = vmul.f32 %v798, 1.442695
        %v800 = vpow.pop %v799
        %v801 = vadd.f32 %v800, 1.0
        %v802 = vrcp.pop %v801
        %v803 = vmul.f32 %v801, %v802
        %v804 = vsub.f32 1.0, %v803
        %v805 = vmul.f32 %v802, %v804
        %v806 = vadd.f32 %v802, %v805
        %vm807 = vweird.f32 %v801
        %vm808 = vweird.f32 %v802
        %vm809 = vmor %vm807, %vm808
        %v810 = vsel %vm809, %v802, %v806
        %v811 = vand.u32 2147483647, %v801
        %vm812 = vcmp.eq.f32.partialorder %v811, 8.507059e+37
        %v813 = vand.u32 %v801, 2147483648
        %v814 = vor.u32 1.1754944e-38, %v813
        %v815 = vsel %vm812, %v814, %v810
        %v816 = vmul.f32 1.0, %v815
        %v817 = vmul.f32 %v796, 0.0
        %v818 = vmul.f32 %v777, %v797
        %v819 = vadd.f32 %v817, %v818
        %v820 = vtanh.pop %v819
        %v821 = vmul.f32 %v816, %v820
        %v822 = vpack.c.bf16 %v821, %v821
        %823 = vst [vmem:[#allocation2] sm:$0xf] %v822
        %s824 = scalar_lea.vmem [#allocation3], 32
        %v825 = vld [vmem:[%s824] sm:$0xff]
        %v826 = vld [vmem:[%s824 + $0x8] sm:$0xff]
        %v827 = vld [vmem:[%s824 + $0x10] sm:$0xff]
        %v828 = vld [vmem:[%s824 + $0x18] sm:$0xff]
        %829 = vmatpush.bf16.msra.mxu0 %v667
        %830 = vmatpush.bf16.msra.mxu0 %v663
        %831 = vmatpush.bf16.msra.mxu0 %v659
        %832 = vmatpush.bf16.msra.mxu0 %v655
        %833 = vmatpush.bf16.msra.mxu0 %v651
        %834 = vmatpush.bf16.msra.mxu0 %v647
        %835 = vmatpush.bf16.msra.mxu0 %v643
        %836 = vmatpush.bf16.msra.mxu0 %v639
        %837 = vmatmul.bf16.gmra.mxu0 %v822
        %v838 = vpop.f32.mrf.mxu0
        %v839 = vadd.f32 0.0, %v838
        %v840 = vpop.f32.mrf.mxu0
        %841 = vdwg.mxu0
        %842 = vmatpush.bf16.msra.mxu0 %v668
        %843 = vmatpush.bf16.msra.mxu0 %v664
        %844 = vmatpush.bf16.msra.mxu0 %v660
        %845 = vmatpush.bf16.msra.mxu0 %v656
        %846 = vmatpush.bf16.msra.mxu0 %v652
        %847 = vmatpush.bf16.msra.mxu0 %v648
        %848 = vmatpush.bf16.msra.mxu0 %v644
        %849 = vmatpush.bf16.msra.mxu0 %v640
        %850 = vmatmul.bf16.gmra.mxu0 %v822
        %v851 = vpop.f32.mrf.mxu0
        %v852 = vadd.f32 0.0, %v851
        %v853 = vpop.f32.mrf.mxu0
        %854 = vdwg.mxu0
        %855 = vmatpush.bf16.msra.mxu0 %v669
        %856 = vmatpush.bf16.msra.mxu0 %v665
        %857 = vmatpush.bf16.msra.mxu0 %v661
        %858 = vmatpush.bf16.msra.mxu0 %v657
        %859 = vmatpush.bf16.msra.mxu0 %v653
        %860 = vmatpush.bf16.msra.mxu0 %v649
        %861 = vmatpush.bf16.msra.mxu0 %v645
        %862 = vmatpush.bf16.msra.mxu0 %v641
        %863 = vmatmul.bf16.gmra.mxu0 %v822
        %v864 = vpop.f32.mrf.mxu0
        %v865 = vadd.f32 0.0, %v864
        %v866 = vpop.f32.mrf.mxu0
        %867 = vdwg.mxu0
        %868 = vmatpush.bf16.msra.mxu0 %v670
        %869 = vmatpush.bf16.msra.mxu0 %v666
        %870 = vmatpush.bf16.msra.mxu0 %v662
        %871 = vmatpush.bf16.msra.mxu0 %v658
        %872 = vmatpush.bf16.msra.mxu0 %v654
        %873 = vmatpush.bf16.msra.mxu0 %v650
        %874 = vmatpush.bf16.msra.mxu0 %v646
        %875 = vmatpush.bf16.msra.mxu0 %v642
        %876 = vmatmul.bf16.gmra.mxu0 %v822
        %v877 = vpop.f32.mrf.mxu0
        %v878 = vadd.f32 0.0, %v877
        %v879 = vpop.f32.mrf.mxu0
        %880 = vdwg.mxu0
        %v881 = vadd.f32 %v825, %v839
        %v882 = vadd.f32 %v826, %v852
        %v883 = vadd.f32 %v827, %v865
        %v884 = vadd.f32 %v828, %v878
        %v885 = vxor.u32 %v881, 2147483648
        %v886 = vmul.f32 %v885, 1.442695
        %v887 = vpow.pop %v886
        %v888 = vadd.f32 %v887, 1.0
        %v889 = vrcp.pop %v888
        %v890 = vmul.f32 %v888, %v889
        %v891 = vsub.f32 1.0, %v890
        %v892 = vmul.f32 %v889, %v891
        %v893 = vadd.f32 %v889, %v892
        %vm894 = vweird.f32 %v888
        %vm895 = vweird.f32 %v889
        %vm896 = vmor %vm894, %vm895
        %v897 = vsel %vm896, %v889, %v893
        %v898 = vand.u32 2147483647, %v888
        %vm899 = vcmp.eq.f32.partialorder %v898, 8.507059e+37
        %v900 = vand.u32 %v888, 2147483648
        %v901 = vor.u32 1.1754944e-38, %v900
        %v902 = vsel %vm899, %v901, %v897
        %v903 = vmul.f32 1.0, %v902
        %v904 = vxor.u32 %v882, 2147483648
        %v905 = vmul.f32 %v904, 1.442695
        %v906 = vpow.pop %v905
        %v907 = vadd.f32 %v906, 1.0
        %v908 = vrcp.pop %v907
        %v909 = vmul.f32 %v907, %v908
        %v910 = vsub.f32 1.0, %v909
        %v911 = vmul.f32 %v908, %v910
        %v912 = vadd.f32 %v908, %v911
        %vm913 = vweird.f32 %v907
        %vm914 = vweird.f32 %v908
        %vm915 = vmor %vm913, %vm914
        %v916 = vsel %vm915, %v908, %v912
        %v917 = vand.u32 2147483647, %v907
        %vm918 = vcmp.eq.f32.partialorder %v917, 8.507059e+37
        %v919 = vand.u32 %v907, 2147483648
        %v920 = vor.u32 1.1754944e-38, %v919
        %v921 = vsel %vm918, %v920, %v916
        %v922 = vmul.f32 1.0, %v921
        %v923 = vtanh.pop %v883
        %v924 = vxor.u32 %v884, 2147483648
        %v925 = vmul.f32 %v924, 1.442695
        %v926 = vpow.pop %v925
        %v927 = vadd.f32 %v926, 1.0
        %v928 = vrcp.pop %v927
        %v929 = vmul.f32 %v927, %v928
        %v930 = vsub.f32 1.0, %v929
        %v931 = vmul.f32 %v928, %v930
        %v932 = vadd.f32 %v928, %v931
        %vm933 = vweird.f32 %v927
        %vm934 = vweird.f32 %v928
        %vm935 = vmor %vm933, %vm934
        %v936 = vsel %vm935, %v928, %v932
        %v937 = vand.u32 2147483647, %v927
        %vm938 = vcmp.eq.f32.partialorder %v937, 8.507059e+37
        %v939 = vand.u32 %v927, 2147483648
        %v940 = vor.u32 1.1754944e-38, %v939
        %v941 = vsel %vm938, %v940, %v936
        %v942 = vmul.f32 1.0, %v941
        %v943 = vmul.f32 %v922, %v819
        %v944 = vmul.f32 %v903, %v923
        %v945 = vadd.f32 %v943, %v944
        %v946 = vtanh.pop %v945
        %v947 = vmul.f32 %v942, %v946
        %v948 = vpack.c.bf16 %v947, %v947
        %s949 = scalar_lea.vmem [#allocation2], 4
        %950 = vst [vmem:[%s949] sm:$0xf] %v948
        %s951 = scalar_lea.vmem [#allocation3], 64
        %v952 = vld [vmem:[%s951] sm:$0xff]
        %v953 = vld [vmem:[%s951 + $0x8] sm:$0xff]
        %v954 = vld [vmem:[%s951 + $0x10] sm:$0xff]
        %v955 = vld [vmem:[%s951 + $0x18] sm:$0xff]
        %956 = vmatpush.bf16.msra.mxu0 %v667
        %957 = vmatpush.bf16.msra.mxu0 %v663
        %958 = vmatpush.bf16.msra.mxu0 %v659
        %959 = vmatpush.bf16.msra.mxu0 %v655
        %960 = vmatpush.bf16.msra.mxu0 %v651
        %961 = vmatpush.bf16.msra.mxu0 %v647
        %962 = vmatpush.bf16.msra.mxu0 %v643
        %963 = vmatpush.bf16.msra.mxu0 %v639
        %964 = vmatmul.bf16.gmra.mxu0 %v948
        %v965 = vpop.f32.mrf.mxu0
        %v966 = vadd.f32 0.0, %v965
        %v967 = vpop.f32.mrf.mxu0
        %968 = vdwg.mxu0
        %969 = vmatpush.bf16.msra.mxu0 %v668
        %970 = vmatpush.bf16.msra.mxu0 %v664
        %971 = vmatpush.bf16.msra.mxu0 %v660
        %972 = vmatpush.bf16.msra.mxu0 %v656
        %973 = vmatpush.bf16.msra.mxu0 %v652
        %974 = vmatpush.bf16.msra.mxu0 %v648
        %975 = vmatpush.bf16.msra.mxu0 %v644
        %976 = vmatpush.bf16.msra.mxu0 %v640
        %977 = vmatmul.bf16.gmra.mxu0 %v948
        %v978 = vpop.f32.mrf.mxu0
        %v979 = vadd.f32 0.0, %v978
        %v980 = vpop.f32.mrf.mxu0
        %981 = vdwg.mxu0
        %982 = vmatpush.bf16.msra.mxu0 %v669
        %983 = vmatpush.bf16.msra.mxu0 %v665
        %984 = vmatpush.bf16.msra.mxu0 %v661
        %985 = vmatpush.bf16.msra.mxu0 %v657
        %986 = vmatpush.bf16.msra.mxu0 %v653
        %987 = vmatpush.bf16.msra.mxu0 %v649
        %988 = vmatpush.bf16.msra.mxu0 %v645
        %989 = vmatpush.bf16.msra.mxu0 %v641
        %990 = vmatmul.bf16.gmra.mxu0 %v948
        %v991 = vpop.f32.mrf.mxu0
        %v992 = vadd.f32 0.0, %v991
        %v993 = vpop.f32.mrf.mxu0
        %994 = vdwg.mxu0
        %995 = vmatpush.bf16.msra.mxu0 %v670
        %996 = vmatpush.bf16.msra.mxu0 %v666
        %997 = vmatpush.bf16.msra.mxu0 %v662
        %998 = vmatpush.bf16.msra.mxu0 %v658
        %999 = vmatpush.bf16.msra.mxu0 %v654
        %1000 = vmatpush.bf16.msra.mxu0 %v650
        %1001 = vmatpush.bf16.msra.mxu0 %v646
        %1002 = vmatpush.bf16.msra.mxu0 %v642
        %1003 = vmatmul.bf16.gmra.mxu0 %v948
        %v1004 = vpop.f32.mrf.mxu0
        %v1005 = vadd.f32 0.0, %v1004
        %v1006 = vpop.f32.mrf.mxu0
        %1007 = vdwg.mxu0
        %v1008 = vadd.f32 %v952, %v966
        %v1009 = vadd.f32 %v953, %v979
        %v1010 = vadd.f32 %v954, %v992
        %v1011 = vadd.f32 %v955, %v1005
        %v1012 = vxor.u32 %v1008, 2147483648
        %v1013 = vmul.f32 %v1012, 1.442695
        %v1014 = vpow.pop %v1013
        %v1015 = vadd.f32 %v1014, 1.0
        %v1016 = vrcp.pop %v1015
        %v1017 = vmul.f32 %v1015, %v1016
        %v1018 = vsub.f32 1.0, %v1017
        %v1019 = vmul.f32 %v1016, %v1018
        %v1020 = vadd.f32 %v1016, %v1019
        %vm1021 = vweird.f32 %v1015
        %vm1022 = vweird.f32 %v1016
        %vm1023 = vmor %vm1021, %vm1022
        %v1024 = vsel %vm1023, %v1016, %v1020
        %v1025 = vand.u32 2147483647, %v1015
        %vm1026 = vcmp.eq.f32.partialorder %v1025, 8.507059e+37
        %v1027 = vand.u32 %v1015, 2147483648
        %v1028 = vor.u32 1.1754944e-38, %v1027
        %v1029 = vsel %vm1026, %v1028, %v1024
        %v1030 = vmul.f32 1.0, %v1029
        %v1031 = vxor.u32 %v1009, 2147483648
        %v1032 = vmul.f32 %v1031, 1.442695
        %v1033 = vpow.pop %v1032
        %v1034 = vadd.f32 %v1033, 1.0
        %v1035 = vrcp.pop %v1034
        %v1036 = vmul.f32 %v1034, %v1035
        %v1037 = vsub.f32 1.0, %v1036
        %v1038 = vmul.f32 %v1035, %v1037
        %v1039 = vadd.f32 %v1035, %v1038
        %vm1040 = vweird.f32 %v1034
        %vm1041 = vweird.f32 %v1035
        %vm1042 = vmor %vm1040, %vm1041
        %v1043 = vsel %vm1042, %v1035, %v1039
        %v1044 = vand.u32 2147483647, %v1034
        %vm1045 = vcmp.eq.f32.partialorder %v1044, 8.507059e+37
        %v1046 = vand.u32 %v1034, 2147483648
        %v1047 = vor.u32 1.1754944e-38, %v1046
        %v1048 = vsel %vm1045, %v1047, %v1043
        %v1049 = vmul.f32 1.0, %v1048
        %v1050 = vtanh.pop %v1010
        %v1051 = vxor.u32 %v1011, 2147483648
        %v1052 = vmul.f32 %v1051, 1.442695
        %v1053 = vpow.pop %v1052
        %v1054 = vadd.f32 %v1053, 1.0
        %v1055 = vrcp.pop %v1054
        %v1056 = vmul.f32 %v1054, %v1055
        %v1057 = vsub.f32 1.0, %v1056
        %v1058 = vmul.f32 %v1055, %v1057
        %v1059 = vadd.f32 %v1055, %v1058
        %vm1060 = vweird.f32 %v1054
        %vm1061 = vweird.f32 %v1055
        %vm1062 = vmor %vm1060, %vm1061
        %v1063 = vsel %vm1062, %v1055, %v1059
        %v1064 = vand.u32 2147483647, %v1054
        %vm1065 = vcmp.eq.f32.partialorder %v1064, 8.507059e+37
        %v1066 = vand.u32 %v1054, 2147483648
        %v1067 = vor.u32 1.1754944e-38, %v1066
        %v1068 = vsel %vm1065, %v1067, %v1063
        %v1069 = vmul.f32 1.0, %v1068
        %v1070 = vmul.f32 %v1049, %v945
        %v1071 = vmul.f32 %v1030, %v1050
        %v1072 = vadd.f32 %v1070, %v1071
        %v1073 = vtanh.pop %v1072
        %v1074 = vmul.f32 %v1069, %v1073
        %v1075 = vpack.c.bf16 %v1074, %v1074
        %s1076 = scalar_lea.vmem [#allocation2], 8
        %1077 = vst [vmem:[%s1076] sm:$0xf] %v1075
        %s1078 = scalar_lea.vmem [#allocation3], 96
        %v1079 = vld [vmem:[%s1078] sm:$0xff]
        %v1080 = vld [vmem:[%s1078 + $0x8] sm:$0xff]
        %v1081 = vld [vmem:[%s1078 + $0x10] sm:$0xff]
        %v1082 = vld [vmem:[%s1078 + $0x18] sm:$0xff]
        %1083 = vmatpush.bf16.msra.mxu0 %v667
        %1084 = vmatpush.bf16.msra.mxu0 %v663
        %1085 = vmatpush.bf16.msra.mxu0 %v659
        %1086 = vmatpush.bf16.msra.mxu0 %v655
        %1087 = vmatpush.bf16.msra.mxu0 %v651
        %1088 = vmatpush.bf16.msra.mxu0 %v647
        %1089 = vmatpush.bf16.msra.mxu0 %v643
        %1090 = vmatpush.bf16.msra.mxu0 %v639
        %1091 = vmatmul.bf16.gmra.mxu0 %v1075
        %v1092 = vpop.f32.mrf.mxu0
        %v1093 = vadd.f32 0.0, %v1092
        %v1094 = vpop.f32.mrf.mxu0
        %1095 = vdwg.mxu0
        %1096 = vmatpush.bf16.msra.mxu0 %v668
        %1097 = vmatpush.bf16.msra.mxu0 %v664
        %1098 = vmatpush.bf16.msra.mxu0 %v660
        %1099 = vmatpush.bf16.msra.mxu0 %v656
        %1100 = vmatpush.bf16.msra.mxu0 %v652
        %1101 = vmatpush.bf16.msra.mxu0 %v648
        %1102 = vmatpush.bf16.msra.mxu0 %v644
        %1103 = vmatpush.bf16.msra.mxu0 %v640
        %1104 = vmatmul.bf16.gmra.mxu0 %v1075
        %v1105 = vpop.f32.mrf.mxu0
        %v1106 = vadd.f32 0.0, %v1105
        %v1107 = vpop.f32.mrf.mxu0
        %1108 = vdwg.mxu0
        %1109 = vmatpush.bf16.msra.mxu0 %v669
        %1110 = vmatpush.bf16.msra.mxu0 %v665
        %1111 = vmatpush.bf16.msra.mxu0 %v661
        %1112 = vmatpush.bf16.msra.mxu0 %v657
        %1113 = vmatpush.bf16.msra.mxu0 %v653
        %1114 = vmatpush.bf16.msra.mxu0 %v649
        %1115 = vmatpush.bf16.msra.mxu0 %v645
        %1116 = vmatpush.bf16.msra.mxu0 %v641
        %1117 = vmatmul.bf16.gmra.mxu0 %v1075
        %v1118 = vpop.f32.mrf.mxu0
        %v1119 = vadd.f32 0.0, %v1118
        %v1120 = vpop.f32.mrf.mxu0
        %1121 = vdwg.mxu0
        %1122 = vmatpush.bf16.msra.mxu0 %v670
        %1123 = vmatpush.bf16.msra.mxu0 %v666
        %1124 = vmatpush.bf16.msra.mxu0 %v662
        %1125 = vmatpush.bf16.msra.mxu0 %v658
        %1126 = vmatpush.bf16.msra.mxu0 %v654
        %1127 = vmatpush.bf16.msra.mxu0 %v650
        %1128 = vmatpush.bf16.msra.mxu0 %v646
        %1129 = vmatpush.bf16.msra.mxu0 %v642
        %1130 = vmatmul.bf16.gmra.mxu0 %v1075
        %v1131 = vpop.f32.mrf.mxu0
        %v1132 = vadd.f32 0.0, %v1131
        %v1133 = vpop.f32.mrf.mxu0
        %1134 = vdwg.mxu0
        %v1135 = vadd.f32 %v1079, %v1093
        %v1136 = vadd.f32 %v1080, %v1106
        %v1137 = vadd.f32 %v1081, %v1119
        %v1138 = vadd.f32 %v1082, %v1132
        %v1139 = vxor.u32 %v1135, 2147483648
        %v1140 = vmul.f32 %v1139, 1.442695
        %v1141 = vpow.pop %v1140
        %v1142 = vadd.f32 %v1141, 1.0
        %v1143 = vrcp.pop %v1142
        %v1144 = vmul.f32 %v1142, %v1143
        %v1145 = vsub.f32 1.0, %v1144
        %v1146 = vmul.f32 %v1143, %v1145
        %v1147 = vadd.f32 %v1143, %v1146
        %vm1148 = vweird.f32 %v1142
        %vm1149 = vweird.f32 %v1143
        %vm1150 = vmor %vm1148, %vm1149
        %v1151 = vsel %vm1150, %v1143, %v1147
        %v1152 = vand.u32 2147483647, %v1142
        %vm1153 = vcmp.eq.f32.partialorder %v1152, 8.507059e+37
        %v1154 = vand.u32 %v1142, 2147483648
        %v1155 = vor.u32 1.1754944e-38, %v1154
        %v1156 = vsel %vm1153, %v1155, %v1151
        %v1157 = vmul.f32 1.0, %v1156
        %v1158 = vxor.u32 %v1136, 2147483648
        %v1159 = vmul.f32 %v1158, 1.442695
        %v1160 = vpow.pop %v1159
        %v1161 = vadd.f32 %v1160, 1.0
        %v1162 = vrcp.pop %v1161
        %v1163 = vmul.f32 %v1161, %v1162
        %v1164 = vsub.f32 1.0, %v1163
        %v1165 = vmul.f32 %v1162, %v1164
        %v1166 = vadd.f32 %v1162, %v1165
        %vm1167 = vweird.f32 %v1161
        %vm1168 = vweird.f32 %v1162
        %vm1169 = vmor %vm1167, %vm1168
        %v1170 = vsel %vm1169, %v1162, %v1166
        %v1171 = vand.u32 2147483647, %v1161
        %vm1172 = vcmp.eq.f32.partialorder %v1171, 8.507059e+37
        %v1173 = vand.u32 %v1161, 2147483648
        %v1174 = vor.u32 1.1754944e-38, %v1173
        %v1175 = vsel %vm1172, %v1174, %v1170
        %v1176 = vmul.f32 1.0, %v1175
        %v1177 = vtanh.pop %v1137
        %v1178 = vxor.u32 %v1138, 2147483648
        %v1179 = vmul.f32 %v1178, 1.442695
        %v1180 = vpow.pop %v1179
        %v1181 = vadd.f32 %v1180, 1.0
        %v1182 = vrcp.pop %v1181
        %v1183 = vmul.f32 %v1181, %v1182
        %v1184 = vsub.f32 1.0, %v1183
        %v1185 = vmul.f32 %v1182, %v1184
        %v1186 = vadd.f32 %v1182, %v1185
        %vm1187 = vweird.f32 %v1181
        %vm1188 = vweird.f32 %v1182
        %vm1189 = vmor %vm1187, %vm1188
        %v1190 = vsel %vm1189, %v1182, %v1186
        %v1191 = vand.u32 2147483647, %v1181
        %vm1192 = vcmp.eq.f32.partialorder %v1191, 8.507059e+37
        %v1193 = vand.u32 %v1181, 2147483648
        %v1194 = vor.u32 1.1754944e-38, %v1193
        %v1195 = vsel %vm1192, %v1194, %v1190
        %v1196 = vmul.f32 1.0, %v1195
        %v1197 = vmul.f32 %v1176, %v1072
        %v1198 = vmul.f32 %v1157, %v1177
        %v1199 = vadd.f32 %v1197, %v1198
        %v1200 = vtanh.pop %v1199
        %v1201 = vmul.f32 %v1196, %v1200
        %v1202 = vpack.c.bf16 %v1201, %v1201
        %s1203 = scalar_lea.vmem [#allocation2], 12
        %1204 = vst [vmem:[%s1203] sm:$0xf] %v1202
        %s1205 = scalar_lea.vmem [#allocation3], 128
        %v1206 = vld [vmem:[%s1205] sm:$0xff]
        %v1207 = vld [vmem:[%s1205 + $0x8] sm:$0xff]
        %v1208 = vld [vmem:[%s1205 + $0x10] sm:$0xff]
        %v1209 = vld [vmem:[%s1205 + $0x18] sm:$0xff]
        %1210 = vmatpush.bf16.msra.mxu0 %v667
        %1211 = vmatpush.bf16.msra.mxu0 %v663
        %1212 = vmatpush.bf16.msra.mxu0 %v659
        %1213 = vmatpush.bf16.msra.mxu0 %v655
        %1214 = vmatpush.bf16.msra.mxu0 %v651
        %1215 = vmatpush.bf16.msra.mxu0 %v647
        %1216 = vmatpush.bf16.msra.mxu0 %v643
        %1217 = vmatpush.bf16.msra.mxu0 %v639
        %1218 = vmatmul.bf16.gmra.mxu0 %v1202
        %v1219 = vpop.f32.mrf.mxu0
        %v1220 = vadd.f32 0.0, %v1219
        %v1221 = vpop.f32.mrf.mxu0
        %1222 = vdwg.mxu0
        %1223 = vmatpush.bf16.msra.mxu0 %v668
        %1224 = vmatpush.bf16.msra.mxu0 %v664
        %1225 = vmatpush.bf16.msra.mxu0 %v660
        %1226 = vmatpush.bf16.msra.mxu0 %v656
        %1227 = vmatpush.bf16.msra.mxu0 %v652
        %1228 = vmatpush.bf16.msra.mxu0 %v648
        %1229 = vmatpush.bf16.msra.mxu0 %v644
        %1230 = vmatpush.bf16.msra.mxu0 %v640
        %1231 = vmatmul.bf16.gmra.mxu0 %v1202
        %v1232 = vpop.f32.mrf.mxu0
        %v1233 = vadd.f32 0.0, %v1232
        %v1234 = vpop.f32.mrf.mxu0
        %1235 = vdwg.mxu0
        %1236 = vmatpush.bf16.msra.mxu0 %v669
        %1237 = vmatpush.bf16.msra.mxu0 %v665
        %1238 = vmatpush.bf16.msra.mxu0 %v661
        %1239 = vmatpush.bf16.msra.mxu0 %v657
        %1240 = vmatpush.bf16.msra.mxu0 %v653
        %1241 = vmatpush.bf16.msra.mxu0 %v649
        %1242 = vmatpush.bf16.msra.mxu0 %v645
        %1243 = vmatpush.bf16.msra.mxu0 %v641
        %1244 = vmatmul.bf16.gmra.mxu0 %v1202
        %v1245 = vpop.f32.mrf.mxu0
        %v1246 = vadd.f32 0.0, %v1245
        %v1247 = vpop.f32.mrf.mxu0
        %1248 = vdwg.mxu0
        %1249 = vmatpush.bf16.msra.mxu0 %v670
        %1250 = vmatpush.bf16.msra.mxu0 %v666
        %1251 = vmatpush.bf16.msra.mxu0 %v662
        %1252 = vmatpush.bf16.msra.mxu0 %v658
        %1253 = vmatpush.bf16.msra.mxu0 %v654
        %1254 = vmatpush.bf16.msra.mxu0 %v650
        %1255 = vmatpush.bf16.msra.mxu0 %v646
        %1256 = vmatpush.bf16.msra.mxu0 %v642
        %1257 = vmatmul.bf16.gmra.mxu0 %v1202
        %v1258 = vpop.f32.mrf.mxu0
        %v1259 = vadd.f32 0.0, %v1258
        %v1260 = vpop.f32.mrf.mxu0
        %1261 = vdwg.mxu0
        %v1262 = vadd.f32 %v1206, %v1220
        %v1263 = vadd.f32 %v1207, %v1233
        %v1264 = vadd.f32 %v1208, %v1246
        %v1265 = vadd.f32 %v1209, %v1259
        %v1266 = vxor.u32 %v1262, 2147483648
        %v1267 = vmul.f32 %v1266, 1.442695
        %v1268 = vpow.pop %v1267
        %v1269 = vadd.f32 %v1268, 1.0
        %v1270 = vrcp.pop %v1269
        %v1271 = vmul.f32 %v1269, %v1270
        %v1272 = vsub.f32 1.0, %v1271
        %v1273 = vmul.f32 %v1270, %v1272
        %v1274 = vadd.f32 %v1270, %v1273
        %vm1275 = vweird.f32 %v1269
        %vm1276 = vweird.f32 %v1270
        %vm1277 = vmor %vm1275, %vm1276
        %v1278 = vsel %vm1277, %v1270, %v1274
        %v1279 = vand.u32 2147483647, %v1269
        %vm1280 = vcmp.eq.f32.partialorder %v1279, 8.507059e+37
        %v1281 = vand.u32 %v1269, 2147483648
        %v1282 = vor.u32 1.1754944e-38, %v1281
        %v1283 = vsel %vm1280, %v1282, %v1278
        %v1284 = vmul.f32 1.0, %v1283
        %v1285 = vxor.u32 %v1263, 2147483648
        %v1286 = vmul.f32 %v1285, 1.442695
        %v1287 = vpow.pop %v1286
        %v1288 = vadd.f32 %v1287, 1.0
        %v1289 = vrcp.pop %v1288
        %v1290 = vmul.f32 %v1288, %v1289
        %v1291 = vsub.f32 1.0, %v1290
        %v1292 = vmul.f32 %v1289, %v1291
        %v1293 = vadd.f32 %v1289, %v1292
        %vm1294 = vweird.f32 %v1288
        %vm1295 = vweird.f32 %v1289
        %vm1296 = vmor %vm1294, %vm1295
        %v1297 = vsel %vm1296, %v1289, %v1293
        %v1298 = vand.u32 2147483647, %v1288
        %vm1299 = vcmp.eq.f32.partialorder %v1298, 8.507059e+37
        %v1300 = vand.u32 %v1288, 2147483648
        %v1301 = vor.u32 1.1754944e-38, %v1300
        %v1302 = vsel %vm1299, %v1301, %v1297
        %v1303 = vmul.f32 1.0, %v1302
        %v1304 = vtanh.pop %v1264
        %v1305 = vxor.u32 %v1265, 2147483648
        %v1306 = vmul.f32 %v1305, 1.442695
        %v1307 = vpow.pop %v1306
        %v1308 = vadd.f32 %v1307, 1.0
        %v1309 = vrcp.pop %v1308
        %v1310 = vmul.f32 %v1308, %v1309
        %v1311 = vsub.f32 1.0, %v1310
        %v1312 = vmul.f32 %v1309, %v1311
        %v1313 = vadd.f32 %v1309, %v1312
        %vm1314 = vweird.f32 %v1308
        %vm1315 = vweird.f32 %v1309
        %vm1316 = vmor %vm1314, %vm1315
        %v1317 = vsel %vm1316, %v1309, %v1313
        %v1318 = vand.u32 2147483647, %v1308
        %vm1319 = vcmp.eq.f32.partialorder %v1318, 8.507059e+37
        %v1320 = vand.u32 %v1308, 2147483648
        %v1321 = vor.u32 1.1754944e-38, %v1320
        %v1322 = vsel %vm1319, %v1321, %v1317
        %v1323 = vmul.f32 1.0, %v1322
        %v1324 = vmul.f32 %v1303, %v1199
        %v1325 = vmul.f32 %v1284, %v1304
        %v1326 = vadd.f32 %v1324, %v1325
        %v1327 = vtanh.pop %v1326
        %v1328 = vmul.f32 %v1323, %v1327
        %v1329 = vpack.c.bf16 %v1328, %v1328
        %s1330 = scalar_lea.vmem [#allocation2], 16
        %1331 = vst [vmem:[%s1330] sm:$0xf] %v1329
        %s1332 = scalar_lea.vmem [#allocation3], 160
        %v1333 = vld [vmem:[%s1332] sm:$0xff]
        %v1334 = vld [vmem:[%s1332 + $0x8] sm:$0xff]
        %v1335 = vld [vmem:[%s1332 + $0x10] sm:$0xff]
        %v1336 = vld [vmem:[%s1332 + $0x18] sm:$0xff]
        %1337 = vmatpush.bf16.msra.mxu0 %v667
        %1338 = vmatpush.bf16.msra.mxu0 %v663
        %1339 = vmatpush.bf16.msra.mxu0 %v659
        %1340 = vmatpush.bf16.msra.mxu0 %v655
        %1341 = vmatpush.bf16.msra.mxu0 %v651
        %1342 = vmatpush.bf16.msra.mxu0 %v647
        %1343 = vmatpush.bf16.msra.mxu0 %v643
        %1344 = vmatpush.bf16.msra.mxu0 %v639
        %1345 = vmatmul.bf16.gmra.mxu0 %v1329
        %v1346 = vpop.f32.mrf.mxu0
        %v1347 = vadd.f32 0.0, %v1346
        %v1348 = vpop.f32.mrf.mxu0
        %1349 = vdwg.mxu0
        %1350 = vmatpush.bf16.msra.mxu0 %v668
        %1351 = vmatpush.bf16.msra.mxu0 %v664
        %1352 = vmatpush.bf16.msra.mxu0 %v660
        %1353 = vmatpush.bf16.msra.mxu0 %v656
        %1354 = vmatpush.bf16.msra.mxu0 %v652
        %1355 = vmatpush.bf16.msra.mxu0 %v648
        %1356 = vmatpush.bf16.msra.mxu0 %v644
        %1357 = vmatpush.bf16.msra.mxu0 %v640
        %1358 = vmatmul.bf16.gmra.mxu0 %v1329
        %v1359 = vpop.f32.mrf.mxu0
        %v1360 = vadd.f32 0.0, %v1359
        %v1361 = vpop.f32.mrf.mxu0
        %1362 = vdwg.mxu0
        %1363 = vmatpush.bf16.msra.mxu0 %v669
        %1364 = vmatpush.bf16.msra.mxu0 %v665
        %1365 = vmatpush.bf16.msra.mxu0 %v661
        %1366 = vmatpush.bf16.msra.mxu0 %v657
        %1367 = vmatpush.bf16.msra.mxu0 %v653
        %1368 = vmatpush.bf16.msra.mxu0 %v649
        %1369 = vmatpush.bf16.msra.mxu0 %v645
        %1370 = vmatpush.bf16.msra.mxu0 %v641
        %1371 = vmatmul.bf16.gmra.mxu0 %v1329
        %v1372 = vpop.f32.mrf.mxu0
        %v1373 = vadd.f32 0.0, %v1372
        %v1374 = vpop.f32.mrf.mxu0
        %1375 = vdwg.mxu0
        %1376 = vmatpush.bf16.msra.mxu0 %v670
        %1377 = vmatpush.bf16.msra.mxu0 %v666
        %1378 = vmatpush.bf16.msra.mxu0 %v662
        %1379 = vmatpush.bf16.msra.mxu0 %v658
        %1380 = vmatpush.bf16.msra.mxu0 %v654
        %1381 = vmatpush.bf16.msra.mxu0 %v650
        %1382 = vmatpush.bf16.msra.mxu0 %v646
        %1383 = vmatpush.bf16.msra.mxu0 %v642
        %1384 = vmatmul.bf16.gmra.mxu0 %v1329
        %v1385 = vpop.f32.mrf.mxu0
        %v1386 = vadd.f32 0.0, %v1385
        %v1387 = vpop.f32.mrf.mxu0
        %1388 = vdwg.mxu0
        %v1389 = vadd.f32 %v1333, %v1347
        %v1390 = vadd.f32 %v1334, %v1360
        %v1391 = vadd.f32 %v1335, %v1373
        %v1392 = vadd.f32 %v1336, %v1386
        %v1393 = vxor.u32 %v1389, 2147483648
        %v1394 = vmul.f32 %v1393, 1.442695
        %v1395 = vpow.pop %v1394
        %v1396 = vadd.f32 %v1395, 1.0
        %v1397 = vrcp.pop %v1396
        %v1398 = vmul.f32 %v1396, %v1397
        %v1399 = vsub.f32 1.0, %v1398
        %v1400 = vmul.f32 %v1397, %v1399
        %v1401 = vadd.f32 %v1397, %v1400
        %vm1402 = vweird.f32 %v1396
        %vm1403 = vweird.f32 %v1397
        %vm1404 = vmor %vm1402, %vm1403
        %v1405 = vsel %vm1404, %v1397, %v1401
        %v1406 = vand.u32 2147483647, %v1396
        %vm1407 = vcmp.eq.f32.partialorder %v1406, 8.507059e+37
        %v1408 = vand.u32 %v1396, 2147483648
        %v1409 = vor.u32 1.1754944e-38, %v1408
        %v1410 = vsel %vm1407, %v1409, %v1405
        %v1411 = vmul.f32 1.0, %v1410
        %v1412 = vxor.u32 %v1390, 2147483648
        %v1413 = vmul.f32 %v1412, 1.442695
        %v1414 = vpow.pop %v1413
        %v1415 = vadd.f32 %v1414, 1.0
        %v1416 = vrcp.pop %v1415
        %v1417 = vmul.f32 %v1415, %v1416
        %v1418 = vsub.f32 1.0, %v1417
        %v1419 = vmul.f32 %v1416, %v1418
        %v1420 = vadd.f32 %v1416, %v1419
        %vm1421 = vweird.f32 %v1415
        %vm1422 = vweird.f32 %v1416
        %vm1423 = vmor %vm1421, %vm1422
        %v1424 = vsel %vm1423, %v1416, %v1420
        %v1425 = vand.u32 2147483647, %v1415
        %vm1426 = vcmp.eq.f32.partialorder %v1425, 8.507059e+37
        %v1427 = vand.u32 %v1415, 2147483648
        %v1428 = vor.u32 1.1754944e-38, %v1427
        %v1429 = vsel %vm1426, %v1428, %v1424
        %v1430 = vmul.f32 1.0, %v1429
        %v1431 = vtanh.pop %v1391
        %v1432 = vxor.u32 %v1392, 2147483648
        %v1433 = vmul.f32 %v1432, 1.442695
        %v1434 = vpow.pop %v1433
        %v1435 = vadd.f32 %v1434, 1.0
        %v1436 = vrcp.pop %v1435
        %v1437 = vmul.f32 %v1435, %v1436
        %v1438 = vsub.f32 1.0, %v1437
        %v1439 = vmul.f32 %v1436, %v1438
        %v1440 = vadd.f32 %v1436, %v1439
        %vm1441 = vweird.f32 %v1435
        %vm1442 = vweird.f32 %v1436
        %vm1443 = vmor %vm1441, %vm1442
        %v1444 = vsel %vm1443, %v1436, %v1440
        %v1445 = vand.u32 2147483647, %v1435
        %vm1446 = vcmp.eq.f32.partialorder %v1445, 8.507059e+37
        %v1447 = vand.u32 %v1435, 2147483648
        %v1448 = vor.u32 1.1754944e-38, %v1447
        %v1449 = vsel %vm1446, %v1448, %v1444
        %v1450 = vmul.f32 1.0, %v1449
        %v1451 = vmul.f32 %v1430, %v1326
        %v1452 = vmul.f32 %v1411, %v1431
        %v1453 = vadd.f32 %v1451, %v1452
        %v1454 = vtanh.pop %v1453
        %v1455 = vmul.f32 %v1450, %v1454
        %v1456 = vpack.c.bf16 %v1455, %v1455
        %s1457 = scalar_lea.vmem [#allocation2], 20
        %1458 = vst [vmem:[%s1457] sm:$0xf] %v1456
        %v1459 = vld [vmem:[#allocation2] sm:$0xf]
        %v1460 = vld [vmem:[#allocation2 + $0x4] sm:$0xf]
        %v1461 = vld [vmem:[#allocation2 + $0x8] sm:$0xf]
        %v1462 = vld [vmem:[#allocation2 + $0xc] sm:$0xf]
        %v1463 = vld [vmem:[#allocation2 + $0x10] sm:$0xf]
        %v1464 = vld [vmem:[#allocation2 + $0x14] sm:$0xf]
        %v1465 = vld [vmem:[#allocation5] sm:$0xff]
        %v1466 = vld [vmem:[#allocation5 + $0x8] sm:$0xff]
        %v1467 = vld [vmem:[#allocation5 + $0x10] sm:$0xff]
        %v1468 = vld [vmem:[#allocation5 + $0x18] sm:$0xff]
        %v1469 = vld [vmem:[#allocation5 + $0x20] sm:$0xff]
        %v1470 = vld [vmem:[#allocation5 + $0x28] sm:$0xff]
        %v1471 = vld [vmem:[#allocation5 + $0x30] sm:$0xff]
        %v1472 = vld [vmem:[#allocation5 + $0x38] sm:$0xff]
        %v1473 = vld [vmem:[#allocation5 + $0x40] sm:$0xff]
        %v1474 = vld [vmem:[#allocation5 + $0x48] sm:$0xff]
        %v1475 = vld [vmem:[#allocation5 + $0x50] sm:$0xff]
        %v1476 = vld [vmem:[#allocation5 + $0x58] sm:$0xff]
        %v1477 = vld [vmem:[#allocation5 + $0x60] sm:$0xff]
        %v1478 = vld [vmem:[#allocation5 + $0x68] sm:$0xff]
        %v1479 = vld [vmem:[#allocation5 + $0x70] sm:$0xff]
        %v1480 = vld [vmem:[#allocation5 + $0x78] sm:$0xff]
        %v1481 = vld [vmem:[#allocation5 + $0x80] sm:$0xff]
        %v1482 = vld [vmem:[#allocation5 + $0x88] sm:$0xff]
        %v1483 = vld [vmem:[#allocation5 + $0x90] sm:$0xff]
        %v1484 = vld [vmem:[#allocation5 + $0x98] sm:$0xff]
        %v1485 = vld [vmem:[#allocation5 + $0xa0] sm:$0xff]
        %v1486 = vld [vmem:[#allocation5 + $0xa8] sm:$0xff]
        %v1487 = vld [vmem:[#allocation5 + $0xb0] sm:$0xff]
        %v1488 = vld [vmem:[#allocation5 + $0xb8] sm:$0xff]
        %v1489 = vld [vmem:[#allocation5 + $0xc0] sm:$0xff]
        %v1490 = vld [vmem:[#allocation5 + $0xc8] sm:$0xff]
        %v1491 = vld [vmem:[#allocation5 + $0xd0] sm:$0xff]
        %v1492 = vld [vmem:[#allocation5 + $0xd8] sm:$0xff]
        %v1493 = vld [vmem:[#allocation5 + $0xe0] sm:$0xff]
        %v1494 = vld [vmem:[#allocation5 + $0xe8] sm:$0xff]
        %v1495 = vld [vmem:[#allocation5 + $0xf0] sm:$0xff]
        %v1496 = vld [vmem:[#allocation5 + $0xf8] sm:$0xff]
        %s1497 = scalar_lea.vmem %s4, 4
        %v1498 = vld [vmem:[%s1497] sm:$0xf]
        %v1500 = vperm.slane %v1498, 0
        %v1501 = vperm.slane %v1498, 1
        %v1502 = vperm.slane %v1498, 2
        %v1503 = vperm.slane %v1498, 3
        %v1514 = vunpack.c.l.b16 %v1459
        %v1515 = vunpack.c.l.b16 %v1460
        %v1516 = vunpack.c.l.b16 %v1461
        %v1517 = vunpack.c.l.b16 %v1462
        %v1518 = vunpack.c.l.b16 %v1463
        %v1519 = vunpack.c.l.b16 %v1464
        %v1520 = vpack.c.b16 %v1515, %v1514
        %v1521 = vpack.c.b16 %v1517, %v1516
        %v1522 = vpack.c.b16 %v1519, %v1518
        %v1558 = vunpack.c.l.b16 %v1465
        %v1559 = vunpack.c.h.b16 %v1465
        %v1560 = vunpack.c.l.b16 %v1466
        %v1561 = vunpack.c.h.b16 %v1466
        %v1562 = vunpack.c.l.b16 %v1467
        %v1563 = vunpack.c.h.b16 %v1467
        %v1564 = vunpack.c.l.b16 %v1468
        %v1565 = vunpack.c.h.b16 %v1468
        %v1566 = vunpack.c.l.b16 %v1469
        %v1567 = vunpack.c.h.b16 %v1469
        %v1568 = vunpack.c.l.b16 %v1470
        %v1569 = vunpack.c.h.b16 %v1470
        %v1570 = vunpack.c.l.b16 %v1471
        %v1571 = vunpack.c.h.b16 %v1471
        %v1572 = vunpack.c.l.b16 %v1472
        %v1573 = vunpack.c.h.b16 %v1472
        %v1574 = vunpack.c.l.b16 %v1473
        %v1575 = vunpack.c.h.b16 %v1473
        %v1576 = vunpack.c.l.b16 %v1474
        %v1577 = vunpack.c.h.b16 %v1474
        %v1578 = vunpack.c.l.b16 %v1475
        %v1579 = vunpack.c.h.b16 %v1475
        %v1580 = vunpack.c.l.b16 %v1476
        %v1581 = vunpack.c.h.b16 %v1476
        %v1582 = vunpack.c.l.b16 %v1477
        %v1583 = vunpack.c.h.b16 %v1477
        %v1584 = vunpack.c.l.b16 %v1478
        %v1585 = vunpack.c.h.b16 %v1478
        %v1586 = vunpack.c.l.b16 %v1479
        %v1587 = vunpack.c.h.b16 %v1479
        %v1588 = vunpack.c.l.b16 %v1480
        %v1589 = vunpack.c.h.b16 %v1480
        %v1590 = vunpack.c.l.b16 %v1481
        %v1591 = vunpack.c.h.b16 %v1481
        %v1592 = vunpack.c.l.b16 %v1482
        %v1593 = vunpack.c.h.b16 %v1482
        %v1594 = vunpack.c.l.b16 %v1483
        %v1595 = vunpack.c.h.b16 %v1483
        %v1596 = vunpack.c.l.b16 %v1484
        %v1597 = vunpack.c.h.b16 %v1484
        %v1598 = vunpack.c.l.b16 %v1485
        %v1599 = vunpack.c.h.b16 %v1485
        %v1600 = vunpack.c.l.b16 %v1486
        %v1601 = vunpack.c.h.b16 %v1486
        %v1602 = vunpack.c.l.b16 %v1487
        %v1603 = vunpack.c.h.b16 %v1487
        %v1604 = vunpack.c.l.b16 %v1488
        %v1605 = vunpack.c.h.b16 %v1488
        %v1606 = vunpack.c.l.b16 %v1489
        %v1607 = vunpack.c.h.b16 %v1489
        %v1608 = vunpack.c.l.b16 %v1490
        %v1609 = vunpack.c.h.b16 %v1490
        %v1610 = vunpack.c.l.b16 %v1491
        %v1611 = vunpack.c.h.b16 %v1491
        %v1612 = vunpack.c.l.b16 %v1492
        %v1613 = vunpack.c.h.b16 %v1492
        %v1614 = vunpack.c.l.b16 %v1493
        %v1615 = vunpack.c.h.b16 %v1493
        %v1616 = vunpack.c.l.b16 %v1494
        %v1617 = vunpack.c.h.b16 %v1494
        %v1618 = vunpack.c.l.b16 %v1495
        %v1619 = vunpack.c.h.b16 %v1495
        %v1620 = vunpack.c.l.b16 %v1496
        %v1621 = vunpack.c.h.b16 %v1496
        %v1622 = vpack.c.b16 %v1562, %v1558
        %v1623 = vpack.c.b16 %v1563, %v1559
        %v1624 = vpack.c.b16 %v1564, %v1560
        %v1625 = vpack.c.b16 %v1565, %v1561
        %v1626 = vpack.c.b16 %v1570, %v1566
        %v1627 = vpack.c.b16 %v1571, %v1567
        %v1628 = vpack.c.b16 %v1572, %v1568
        %v1629 = vpack.c.b16 %v1573, %v1569
        %v1630 = vpack.c.b16 %v1578, %v1574
        %v1631 = vpack.c.b16 %v1579, %v1575
        %v1632 = vpack.c.b16 %v1580, %v1576
        %v1633 = vpack.c.b16 %v1581, %v1577
        %v1634 = vpack.c.b16 %v1586, %v1582
        %v1635 = vpack.c.b16 %v1587, %v1583
        %v1636 = vpack.c.b16 %v1588, %v1584
        %v1637 = vpack.c.b16 %v1589, %v1585
        %v1638 = vpack.c.b16 %v1594, %v1590
        %v1639 = vpack.c.b16 %v1595, %v1591
        %v1640 = vpack.c.b16 %v1596, %v1592
        %v1641 = vpack.c.b16 %v1597, %v1593
        %v1642 = vpack.c.b16 %v1602, %v1598
        %v1643 = vpack.c.b16 %v1603, %v1599
        %v1644 = vpack.c.b16 %v1604, %v1600
        %v1645 = vpack.c.b16 %v1605, %v1601
        %v1646 = vpack.c.b16 %v1610, %v1606
        %v1647 = vpack.c.b16 %v1611, %v1607
        %v1648 = vpack.c.b16 %v1612, %v1608
        %v1649 = vpack.c.b16 %v1613, %v1609
        %v1650 = vpack.c.b16 %v1618, %v1614
        %v1651 = vpack.c.b16 %v1619, %v1615
        %v1652 = vpack.c.b16 %v1620, %v1616
        %v1653 = vpack.c.b16 %v1621, %v1617
        %1686 = vmatpush.bf16.msra.mxu0 %v1650
        %1687 = vmatpush.bf16.msra.mxu0 %v1646
        %1688 = vmatpush.bf16.msra.mxu0 %v1642
        %1689 = vmatpush.bf16.msra.mxu0 %v1638
        %1690 = vmatpush.bf16.msra.mxu0 %v1634
        %1691 = vmatpush.bf16.msra.mxu0 %v1630
        %1692 = vmatpush.bf16.msra.mxu0 %v1626
        %1693 = vmatpush.bf16.msra.mxu0 %v1622
        %1694 = vmatmul.bf16.gmra.mxu0 %v1520
        %v1695 = vpop.f32.mrf.mxu0
        %v1696 = vadd.f32 %v1500, %v1695
        %v1697 = vpop.f32.mrf.mxu0
        %v1698 = vadd.f32 %v1500, %v1697
        %1699 = vmatmul.bf16.gmra.mxu0 %v1521
        %v1700 = vpop.f32.mrf.mxu0
        %v1701 = vadd.f32 %v1500, %v1700
        %v1702 = vpop.f32.mrf.mxu0
        %v1703 = vadd.f32 %v1500, %v1702
        %1704 = vmatmul.bf16.gmra.mxu0 %v1522
        %v1705 = vpop.f32.mrf.mxu0
        %v1706 = vadd.f32 %v1500, %v1705
        %v1707 = vpop.f32.mrf.mxu0
        %v1708 = vadd.f32 %v1500, %v1707
        %1709 = vdwg.mxu0
        %1710 = vmatpush.bf16.msra.mxu0 %v1651
        %1711 = vmatpush.bf16.msra.mxu0 %v1647
        %1712 = vmatpush.bf16.msra.mxu0 %v1643
        %1713 = vmatpush.bf16.msra.mxu0 %v1639
        %1714 = vmatpush.bf16.msra.mxu0 %v1635
        %1715 = vmatpush.bf16.msra.mxu0 %v1631
        %1716 = vmatpush.bf16.msra.mxu0 %v1627
        %1717 = vmatpush.bf16.msra.mxu0 %v1623
        %1718 = vmatmul.bf16.gmra.mxu0 %v1520
        %v1719 = vpop.f32.mrf.mxu0
        %v1720 = vadd.f32 %v1501, %v1719
        %v1721 = vpop.f32.mrf.mxu0
        %v1722 = vadd.f32 %v1501, %v1721
        %1723 = vmatmul.bf16.gmra.mxu0 %v1521
        %v1724 = vpop.f32.mrf.mxu0
        %v1725 = vadd.f32 %v1501, %v1724
        %v1726 = vpop.f32.mrf.mxu0
        %v1727 = vadd.f32 %v1501, %v1726
        %1728 = vmatmul.bf16.gmra.mxu0 %v1522
        %v1729 = vpop.f32.mrf.mxu0
        %v1730 = vadd.f32 %v1501, %v1729
        %v1731 = vpop.f32.mrf.mxu0
        %v1732 = vadd.f32 %v1501, %v1731
        %1733 = vdwg.mxu0
        %1734 = vmatpush.bf16.msra.mxu0 %v1652
        %1735 = vmatpush.bf16.msra.mxu0 %v1648
        %1736 = vmatpush.bf16.msra.mxu0 %v1644
        %1737 = vmatpush.bf16.msra.mxu0 %v1640
        %1738 = vmatpush.bf16.msra.mxu0 %v1636
        %1739 = vmatpush.bf16.msra.mxu0 %v1632
        %1740 = vmatpush.bf16.msra.mxu0 %v1628
        %1741 = vmatpush.bf16.msra.mxu0 %v1624
        %1742 = vmatmul.bf16.gmra.mxu0 %v1520
        %v1743 = vpop.f32.mrf.mxu0
        %v1744 = vadd.f32 %v1502, %v1743
        %v1745 = vpop.f32.mrf.mxu0
        %v1746 = vadd.f32 %v1502, %v1745
        %1747 = vmatmul.bf16.gmra.mxu0 %v1521
        %v1748 = vpop.f32.mrf.mxu0
        %v1749 = vadd.f32 %v1502, %v1748
        %v1750 = vpop.f32.mrf.mxu0
        %v1751 = vadd.f32 %v1502, %v1750
        %1752 = vmatmul.bf16.gmra.mxu0 %v1522
        %v1753 = vpop.f32.mrf.mxu0
        %v1754 = vadd.f32 %v1502, %v1753
        %v1755 = vpop.f32.mrf.mxu0
        %v1756 = vadd.f32 %v1502, %v1755
        %1757 = vdwg.mxu0
        %1758 = vmatpush.bf16.msra.mxu0 %v1653
        %1759 = vmatpush.bf16.msra.mxu0 %v1649
        %1760 = vmatpush.bf16.msra.mxu0 %v1645
        %1761 = vmatpush.bf16.msra.mxu0 %v1641
        %1762 = vmatpush.bf16.msra.mxu0 %v1637
        %1763 = vmatpush.bf16.msra.mxu0 %v1633
        %1764 = vmatpush.bf16.msra.mxu0 %v1629
        %1765 = vmatpush.bf16.msra.mxu0 %v1625
        %1766 = vmatmul.bf16.gmra.mxu0 %v1520
        %v1767 = vpop.f32.mrf.mxu0
        %v1768 = vadd.f32 %v1503, %v1767
        %v1769 = vpop.f32.mrf.mxu0
        %v1770 = vadd.f32 %v1503, %v1769
        %1771 = vmatmul.bf16.gmra.mxu0 %v1521
        %v1772 = vpop.f32.mrf.mxu0
        %v1773 = vadd.f32 %v1503, %v1772
        %v1774 = vpop.f32.mrf.mxu0
        %v1775 = vadd.f32 %v1503, %v1774
        %1776 = vmatmul.bf16.gmra.mxu0 %v1522
        %v1777 = vpop.f32.mrf.mxu0
        %v1778 = vadd.f32 %v1503, %v1777
        %v1779 = vpop.f32.mrf.mxu0
        %v1780 = vadd.f32 %v1503, %v1779
        %1781 = vdwg.mxu0
        %1782 = vst [vmem:[#allocation3] sm:$0xff] %v1696
        %1783 = vst [vmem:[#allocation3 + $0x8] sm:$0xff] %v1720
        %1784 = vst [vmem:[#allocation3 + $0x10] sm:$0xff] %v1744
        %1785 = vst [vmem:[#allocation3 + $0x18] sm:$0xff] %v1768
        %1786 = vst [vmem:[#allocation3 + $0x20] sm:$0xff] %v1698
        %1787 = vst [vmem:[#allocation3 + $0x28] sm:$0xff] %v1722
        %1788 = vst [vmem:[#allocation3 + $0x30] sm:$0xff] %v1746
        %1789 = vst [vmem:[#allocation3 + $0x38] sm:$0xff] %v1770
        %1790 = vst [vmem:[#allocation3 + $0x40] sm:$0xff] %v1701
        %1791 = vst [vmem:[#allocation3 + $0x48] sm:$0xff] %v1725
        %1792 = vst [vmem:[#allocation3 + $0x50] sm:$0xff] %v1749
        %1793 = vst [vmem:[#allocation3 + $0x58] sm:$0xff] %v1773
        %1794 = vst [vmem:[#allocation3 + $0x60] sm:$0xff] %v1703
        %1795 = vst [vmem:[#allocation3 + $0x68] sm:$0xff] %v1727
        %1796 = vst [vmem:[#allocation3 + $0x70] sm:$0xff] %v1751
        %1797 = vst [vmem:[#allocation3 + $0x78] sm:$0xff] %v1775
        %1798 = vst [vmem:[#allocation3 + $0x80] sm:$0xff] %v1706
        %1799 = vst [vmem:[#allocation3 + $0x88] sm:$0xff] %v1730
        %1800 = vst [vmem:[#allocation3 + $0x90] sm:$0xff] %v1754
        %1801 = vst [vmem:[#allocation3 + $0x98] sm:$0xff] %v1778
        %1802 = vst [vmem:[#allocation3 + $0xa0] sm:$0xff] %v1708
        %1803 = vst [vmem:[#allocation3 + $0xa8] sm:$0xff] %v1732
        %1804 = vst [vmem:[#allocation3 + $0xb0] sm:$0xff] %v1756
        %1805 = vst [vmem:[#allocation3 + $0xb8] sm:$0xff] %v1780
        %s1806 = scalar_lea.vmem [#allocation8], 256
        %v1807 = vld [vmem:[%s1806] sm:$0xff]
        %v1808 = vld [vmem:[%s1806 + $0x8] sm:$0xff]
        %v1809 = vld [vmem:[%s1806 + $0x10] sm:$0xff]
        %v1810 = vld [vmem:[%s1806 + $0x18] sm:$0xff]
        %v1811 = vld [vmem:[%s1806 + $0x20] sm:$0xff]
        %v1812 = vld [vmem:[%s1806 + $0x28] sm:$0xff]
        %v1813 = vld [vmem:[%s1806 + $0x30] sm:$0xff]
        %v1814 = vld [vmem:[%s1806 + $0x38] sm:$0xff]
        %v1815 = vld [vmem:[%s1806 + $0x40] sm:$0xff]
        %v1816 = vld [vmem:[%s1806 + $0x48] sm:$0xff]
        %v1817 = vld [vmem:[%s1806 + $0x50] sm:$0xff]
        %v1818 = vld [vmem:[%s1806 + $0x58] sm:$0xff]
        %v1819 = vld [vmem:[%s1806 + $0x60] sm:$0xff]
        %v1820 = vld [vmem:[%s1806 + $0x68] sm:$0xff]
        %v1821 = vld [vmem:[%s1806 + $0x70] sm:$0xff]
        %v1822 = vld [vmem:[%s1806 + $0x78] sm:$0xff]
        %v1823 = vld [vmem:[%s1806 + $0x80] sm:$0xff]
        %v1824 = vld [vmem:[%s1806 + $0x88] sm:$0xff]
        %v1825 = vld [vmem:[%s1806 + $0x90] sm:$0xff]
        %v1826 = vld [vmem:[%s1806 + $0x98] sm:$0xff]
        %v1827 = vld [vmem:[%s1806 + $0xa0] sm:$0xff]
        %v1828 = vld [vmem:[%s1806 + $0xa8] sm:$0xff]
        %v1829 = vld [vmem:[%s1806 + $0xb0] sm:$0xff]
        %v1830 = vld [vmem:[%s1806 + $0xb8] sm:$0xff]
        %v1831 = vld [vmem:[%s1806 + $0xc0] sm:$0xff]
        %v1832 = vld [vmem:[%s1806 + $0xc8] sm:$0xff]
        %v1833 = vld [vmem:[%s1806 + $0xd0] sm:$0xff]
        %v1834 = vld [vmem:[%s1806 + $0xd8] sm:$0xff]
        %v1835 = vld [vmem:[%s1806 + $0xe0] sm:$0xff]
        %v1836 = vld [vmem:[%s1806 + $0xe8] sm:$0xff]
        %v1837 = vld [vmem:[%s1806 + $0xf0] sm:$0xff]
        %v1838 = vld [vmem:[%s1806 + $0xf8] sm:$0xff]
        %v1839 = vld [vmem:[#allocation3] sm:$0xff]
        %v1840 = vld [vmem:[#allocation3 + $0x8] sm:$0xff]
        %v1841 = vld [vmem:[#allocation3 + $0x10] sm:$0xff]
        %v1842 = vld [vmem:[#allocation3 + $0x18] sm:$0xff]
        %v1875 = vunpack.c.l.b16 %v1807
        %v1876 = vunpack.c.h.b16 %v1807
        %v1877 = vunpack.c.l.b16 %v1808
        %v1878 = vunpack.c.h.b16 %v1808
        %v1879 = vunpack.c.l.b16 %v1809
        %v1880 = vunpack.c.h.b16 %v1809
        %v1881 = vunpack.c.l.b16 %v1810
        %v1882 = vunpack.c.h.b16 %v1810
        %v1883 = vunpack.c.l.b16 %v1811
        %v1884 = vunpack.c.h.b16 %v1811
        %v1885 = vunpack.c.l.b16 %v1812
        %v1886 = vunpack.c.h.b16 %v1812
        %v1887 = vunpack.c.l.b16 %v1813
        %v1888 = vunpack.c.h.b16 %v1813
        %v1889 = vunpack.c.l.b16 %v1814
        %v1890 = vunpack.c.h.b16 %v1814
        %v1891 = vunpack.c.l.b16 %v1815
        %v1892 = vunpack.c.h.b16 %v1815
        %v1893 = vunpack.c.l.b16 %v1816
        %v1894 = vunpack.c.h.b16 %v1816
        %v1895 = vunpack.c.l.b16 %v1817
        %v1896 = vunpack.c.h.b16 %v1817
        %v1897 = vunpack.c.l.b16 %v1818
        %v1898 = vunpack.c.h.b16 %v1818
        %v1899 = vunpack.c.l.b16 %v1819
        %v1900 = vunpack.c.h.b16 %v1819
        %v1901 = vunpack.c.l.b16 %v1820
        %v1902 = vunpack.c.h.b16 %v1820
        %v1903 = vunpack.c.l.b16 %v1821
        %v1904 = vunpack.c.h.b16 %v1821
        %v1905 = vunpack.c.l.b16 %v1822
        %v1906 = vunpack.c.h.b16 %v1822
        %v1907 = vunpack.c.l.b16 %v1823
        %v1908 = vunpack.c.h.b16 %v1823
        %v1909 = vunpack.c.l.b16 %v1824
        %v1910 = vunpack.c.h.b16 %v1824
        %v1911 = vunpack.c.l.b16 %v1825
        %v1912 = vunpack.c.h.b16 %v1825
        %v1913 = vunpack.c.l.b16 %v1826
        %v1914 = vunpack.c.h.b16 %v1826
        %v1915 = vunpack.c.l.b16 %v1827
        %v1916 = vunpack.c.h.b16 %v1827
        %v1917 = vunpack.c.l.b16 %v1828
        %v1918 = vunpack.c.h.b16 %v1828
        %v1919 = vunpack.c.l.b16 %v1829
        %v1920 = vunpack.c.h.b16 %v1829
        %v1921 = vunpack.c.l.b16 %v1830
        %v1922 = vunpack.c.h.b16 %v1830
        %v1923 = vunpack.c.l.b16 %v1831
        %v1924 = vunpack.c.h.b16 %v1831
        %v1925 = vunpack.c.l.b16 %v1832
        %v1926 = vunpack.c.h.b16 %v1832
        %v1927 = vunpack.c.l.b16 %v1833
        %v1928 = vunpack.c.h.b16 %v1833
        %v1929 = vunpack.c.l.b16 %v1834
        %v1930 = vunpack.c.h.b16 %v1834
        %v1931 = vunpack.c.l.b16 %v1835
        %v1932 = vunpack.c.h.b16 %v1835
        %v1933 = vunpack.c.l.b16 %v1836
        %v1934 = vunpack.c.h.b16 %v1836
        %v1935 = vunpack.c.l.b16 %v1837
        %v1936 = vunpack.c.h.b16 %v1837
        %v1937 = vunpack.c.l.b16 %v1838
        %v1938 = vunpack.c.h.b16 %v1838
        %v1939 = vpack.c.b16 %v1879, %v1875
        %v1940 = vpack.c.b16 %v1880, %v1876
        %v1941 = vpack.c.b16 %v1881, %v1877
        %v1942 = vpack.c.b16 %v1882, %v1878
        %v1943 = vpack.c.b16 %v1887, %v1883
        %v1944 = vpack.c.b16 %v1888, %v1884
        %v1945 = vpack.c.b16 %v1889, %v1885
        %v1946 = vpack.c.b16 %v1890, %v1886
        %v1947 = vpack.c.b16 %v1895, %v1891
        %v1948 = vpack.c.b16 %v1896, %v1892
        %v1949 = vpack.c.b16 %v1897, %v1893
        %v1950 = vpack.c.b16 %v1898, %v1894
        %v1951 = vpack.c.b16 %v1903, %v1899
        %v1952 = vpack.c.b16 %v1904, %v1900
        %v1953 = vpack.c.b16 %v1905, %v1901
        %v1954 = vpack.c.b16 %v1906, %v1902
        %v1955 = vpack.c.b16 %v1911, %v1907
        %v1956 = vpack.c.b16 %v1912, %v1908
        %v1957 = vpack.c.b16 %v1913, %v1909
        %v1958 = vpack.c.b16 %v1914, %v1910
        %v1959 = vpack.c.b16 %v1919, %v1915
        %v1960 = vpack.c.b16 %v1920, %v1916
        %v1961 = vpack.c.b16 %v1921, %v1917
        %v1962 = vpack.c.b16 %v1922, %v1918
        %v1963 = vpack.c.b16 %v1927, %v1923
        %v1964 = vpack.c.b16 %v1928, %v1924
        %v1965 = vpack.c.b16 %v1929, %v1925
        %v1966 = vpack.c.b16 %v1930, %v1926
        %v1967 = vpack.c.b16 %v1935, %v1931
        %v1968 = vpack.c.b16 %v1936, %v1932
        %v1969 = vpack.c.b16 %v1937, %v1933
        %v1970 = vpack.c.b16 %v1938, %v1934
        %2003 = vmatpush.bf16.msra.mxu0 %v1967
        %2004 = vmatpush.bf16.msra.mxu0 %v1963
        %2005 = vmatpush.bf16.msra.mxu0 %v1959
        %2006 = vmatpush.bf16.msra.mxu0 %v1955
        %2007 = vmatpush.bf16.msra.mxu0 %v1951
        %2008 = vmatpush.bf16.msra.mxu0 %v1947
        %2009 = vmatpush.bf16.msra.mxu0 %v1943
        %2010 = vmatpush.bf16.msra.mxu0 %v1939
        %2011 = vmatmul.bf16.gmra.mxu0 0
        %v2012 = vpop.f32.mrf.mxu0
        %v2013 = vadd.f32 0.0, %v2012
        %v2014 = vpop.f32.mrf.mxu0
        %2015 = vdwg.mxu0
        %2016 = vmatpush.bf16.msra.mxu0 %v1968
        %2017 = vmatpush.bf16.msra.mxu0 %v1964
        %2018 = vmatpush.bf16.msra.mxu0 %v1960
        %2019 = vmatpush.bf16.msra.mxu0 %v1956
        %2020 = vmatpush.bf16.msra.mxu0 %v1952
        %2021 = vmatpush.bf16.msra.mxu0 %v1948
        %2022 = vmatpush.bf16.msra.mxu0 %v1944
        %2023 = vmatpush.bf16.msra.mxu0 %v1940
        %2024 = vmatmul.bf16.gmra.mxu0 0
        %v2025 = vpop.f32.mrf.mxu0
        %v2026 = vadd.f32 0.0, %v2025
        %v2027 = vpop.f32.mrf.mxu0
        %2028 = vdwg.mxu0
        %2029 = vmatpush.bf16.msra.mxu0 %v1969
        %2030 = vmatpush.bf16.msra.mxu0 %v1965
        %2031 = vmatpush.bf16.msra.mxu0 %v1961
        %2032 = vmatpush.bf16.msra.mxu0 %v1957
        %2033 = vmatpush.bf16.msra.mxu0 %v1953
        %2034 = vmatpush.bf16.msra.mxu0 %v1949
        %2035 = vmatpush.bf16.msra.mxu0 %v1945
        %2036 = vmatpush.bf16.msra.mxu0 %v1941
        %2037 = vmatmul.bf16.gmra.mxu0 0
        %v2038 = vpop.f32.mrf.mxu0
        %v2039 = vadd.f32 0.0, %v2038
        %v2040 = vpop.f32.mrf.mxu0
        %2041 = vdwg.mxu0
        %2042 = vmatpush.bf16.msra.mxu0 %v1970
        %2043 = vmatpush.bf16.msra.mxu0 %v1966
        %2044 = vmatpush.bf16.msra.mxu0 %v1962
        %2045 = vmatpush.bf16.msra.mxu0 %v1958
        %2046 = vmatpush.bf16.msra.mxu0 %v1954
        %2047 = vmatpush.bf16.msra.mxu0 %v1950
        %2048 = vmatpush.bf16.msra.mxu0 %v1946
        %2049 = vmatpush.bf16.msra.mxu0 %v1942
        %2050 = vmatmul.bf16.gmra.mxu0 0
        %v2051 = vpop.f32.mrf.mxu0
        %v2052 = vadd.f32 0.0, %v2051
        %v2053 = vpop.f32.mrf.mxu0
        %2054 = vdwg.mxu0
        %v2055 = vadd.f32 %v1839, %v2013
        %v2056 = vadd.f32 %v1840, %v2026
        %v2057 = vadd.f32 %v1841, %v2039
        %v2058 = vadd.f32 %v1842, %v2052
        %v2059 = vxor.u32 %v2055, 2147483648
        %v2060 = vmul.f32 %v2059, 1.442695
        %v2061 = vpow.pop %v2060
        %v2062 = vadd.f32 %v2061, 1.0
        %v2063 = vrcp.pop %v2062
        %v2064 = vmul.f32 %v2062, %v2063
        %v2065 = vsub.f32 1.0, %v2064
        %v2066 = vmul.f32 %v2063, %v2065
        %v2067 = vadd.f32 %v2063, %v2066
        %vm2068 = vweird.f32 %v2062
        %vm2069 = vweird.f32 %v2063
        %vm2070 = vmor %vm2068, %vm2069
        %v2071 = vsel %vm2070, %v2063, %v2067
        %v2072 = vand.u32 2147483647, %v2062
        %vm2073 = vcmp.eq.f32.partialorder %v2072, 8.507059e+37
        %v2074 = vand.u32 %v2062, 2147483648
        %v2075 = vor.u32 1.1754944e-38, %v2074
        %v2076 = vsel %vm2073, %v2075, %v2071
        %v2077 = vmul.f32 1.0, %v2076
        %v2078 = vxor.u32 %v2056, 2147483648
        %v2079 = vmul.f32 %v2078, 1.442695
        %v2080 = vpow.pop %v2079
        %v2081 = vadd.f32 %v2080, 1.0
        %v2082 = vrcp.pop %v2081
        %v2083 = vmul.f32 %v2081, %v2082
        %v2084 = vsub.f32 1.0, %v2083
        %v2085 = vmul.f32 %v2082, %v2084
        %v2086 = vadd.f32 %v2082, %v2085
        %vm2087 = vweird.f32 %v2081
        %vm2088 = vweird.f32 %v2082
        %vm2089 = vmor %vm2087, %vm2088
        %v2090 = vsel %vm2089, %v2082, %v2086
        %v2091 = vand.u32 2147483647, %v2081
        %vm2092 = vcmp.eq.f32.partialorder %v2091, 8.507059e+37
        %v2093 = vand.u32 %v2081, 2147483648
        %v2094 = vor.u32 1.1754944e-38, %v2093
        %v2095 = vsel %vm2092, %v2094, %v2090
        %v2096 = vmul.f32 1.0, %v2095
        %v2097 = vtanh.pop %v2057
        %v2098 = vxor.u32 %v2058, 2147483648
        %v2099 = vmul.f32 %v2098, 1.442695
        %v2100 = vpow.pop %v2099
        %v2101 = vadd.f32 %v2100, 1.0
        %v2102 = vrcp.pop %v2101
        %v2103 = vmul.f32 %v2101, %v2102
        %v2104 = vsub.f32 1.0, %v2103
        %v2105 = vmul.f32 %v2102, %v2104
        %v2106 = vadd.f32 %v2102, %v2105
        %vm2107 = vweird.f32 %v2101
        %vm2108 = vweird.f32 %v2102
        %vm2109 = vmor %vm2107, %vm2108
        %v2110 = vsel %vm2109, %v2102, %v2106
        %v2111 = vand.u32 2147483647, %v2101
        %vm2112 = vcmp.eq.f32.partialorder %v2111, 8.507059e+37
        %v2113 = vand.u32 %v2101, 2147483648
        %v2114 = vor.u32 1.1754944e-38, %v2113
        %v2115 = vsel %vm2112, %v2114, %v2110
        %v2116 = vmul.f32 1.0, %v2115
        %v2117 = vmul.f32 %v2096, 0.0
        %v2118 = vmul.f32 %v2077, %v2097
        %v2119 = vadd.f32 %v2117, %v2118
        %v2120 = vtanh.pop %v2119
        %v2121 = vmul.f32 %v2116, %v2120
        %v2122 = vld [vmem:[%s824] sm:$0xff]
        %v2123 = vld [vmem:[%s824 + $0x8] sm:$0xff]
        %v2124 = vld [vmem:[%s824 + $0x10] sm:$0xff]
        %v2125 = vld [vmem:[%s824 + $0x18] sm:$0xff]
        %v2126 = vpack.c.bf16 %v2121, %v2121
        %2127 = vmatpush.bf16.msra.mxu0 %v1967
        %2128 = vmatpush.bf16.msra.mxu0 %v1963
        %2129 = vmatpush.bf16.msra.mxu0 %v1959
        %2130 = vmatpush.bf16.msra.mxu0 %v1955
        %2131 = vmatpush.bf16.msra.mxu0 %v1951
        %2132 = vmatpush.bf16.msra.mxu0 %v1947
        %2133 = vmatpush.bf16.msra.mxu0 %v1943
        %2134 = vmatpush.bf16.msra.mxu0 %v1939
        %2135 = vmatmul.bf16.gmra.mxu0 %v2126
        %v2136 = vpop.f32.mrf.mxu0
        %v2137 = vadd.f32 0.0, %v2136
        %v2138 = vpop.f32.mrf.mxu0
        %2139 = vdwg.mxu0
        %2140 = vmatpush.bf16.msra.mxu0 %v1968
        %2141 = vmatpush.bf16.msra.mxu0 %v1964
        %2142 = vmatpush.bf16.msra.mxu0 %v1960
        %2143 = vmatpush.bf16.msra.mxu0 %v1956
        %2144 = vmatpush.bf16.msra.mxu0 %v1952
        %2145 = vmatpush.bf16.msra.mxu0 %v1948
        %2146 = vmatpush.bf16.msra.mxu0 %v1944
        %2147 = vmatpush.bf16.msra.mxu0 %v1940
        %2148 = vmatmul.bf16.gmra.mxu0 %v2126
        %v2149 = vpop.f32.mrf.mxu0
        %v2150 = vadd.f32 0.0, %v2149
        %v2151 = vpop.f32.mrf.mxu0
        %2152 = vdwg.mxu0
        %2153 = vmatpush.bf16.msra.mxu0 %v1969
        %2154 = vmatpush.bf16.msra.mxu0 %v1965
        %2155 = vmatpush.bf16.msra.mxu0 %v1961
        %2156 = vmatpush.bf16.msra.mxu0 %v1957
        %2157 = vmatpush.bf16.msra.mxu0 %v1953
        %2158 = vmatpush.bf16.msra.mxu0 %v1949
        %2159 = vmatpush.bf16.msra.mxu0 %v1945
        %2160 = vmatpush.bf16.msra.mxu0 %v1941
        %2161 = vmatmul.bf16.gmra.mxu0 %v2126
        %v2162 = vpop.f32.mrf.mxu0
        %v2163 = vadd.f32 0.0, %v2162
        %v2164 = vpop.f32.mrf.mxu0
        %2165 = vdwg.mxu0
        %2166 = vmatpush.bf16.msra.mxu0 %v1970
        %2167 = vmatpush.bf16.msra.mxu0 %v1966
        %2168 = vmatpush.bf16.msra.mxu0 %v1962
        %2169 = vmatpush.bf16.msra.mxu0 %v1958
        %2170 = vmatpush.bf16.msra.mxu0 %v1954
        %2171 = vmatpush.bf16.msra.mxu0 %v1950
        %2172 = vmatpush.bf16.msra.mxu0 %v1946
        %2173 = vmatpush.bf16.msra.mxu0 %v1942
        %2174 = vmatmul.bf16.gmra.mxu0 %v2126
        %v2175 = vpop.f32.mrf.mxu0
        %v2176 = vadd.f32 0.0, %v2175
        %v2177 = vpop.f32.mrf.mxu0
        %2178 = vdwg.mxu0
        %v2179 = vadd.f32 %v2122, %v2137
        %v2180 = vadd.f32 %v2123, %v2150
        %v2181 = vadd.f32 %v2124, %v2163
        %v2182 = vadd.f32 %v2125, %v2176
        %v2183 = vxor.u32 %v2179, 2147483648
        %v2184 = vmul.f32 %v2183, 1.442695
        %v2185 = vpow.pop %v2184
        %v2186 = vadd.f32 %v2185, 1.0
        %v2187 = vrcp.pop %v2186
        %v2188 = vmul.f32 %v2186, %v2187
        %v2189 = vsub.f32 1.0, %v2188
        %v2190 = vmul.f32 %v2187, %v2189
        %v2191 = vadd.f32 %v2187, %v2190
        %vm2192 = vweird.f32 %v2186
        %vm2193 = vweird.f32 %v2187
        %vm2194 = vmor %vm2192, %vm2193
        %v2195 = vsel %vm2194, %v2187, %v2191
        %v2196 = vand.u32 2147483647, %v2186
        %vm2197 = vcmp.eq.f32.partialorder %v2196, 8.507059e+37
        %v2198 = vand.u32 %v2186, 2147483648
        %v2199 = vor.u32 1.1754944e-38, %v2198
        %v2200 = vsel %vm2197, %v2199, %v2195
        %v2201 = vmul.f32 1.0, %v2200
        %v2202 = vxor.u32 %v2180, 2147483648
        %v2203 = vmul.f32 %v2202, 1.442695
        %v2204 = vpow.pop %v2203
        %v2205 = vadd.f32 %v2204, 1.0
        %v2206 = vrcp.pop %v2205
        %v2207 = vmul.f32 %v2205, %v2206
        %v2208 = vsub.f32 1.0, %v2207
        %v2209 = vmul.f32 %v2206, %v2208
        %v2210 = vadd.f32 %v2206, %v2209
        %vm2211 = vweird.f32 %v2205
        %vm2212 = vweird.f32 %v2206
        %vm2213 = vmor %vm2211, %vm2212
        %v2214 = vsel %vm2213, %v2206, %v2210
        %v2215 = vand.u32 2147483647, %v2205
        %vm2216 = vcmp.eq.f32.partialorder %v2215, 8.507059e+37
        %v2217 = vand.u32 %v2205, 2147483648
        %v2218 = vor.u32 1.1754944e-38, %v2217
        %v2219 = vsel %vm2216, %v2218, %v2214
        %v2220 = vmul.f32 1.0, %v2219
        %v2221 = vtanh.pop %v2181
        %v2222 = vxor.u32 %v2182, 2147483648
        %v2223 = vmul.f32 %v2222, 1.442695
        %v2224 = vpow.pop %v2223
        %v2225 = vadd.f32 %v2224, 1.0
        %v2226 = vrcp.pop %v2225
        %v2227 = vmul.f32 %v2225, %v2226
        %v2228 = vsub.f32 1.0, %v2227
        %v2229 = vmul.f32 %v2226, %v2228
        %v2230 = vadd.f32 %v2226, %v2229
        %vm2231 = vweird.f32 %v2225
        %vm2232 = vweird.f32 %v2226
        %vm2233 = vmor %vm2231, %vm2232
        %v2234 = vsel %vm2233, %v2226, %v2230
        %v2235 = vand.u32 2147483647, %v2225
        %vm2236 = vcmp.eq.f32.partialorder %v2235, 8.507059e+37
        %v2237 = vand.u32 %v2225, 2147483648
        %v2238 = vor.u32 1.1754944e-38, %v2237
        %v2239 = vsel %vm2236, %v2238, %v2234
        %v2240 = vmul.f32 1.0, %v2239
        %v2241 = vmul.f32 %v2220, %v2119
        %v2242 = vmul.f32 %v2201, %v2221
        %v2243 = vadd.f32 %v2241, %v2242
        %v2244 = vtanh.pop %v2243
        %v2245 = vmul.f32 %v2240, %v2244
        %v2246 = vld [vmem:[%s951] sm:$0xff]
        %v2247 = vld [vmem:[%s951 + $0x8] sm:$0xff]
        %v2248 = vld [vmem:[%s951 + $0x10] sm:$0xff]
        %v2249 = vld [vmem:[%s951 + $0x18] sm:$0xff]
        %v2250 = vpack.c.bf16 %v2245, %v2245
        %2251 = vmatpush.bf16.msra.mxu0 %v1967
        %2252 = vmatpush.bf16.msra.mxu0 %v1963
        %2253 = vmatpush.bf16.msra.mxu0 %v1959
        %2254 = vmatpush.bf16.msra.mxu0 %v1955
        %2255 = vmatpush.bf16.msra.mxu0 %v1951
        %2256 = vmatpush.bf16.msra.mxu0 %v1947
        %2257 = vmatpush.bf16.msra.mxu0 %v1943
        %2258 = vmatpush.bf16.msra.mxu0 %v1939
        %2259 = vmatmul.bf16.gmra.mxu0 %v2250
        %v2260 = vpop.f32.mrf.mxu0
        %v2261 = vadd.f32 0.0, %v2260
        %v2262 = vpop.f32.mrf.mxu0
        %2263 = vdwg.mxu0
        %2264 = vmatpush.bf16.msra.mxu0 %v1968
        %2265 = vmatpush.bf16.msra.mxu0 %v1964
        %2266 = vmatpush.bf16.msra.mxu0 %v1960
        %2267 = vmatpush.bf16.msra.mxu0 %v1956
        %2268 = vmatpush.bf16.msra.mxu0 %v1952
        %2269 = vmatpush.bf16.msra.mxu0 %v1948
        %2270 = vmatpush.bf16.msra.mxu0 %v1944
        %2271 = vmatpush.bf16.msra.mxu0 %v1940
        %2272 = vmatmul.bf16.gmra.mxu0 %v2250
        %v2273 = vpop.f32.mrf.mxu0
        %v2274 = vadd.f32 0.0, %v2273
        %v2275 = vpop.f32.mrf.mxu0
        %2276 = vdwg.mxu0
        %2277 = vmatpush.bf16.msra.mxu0 %v1969
        %2278 = vmatpush.bf16.msra.mxu0 %v1965
        %2279 = vmatpush.bf16.msra.mxu0 %v1961
        %2280 = vmatpush.bf16.msra.mxu0 %v1957
        %2281 = vmatpush.bf16.msra.mxu0 %v1953
        %2282 = vmatpush.bf16.msra.mxu0 %v1949
        %2283 = vmatpush.bf16.msra.mxu0 %v1945
        %2284 = vmatpush.bf16.msra.mxu0 %v1941
        %2285 = vmatmul.bf16.gmra.mxu0 %v2250
        %v2286 = vpop.f32.mrf.mxu0
        %v2287 = vadd.f32 0.0, %v2286
        %v2288 = vpop.f32.mrf.mxu0
        %2289 = vdwg.mxu0
        %2290 = vmatpush.bf16.msra.mxu0 %v1970
        %2291 = vmatpush.bf16.msra.mxu0 %v1966
        %2292 = vmatpush.bf16.msra.mxu0 %v1962
        %2293 = vmatpush.bf16.msra.mxu0 %v1958
        %2294 = vmatpush.bf16.msra.mxu0 %v1954
        %2295 = vmatpush.bf16.msra.mxu0 %v1950
        %2296 = vmatpush.bf16.msra.mxu0 %v1946
        %2297 = vmatpush.bf16.msra.mxu0 %v1942
        %2298 = vmatmul.bf16.gmra.mxu0 %v2250
        %v2299 = vpop.f32.mrf.mxu0
        %v2300 = vadd.f32 0.0, %v2299
        %v2301 = vpop.f32.mrf.mxu0
        %2302 = vdwg.mxu0
        %v2303 = vadd.f32 %v2246, %v2261
        %v2304 = vadd.f32 %v2247, %v2274
        %v2305 = vadd.f32 %v2248, %v2287
        %v2306 = vadd.f32 %v2249, %v2300
        %v2307 = vxor.u32 %v2303, 2147483648
        %v2308 = vmul.f32 %v2307, 1.442695
        %v2309 = vpow.pop %v2308
        %v2310 = vadd.f32 %v2309, 1.0
        %v2311 = vrcp.pop %v2310
        %v2312 = vmul.f32 %v2310, %v2311
        %v2313 = vsub.f32 1.0, %v2312
        %v2314 = vmul.f32 %v2311, %v2313
        %v2315 = vadd.f32 %v2311, %v2314
        %vm2316 = vweird.f32 %v2310
        %vm2317 = vweird.f32 %v2311
        %vm2318 = vmor %vm2316, %vm2317
        %v2319 = vsel %vm2318, %v2311, %v2315
        %v2320 = vand.u32 2147483647, %v2310
        %vm2321 = vcmp.eq.f32.partialorder %v2320, 8.507059e+37
        %v2322 = vand.u32 %v2310, 2147483648
        %v2323 = vor.u32 1.1754944e-38, %v2322
        %v2324 = vsel %vm2321, %v2323, %v2319
        %v2325 = vmul.f32 1.0, %v2324
        %v2326 = vxor.u32 %v2304, 2147483648
        %v2327 = vmul.f32 %v2326, 1.442695
        %v2328 = vpow.pop %v2327
        %v2329 = vadd.f32 %v2328, 1.0
        %v2330 = vrcp.pop %v2329
        %v2331 = vmul.f32 %v2329, %v2330
        %v2332 = vsub.f32 1.0, %v2331
        %v2333 = vmul.f32 %v2330, %v2332
        %v2334 = vadd.f32 %v2330, %v2333
        %vm2335 = vweird.f32 %v2329
        %vm2336 = vweird.f32 %v2330
        %vm2337 = vmor %vm2335, %vm2336
        %v2338 = vsel %vm2337, %v2330, %v2334
        %v2339 = vand.u32 2147483647, %v2329
        %vm2340 = vcmp.eq.f32.partialorder %v2339, 8.507059e+37
        %v2341 = vand.u32 %v2329, 2147483648
        %v2342 = vor.u32 1.1754944e-38, %v2341
        %v2343 = vsel %vm2340, %v2342, %v2338
        %v2344 = vmul.f32 1.0, %v2343
        %v2345 = vtanh.pop %v2305
        %v2346 = vxor.u32 %v2306, 2147483648
        %v2347 = vmul.f32 %v2346, 1.442695
        %v2348 = vpow.pop %v2347
        %v2349 = vadd.f32 %v2348, 1.0
        %v2350 = vrcp.pop %v2349
        %v2351 = vmul.f32 %v2349, %v2350
        %v2352 = vsub.f32 1.0, %v2351
        %v2353 = vmul.f32 %v2350, %v2352
        %v2354 = vadd.f32 %v2350, %v2353
        %vm2355 = vweird.f32 %v2349
        %vm2356 = vweird.f32 %v2350
        %vm2357 = vmor %vm2355, %vm2356
        %v2358 = vsel %vm2357, %v2350, %v2354
        %v2359 = vand.u32 2147483647, %v2349
        %vm2360 = vcmp.eq.f32.partialorder %v2359, 8.507059e+37
        %v2361 = vand.u32 %v2349, 2147483648
        %v2362 = vor.u32 1.1754944e-38, %v2361
        %v2363 = vsel %vm2360, %v2362, %v2358
        %v2364 = vmul.f32 1.0, %v2363
        %v2365 = vmul.f32 %v2344, %v2243
        %v2366 = vmul.f32 %v2325, %v2345
        %v2367 = vadd.f32 %v2365, %v2366
        %v2368 = vtanh.pop %v2367
        %v2369 = vmul.f32 %v2364, %v2368
        %v2370 = vld [vmem:[%s1078] sm:$0xff]
        %v2371 = vld [vmem:[%s1078 + $0x8] sm:$0xff]
        %v2372 = vld [vmem:[%s1078 + $0x10] sm:$0xff]
        %v2373 = vld [vmem:[%s1078 + $0x18] sm:$0xff]
        %v2374 = vpack.c.bf16 %v2369, %v2369
        %2375 = vmatpush.bf16.msra.mxu0 %v1967
        %2376 = vmatpush.bf16.msra.mxu0 %v1963
        %2377 = vmatpush.bf16.msra.mxu0 %v1959
        %2378 = vmatpush.bf16.msra.mxu0 %v1955
        %2379 = vmatpush.bf16.msra.mxu0 %v1951
        %2380 = vmatpush.bf16.msra.mxu0 %v1947
        %2381 = vmatpush.bf16.msra.mxu0 %v1943
        %2382 = vmatpush.bf16.msra.mxu0 %v1939
        %2383 = vmatmul.bf16.gmra.mxu0 %v2374
        %v2384 = vpop.f32.mrf.mxu0
        %v2385 = vadd.f32 0.0, %v2384
        %v2386 = vpop.f32.mrf.mxu0
        %2387 = vdwg.mxu0
        %2388 = vmatpush.bf16.msra.mxu0 %v1968
        %2389 = vmatpush.bf16.msra.mxu0 %v1964
        %2390 = vmatpush.bf16.msra.mxu0 %v1960
        %2391 = vmatpush.bf16.msra.mxu0 %v1956
        %2392 = vmatpush.bf16.msra.mxu0 %v1952
        %2393 = vmatpush.bf16.msra.mxu0 %v1948
        %2394 = vmatpush.bf16.msra.mxu0 %v1944
        %2395 = vmatpush.bf16.msra.mxu0 %v1940
        %2396 = vmatmul.bf16.gmra.mxu0 %v2374
        %v2397 = vpop.f32.mrf.mxu0
        %v2398 = vadd.f32 0.0, %v2397
        %v2399 = vpop.f32.mrf.mxu0
        %2400 = vdwg.mxu0
        %2401 = vmatpush.bf16.msra.mxu0 %v1969
        %2402 = vmatpush.bf16.msra.mxu0 %v1965
        %2403 = vmatpush.bf16.msra.mxu0 %v1961
        %2404 = vmatpush.bf16.msra.mxu0 %v1957
        %2405 = vmatpush.bf16.msra.mxu0 %v1953
        %2406 = vmatpush.bf16.msra.mxu0 %v1949
        %2407 = vmatpush.bf16.msra.mxu0 %v1945
        %2408 = vmatpush.bf16.msra.mxu0 %v1941
        %2409 = vmatmul.bf16.gmra.mxu0 %v2374
        %v2410 = vpop.f32.mrf.mxu0
        %v2411 = vadd.f32 0.0, %v2410
        %v2412 = vpop.f32.mrf.mxu0
        %2413 = vdwg.mxu0
        %2414 = vmatpush.bf16.msra.mxu0 %v1970
        %2415 = vmatpush.bf16.msra.mxu0 %v1966
        %2416 = vmatpush.bf16.msra.mxu0 %v1962
        %2417 = vmatpush.bf16.msra.mxu0 %v1958
        %2418 = vmatpush.bf16.msra.mxu0 %v1954
        %2419 = vmatpush.bf16.msra.mxu0 %v1950
        %2420 = vmatpush.bf16.msra.mxu0 %v1946
        %2421 = vmatpush.bf16.msra.mxu0 %v1942
        %2422 = vmatmul.bf16.gmra.mxu0 %v2374
        %v2423 = vpop.f32.mrf.mxu0
        %v2424 = vadd.f32 0.0, %v2423
        %v2425 = vpop.f32.mrf.mxu0
        %2426 = vdwg.mxu0
        %v2427 = vadd.f32 %v2370, %v2385
        %v2428 = vadd.f32 %v2371, %v2398
        %v2429 = vadd.f32 %v2372, %v2411
        %v2430 = vadd.f32 %v2373, %v2424
        %v2431 = vxor.u32 %v2427, 2147483648
        %v2432 = vmul.f32 %v2431, 1.442695
        %v2433 = vpow.pop %v2432
        %v2434 = vadd.f32 %v2433, 1.0
        %v2435 = vrcp.pop %v2434
        %v2436 = vmul.f32 %v2434, %v2435
        %v2437 = vsub.f32 1.0, %v2436
        %v2438 = vmul.f32 %v2435, %v2437
        %v2439 = vadd.f32 %v2435, %v2438
        %vm2440 = vweird.f32 %v2434
        %vm2441 = vweird.f32 %v2435
        %vm2442 = vmor %vm2440, %vm2441
        %v2443 = vsel %vm2442, %v2435, %v2439
        %v2444 = vand.u32 2147483647, %v2434
        %vm2445 = vcmp.eq.f32.partialorder %v2444, 8.507059e+37
        %v2446 = vand.u32 %v2434, 2147483648
        %v2447 = vor.u32 1.1754944e-38, %v2446
        %v2448 = vsel %vm2445, %v2447, %v2443
        %v2449 = vmul.f32 1.0, %v2448
        %v2450 = vxor.u32 %v2428, 2147483648
        %v2451 = vmul.f32 %v2450, 1.442695
        %v2452 = vpow.pop %v2451
        %v2453 = vadd.f32 %v2452, 1.0
        %v2454 = vrcp.pop %v2453
        %v2455 = vmul.f32 %v2453, %v2454
        %v2456 = vsub.f32 1.0, %v2455
        %v2457 = vmul.f32 %v2454, %v2456
        %v2458 = vadd.f32 %v2454, %v2457
        %vm2459 = vweird.f32 %v2453
        %vm2460 = vweird.f32 %v2454
        %vm2461 = vmor %vm2459, %vm2460
        %v2462 = vsel %vm2461, %v2454, %v2458
        %v2463 = vand.u32 2147483647, %v2453
        %vm2464 = vcmp.eq.f32.partialorder %v2463, 8.507059e+37
        %v2465 = vand.u32 %v2453, 2147483648
        %v2466 = vor.u32 1.1754944e-38, %v2465
        %v2467 = vsel %vm2464, %v2466, %v2462
        %v2468 = vmul.f32 1.0, %v2467
        %v2469 = vtanh.pop %v2429
        %v2470 = vxor.u32 %v2430, 2147483648
        %v2471 = vmul.f32 %v2470, 1.442695
        %v2472 = vpow.pop %v2471
        %v2473 = vadd.f32 %v2472, 1.0
        %v2474 = vrcp.pop %v2473
        %v2475 = vmul.f32 %v2473, %v2474
        %v2476 = vsub.f32 1.0, %v2475
        %v2477 = vmul.f32 %v2474, %v2476
        %v2478 = vadd.f32 %v2474, %v2477
        %vm2479 = vweird.f32 %v2473
        %vm2480 = vweird.f32 %v2474
        %vm2481 = vmor %vm2479, %vm2480
        %v2482 = vsel %vm2481, %v2474, %v2478
        %v2483 = vand.u32 2147483647, %v2473
        %vm2484 = vcmp.eq.f32.partialorder %v2483, 8.507059e+37
        %v2485 = vand.u32 %v2473, 2147483648
        %v2486 = vor.u32 1.1754944e-38, %v2485
        %v2487 = vsel %vm2484, %v2486, %v2482
        %v2488 = vmul.f32 1.0, %v2487
        %v2489 = vmul.f32 %v2468, %v2367
        %v2490 = vmul.f32 %v2449, %v2469
        %v2491 = vadd.f32 %v2489, %v2490
        %v2492 = vtanh.pop %v2491
        %v2493 = vmul.f32 %v2488, %v2492
        %v2494 = vld [vmem:[%s1205] sm:$0xff]
        %v2495 = vld [vmem:[%s1205 + $0x8] sm:$0xff]
        %v2496 = vld [vmem:[%s1205 + $0x10] sm:$0xff]
        %v2497 = vld [vmem:[%s1205 + $0x18] sm:$0xff]
        %v2498 = vpack.c.bf16 %v2493, %v2493
        %2499 = vmatpush.bf16.msra.mxu0 %v1967
        %2500 = vmatpush.bf16.msra.mxu0 %v1963
        %2501 = vmatpush.bf16.msra.mxu0 %v1959
        %2502 = vmatpush.bf16.msra.mxu0 %v1955
        %2503 = vmatpush.bf16.msra.mxu0 %v1951
        %2504 = vmatpush.bf16.msra.mxu0 %v1947
        %2505 = vmatpush.bf16.msra.mxu0 %v1943
        %2506 = vmatpush.bf16.msra.mxu0 %v1939
        %2507 = vmatmul.bf16.gmra.mxu0 %v2498
        %v2508 = vpop.f32.mrf.mxu0
        %v2509 = vadd.f32 0.0, %v2508
        %v2510 = vpop.f32.mrf.mxu0
        %2511 = vdwg.mxu0
        %2512 = vmatpush.bf16.msra.mxu0 %v1968
        %2513 = vmatpush.bf16.msra.mxu0 %v1964
        %2514 = vmatpush.bf16.msra.mxu0 %v1960
        %2515 = vmatpush.bf16.msra.mxu0 %v1956
        %2516 = vmatpush.bf16.msra.mxu0 %v1952
        %2517 = vmatpush.bf16.msra.mxu0 %v1948
        %2518 = vmatpush.bf16.msra.mxu0 %v1944
        %2519 = vmatpush.bf16.msra.mxu0 %v1940
        %2520 = vmatmul.bf16.gmra.mxu0 %v2498
        %v2521 = vpop.f32.mrf.mxu0
        %v2522 = vadd.f32 0.0, %v2521
        %v2523 = vpop.f32.mrf.mxu0
        %2524 = vdwg.mxu0
        %2525 = vmatpush.bf16.msra.mxu0 %v1969
        %2526 = vmatpush.bf16.msra.mxu0 %v1965
        %2527 = vmatpush.bf16.msra.mxu0 %v1961
        %2528 = vmatpush.bf16.msra.mxu0 %v1957
        %2529 = vmatpush.bf16.msra.mxu0 %v1953
        %2530 = vmatpush.bf16.msra.mxu0 %v1949
        %2531 = vmatpush.bf16.msra.mxu0 %v1945
        %2532 = vmatpush.bf16.msra.mxu0 %v1941
        %2533 = vmatmul.bf16.gmra.mxu0 %v2498
        %v2534 = vpop.f32.mrf.mxu0
        %v2535 = vadd.f32 0.0, %v2534
        %v2536 = vpop.f32.mrf.mxu0
        %2537 = vdwg.mxu0
        %2538 = vmatpush.bf16.msra.mxu0 %v1970
        %2539 = vmatpush.bf16.msra.mxu0 %v1966
        %2540 = vmatpush.bf16.msra.mxu0 %v1962
        %2541 = vmatpush.bf16.msra.mxu0 %v1958
        %2542 = vmatpush.bf16.msra.mxu0 %v1954
        %2543 = vmatpush.bf16.msra.mxu0 %v1950
        %2544 = vmatpush.bf16.msra.mxu0 %v1946
        %2545 = vmatpush.bf16.msra.mxu0 %v1942
        %2546 = vmatmul.bf16.gmra.mxu0 %v2498
        %v2547 = vpop.f32.mrf.mxu0
        %v2548 = vadd.f32 0.0, %v2547
        %v2549 = vpop.f32.mrf.mxu0
        %2550 = vdwg.mxu0
        %v2551 = vadd.f32 %v2494, %v2509
        %v2552 = vadd.f32 %v2495, %v2522
        %v2553 = vadd.f32 %v2496, %v2535
        %v2554 = vadd.f32 %v2497, %v2548
        %v2555 = vxor.u32 %v2551, 2147483648
        %v2556 = vmul.f32 %v2555, 1.442695
        %v2557 = vpow.pop %v2556
        %v2558 = vadd.f32 %v2557, 1.0
        %v2559 = vrcp.pop %v2558
        %v2560 = vmul.f32 %v2558, %v2559
        %v2561 = vsub.f32 1.0, %v2560
        %v2562 = vmul.f32 %v2559, %v2561
        %v2563 = vadd.f32 %v2559, %v2562
        %vm2564 = vweird.f32 %v2558
        %vm2565 = vweird.f32 %v2559
        %vm2566 = vmor %vm2564, %vm2565
        %v2567 = vsel %vm2566, %v2559, %v2563
        %v2568 = vand.u32 2147483647, %v2558
        %vm2569 = vcmp.eq.f32.partialorder %v2568, 8.507059e+37
        %v2570 = vand.u32 %v2558, 2147483648
        %v2571 = vor.u32 1.1754944e-38, %v2570
        %v2572 = vsel %vm2569, %v2571, %v2567
        %v2573 = vmul.f32 1.0, %v2572
        %v2574 = vxor.u32 %v2552, 2147483648
        %v2575 = vmul.f32 %v2574, 1.442695
        %v2576 = vpow.pop %v2575
        %v2577 = vadd.f32 %v2576, 1.0
        %v2578 = vrcp.pop %v2577
        %v2579 = vmul.f32 %v2577, %v2578
        %v2580 = vsub.f32 1.0, %v2579
        %v2581 = vmul.f32 %v2578, %v2580
        %v2582 = vadd.f32 %v2578, %v2581
        %vm2583 = vweird.f32 %v2577
        %vm2584 = vweird.f32 %v2578
        %vm2585 = vmor %vm2583, %vm2584
        %v2586 = vsel %vm2585, %v2578, %v2582
        %v2587 = vand.u32 2147483647, %v2577
        %vm2588 = vcmp.eq.f32.partialorder %v2587, 8.507059e+37
        %v2589 = vand.u32 %v2577, 2147483648
        %v2590 = vor.u32 1.1754944e-38, %v2589
        %v2591 = vsel %vm2588, %v2590, %v2586
        %v2592 = vmul.f32 1.0, %v2591
        %v2593 = vtanh.pop %v2553
        %v2594 = vxor.u32 %v2554, 2147483648
        %v2595 = vmul.f32 %v2594, 1.442695
        %v2596 = vpow.pop %v2595
        %v2597 = vadd.f32 %v2596, 1.0
        %v2598 = vrcp.pop %v2597
        %v2599 = vmul.f32 %v2597, %v2598
        %v2600 = vsub.f32 1.0, %v2599
        %v2601 = vmul.f32 %v2598, %v2600
        %v2602 = vadd.f32 %v2598, %v2601
        %vm2603 = vweird.f32 %v2597
        %vm2604 = vweird.f32 %v2598
        %vm2605 = vmor %vm2603, %vm2604
        %v2606 = vsel %vm2605, %v2598, %v2602
        %v2607 = vand.u32 2147483647, %v2597
        %vm2608 = vcmp.eq.f32.partialorder %v2607, 8.507059e+37
        %v2609 = vand.u32 %v2597, 2147483648
        %v2610 = vor.u32 1.1754944e-38, %v2609
        %v2611 = vsel %vm2608, %v2610, %v2606
        %v2612 = vmul.f32 1.0, %v2611
        %v2613 = vmul.f32 %v2592, %v2491
        %v2614 = vmul.f32 %v2573, %v2593
        %v2615 = vadd.f32 %v2613, %v2614
        %v2616 = vtanh.pop %v2615
        %v2617 = vmul.f32 %v2612, %v2616
        %v2618 = vld [vmem:[%s1332] sm:$0xff]
        %v2619 = vld [vmem:[%s1332 + $0x8] sm:$0xff]
        %v2620 = vld [vmem:[%s1332 + $0x10] sm:$0xff]
        %v2621 = vld [vmem:[%s1332 + $0x18] sm:$0xff]
        %v2622 = vpack.c.bf16 %v2617, %v2617
        %2623 = vmatpush.bf16.msra.mxu0 %v1967
        %2624 = vmatpush.bf16.msra.mxu0 %v1963
        %2625 = vmatpush.bf16.msra.mxu0 %v1959
        %2626 = vmatpush.bf16.msra.mxu0 %v1955
        %2627 = vmatpush.bf16.msra.mxu0 %v1951
        %2628 = vmatpush.bf16.msra.mxu0 %v1947
        %2629 = vmatpush.bf16.msra.mxu0 %v1943
        %2630 = vmatpush.bf16.msra.mxu0 %v1939
        %2631 = vmatmul.bf16.gmra.mxu0 %v2622
        %v2632 = vpop.f32.mrf.mxu0
        %v2633 = vadd.f32 0.0, %v2632
        %v2634 = vpop.f32.mrf.mxu0
        %2635 = vdwg.mxu0
        %2636 = vmatpush.bf16.msra.mxu0 %v1968
        %2637 = vmatpush.bf16.msra.mxu0 %v1964
        %2638 = vmatpush.bf16.msra.mxu0 %v1960
        %2639 = vmatpush.bf16.msra.mxu0 %v1956
        %2640 = vmatpush.bf16.msra.mxu0 %v1952
        %2641 = vmatpush.bf16.msra.mxu0 %v1948
        %2642 = vmatpush.bf16.msra.mxu0 %v1944
        %2643 = vmatpush.bf16.msra.mxu0 %v1940
        %2644 = vmatmul.bf16.gmra.mxu0 %v2622
        %v2645 = vpop.f32.mrf.mxu0
        %v2646 = vadd.f32 0.0, %v2645
        %v2647 = vpop.f32.mrf.mxu0
        %2648 = vdwg.mxu0
        %2649 = vmatpush.bf16.msra.mxu0 %v1969
        %2650 = vmatpush.bf16.msra.mxu0 %v1965
        %2651 = vmatpush.bf16.msra.mxu0 %v1961
        %2652 = vmatpush.bf16.msra.mxu0 %v1957
        %2653 = vmatpush.bf16.msra.mxu0 %v1953
        %2654 = vmatpush.bf16.msra.mxu0 %v1949
        %2655 = vmatpush.bf16.msra.mxu0 %v1945
        %2656 = vmatpush.bf16.msra.mxu0 %v1941
        %2657 = vmatmul.bf16.gmra.mxu0 %v2622
        %v2658 = vpop.f32.mrf.mxu0
        %v2659 = vadd.f32 0.0, %v2658
        %v2660 = vpop.f32.mrf.mxu0
        %2661 = vdwg.mxu0
        %2662 = vmatpush.bf16.msra.mxu0 %v1970
        %2663 = vmatpush.bf16.msra.mxu0 %v1966
        %2664 = vmatpush.bf16.msra.mxu0 %v1962
        %2665 = vmatpush.bf16.msra.mxu0 %v1958
        %2666 = vmatpush.bf16.msra.mxu0 %v1954
        %2667 = vmatpush.bf16.msra.mxu0 %v1950
        %2668 = vmatpush.bf16.msra.mxu0 %v1946
        %2669 = vmatpush.bf16.msra.mxu0 %v1942
        %2670 = vmatmul.bf16.gmra.mxu0 %v2622
        %v2671 = vpop.f32.mrf.mxu0
        %v2672 = vadd.f32 0.0, %v2671
        %v2673 = vpop.f32.mrf.mxu0
        %2674 = vdwg.mxu0
        %v2675 = vadd.f32 %v2618, %v2633
        %v2676 = vadd.f32 %v2619, %v2646
        %v2677 = vadd.f32 %v2620, %v2659
        %v2678 = vadd.f32 %v2621, %v2672
        %v2679 = vxor.u32 %v2675, 2147483648
        %v2680 = vmul.f32 %v2679, 1.442695
        %v2681 = vpow.pop %v2680
        %v2682 = vadd.f32 %v2681, 1.0
        %v2683 = vrcp.pop %v2682
        %v2684 = vmul.f32 %v2682, %v2683
        %v2685 = vsub.f32 1.0, %v2684
        %v2686 = vmul.f32 %v2683, %v2685
        %v2687 = vadd.f32 %v2683, %v2686
        %vm2688 = vweird.f32 %v2682
        %vm2689 = vweird.f32 %v2683
        %vm2690 = vmor %vm2688, %vm2689
        %v2691 = vsel %vm2690, %v2683, %v2687
        %v2692 = vand.u32 2147483647, %v2682
        %vm2693 = vcmp.eq.f32.partialorder %v2692, 8.507059e+37
        %v2694 = vand.u32 %v2682, 2147483648
        %v2695 = vor.u32 1.1754944e-38, %v2694
        %v2696 = vsel %vm2693, %v2695, %v2691
        %v2697 = vmul.f32 1.0, %v2696
        %v2698 = vxor.u32 %v2676, 2147483648
        %v2699 = vmul.f32 %v2698, 1.442695
        %v2700 = vpow.pop %v2699
        %v2701 = vadd.f32 %v2700, 1.0
        %v2702 = vrcp.pop %v2701
        %v2703 = vmul.f32 %v2701, %v2702
        %v2704 = vsub.f32 1.0, %v2703
        %v2705 = vmul.f32 %v2702, %v2704
        %v2706 = vadd.f32 %v2702, %v2705
        %vm2707 = vweird.f32 %v2701
        %vm2708 = vweird.f32 %v2702
        %vm2709 = vmor %vm2707, %vm2708
        %v2710 = vsel %vm2709, %v2702, %v2706
        %v2711 = vand.u32 2147483647, %v2701
        %vm2712 = vcmp.eq.f32.partialorder %v2711, 8.507059e+37
        %v2713 = vand.u32 %v2701, 2147483648
        %v2714 = vor.u32 1.1754944e-38, %v2713
        %v2715 = vsel %vm2712, %v2714, %v2710
        %v2716 = vmul.f32 1.0, %v2715
        %v2717 = vtanh.pop %v2677
        %v2718 = vxor.u32 %v2678, 2147483648
        %v2719 = vmul.f32 %v2718, 1.442695
        %v2720 = vpow.pop %v2719
        %v2721 = vadd.f32 %v2720, 1.0
        %v2722 = vrcp.pop %v2721
        %v2723 = vmul.f32 %v2721, %v2722
        %v2724 = vsub.f32 1.0, %v2723
        %v2725 = vmul.f32 %v2722, %v2724
        %v2726 = vadd.f32 %v2722, %v2725
        %vm2727 = vweird.f32 %v2721
        %vm2728 = vweird.f32 %v2722
        %vm2729 = vmor %vm2727, %vm2728
        %v2730 = vsel %vm2729, %v2722, %v2726
        %v2731 = vand.u32 2147483647, %v2721
        %vm2732 = vcmp.eq.f32.partialorder %v2731, 8.507059e+37
        %v2733 = vand.u32 %v2721, 2147483648
        %v2734 = vor.u32 1.1754944e-38, %v2733
        %v2735 = vsel %vm2732, %v2734, %v2730
        %v2736 = vmul.f32 1.0, %v2735
        %v2737 = vmul.f32 %v2716, %v2615
        %v2738 = vmul.f32 %v2697, %v2717
        %v2739 = vadd.f32 %v2737, %v2738
        %v2740 = vtanh.pop %v2739
        %v2741 = vmul.f32 %v2736, %v2740
        %2742 = vst [vmem:[%s319] sm:$0xff] %v2741
        %s2743 = sand.u32 %s139, 1
        %s2744 = scalar_lea.sflag [#allocation7], %s2743
        %s2745 = sand.u32 %s139, 1
        %s2746 = smul.addr %s2745, 8
        %s2747 = scalar_lea.vmem [#allocation10], %s2746
        // Predicated region
        $region90: #{tpu_custom_call.1} parent=76 // pred_check
          %p2748 = pneg %p149
        $region91: #{tpu_custom_call.1} parent=76 // pred_check_branch
          %2750 = sbr.rel (%p2748) target = $region93
        $region92: #{tpu_custom_call.1} parent=76 // pred_region
          %2752 = vsyncadd %s2744, 0
          %s2753 = smul.addr %s21, 8
          %s2754 = scalar_lea.hbm %s5, %s2753
          %s2756 = sshll.u32 %s2747, 4
          %s2757 = int_to_ptr.vmem [resolvable:$true] %s2756
          %s2758 = sshll.u32 %s2754, 4
          %s2759 = int_to_ptr.hbm [resolvable:$true] %s2758
          %2761 = dma.vmem_to_hbm [thread:$0]  %s2757, 128, %s2759, %s2744
        $region93: #{tpu_custom_call.1} parent=76 // pred_fallthru
          _
      $region77: #{tpu_custom_call.1} parent=5 // pred_fallthru
        _
      %p2762 = scmp.le.s32.totalorder 2, %s16
      // Predicated region
      $region94: #{tpu_custom_call.1} parent=5 // pred_check
        %p2763 = pneg %p2762
      $region95: #{tpu_custom_call.1} parent=5 // pred_check_branch
        %2765 = sbr.rel (%p2763) target = $region97
      $region96: #{tpu_custom_call.1} parent=5 // pred_region
        %s2766 = ssub.s32 %s16, 2
        // Predicated region
        $region98: #{tpu_custom_call.1} parent=96 // pred_check
          %p2767 = pneg %p155
        $region99: #{tpu_custom_call.1} parent=96 // pred_check_branch
          %2769 = sbr.rel (%p2767) target = $region101
        $region100: #{tpu_custom_call.1} parent=96 // pred_region
          %s2770 = sand.u32 %s140, 1
          %s2771 = scalar_lea.sflag [#allocation7], %s2770
          %s2772 = sand.u32 %s140, 1
          %s2773 = smul.addr %s2772, 8
          %s2774 = scalar_lea.vmem [#allocation10], %s2773
          %2776 = dma.done %s2771, 128
        $region101: #{tpu_custom_call.1} parent=96 // pred_fallthru
          _
      $region97: #{tpu_custom_call.1} parent=5 // pred_fallthru
        _
    $region6: #{tpu_custom_call.1} parent=1 // loop_footer
      %s20 = sadd.s32 1, %s16
    $region7: #{tpu_custom_call.1} parent=1 // loop_footer_branch
      %15 = sbr.rel target = $region3
    $region8: #{tpu_custom_call.1} parent=1 // loop_exit
      _
    %2777 = vsyncpa [#allocation6], 1
    %s2778 = scalar_lea.sflag [#allocation6], 1
    %2779 = vsyncpa %s2778, 1
    %2780 = vsyncpa [#allocation9], 1
    %2781 = vsyncpa [#allocation7], 1
    %s2782 = scalar_lea.sflag [#allocation7], 1
    %2783 = vsyncpa %s2782, 1

</llo_original>
